<compile_context>
chip_gen: v6e
topology: v6e:2x2x1
jax: 0.10.0
libtpu: 0.0.40
codegen_flags: <defaults>
</compile_context>

<pallas_src>
import functools

import jax
import jax.numpy as jnp
from jax import lax
from jax.experimental import pallas as pl
from jax.experimental.pallas import tpu as pltpu


# ----------------------------------------------------------------------------
# In-kernel building block: one bidirectional LSTM layer on VALUES (time-major).
# ----------------------------------------------------------------------------
def _bilstm_layer(x, wih, whh_blk, bias, hidden, g_mask):
    """One bi-LSTM layer, fully unrolled over time.

    x       : (T, B, D_in) f32 time-major input (traced value)
    wih     : (D_in, 8H)   f32 [W_ih fwd | W_ih bwd], PyTorch gate order i,f,g,o
    whh_blk : (2H, 8H)     f32 block-diagonal [[W_hh_f, 0], [0, W_hh_b]]
    bias    : (1, 1, 8H)   f32 combined b_ih + b_hh for both directions
    g_mask  : (B, 4H)      bool, True on the "g" (cell candidate) gate lanes
    returns : (T, B, 2H)   f32 [h_fwd(t) | h_bwd(t)]
    """
    T, B, _ = x.shape
    H = hidden
    G = 4 * H

    # Hoisted input projection for BOTH directions: one (T*B, D_in) @ (D_in, 8H)
    # bf16 MXU matmul with the bias folded in (f32 accumulation).
    xw = jnp.einsum(
        "tbd,dg->tbg", x.astype(jnp.bfloat16), wih.astype(jnp.bfloat16),
        preferred_element_type=jnp.float32) + bias

    whh_bf = whh_blk.astype(jnp.bfloat16)

    def cell(gates, c_prev):
        # One sigmoid + one tanh over the full 4H vector; g lanes picked by mask.
        act = jnp.where(g_mask, jnp.tanh(gates), jax.nn.sigmoid(gates))
        i_g = act[:, 0 * H:1 * H]
        f_g = act[:, 1 * H:2 * H]
        g_g = act[:, 2 * H:3 * H]
        o_g = act[:, 3 * H:4 * H]
        c_new = f_g * c_prev + i_g * g_g
        h_new = o_g * jnp.tanh(c_new)
        return h_new, c_new

    # Recurrent state carried in registers (Python locals), not VMEM scratch.
    h_f = jnp.zeros((B, H), jnp.float32)
    c_f = jnp.zeros((B, H), jnp.float32)
    h_b = jnp.zeros((B, H), jnp.float32)
    c_b = jnp.zeros((B, H), jnp.float32)
    hs_f = [None] * T
    hs_b = [None] * T

    for t in range(T):
        tr = T - 1 - t
        # Single block-diagonal recurrence matmul for both directions:
        # [h_f | h_b] (B, 2H) @ (2H, 8H) -> one MXU push per step.
        hcat = jnp.concatenate([h_f, h_b], axis=-1).astype(jnp.bfloat16)
        rec = jnp.dot(hcat, whh_bf, preferred_element_type=jnp.float32)  # (B,8H)
        h_f, c_f = cell(xw[t, :, :G] + rec[:, :G], c_f)     # fwd consumes t
        h_b, c_b = cell(xw[tr, :, G:] + rec[:, G:], c_b)    # bwd consumes T-1-t
        hs_f[t] = h_f
        hs_b[tr] = h_b

    # Bulk assembly of the layer output (no per-step masked partial stores).
    return jnp.concatenate(
        [jnp.stack(hs_f, axis=0), jnp.stack(hs_b, axis=0)], axis=-1)


# ----------------------------------------------------------------------------
# The single fused kernel: LSTM stack + attention pooling + fc.
# ----------------------------------------------------------------------------
def lstm_att_kernel(*refs, num_layers, hidden):
    H = hidden
    x_ref = refs[0]
    att_base = 1 + 3 * num_layers
    (w1_ref, b1_ref, w2_ref, b2_ref,
     wfc_ref, bfc_ref) = refs[att_base:att_base + 6]
    out_ref = refs[att_base + 6]

    x = x_ref[...]                                     # (T, B, E) f32 time-major
    T, B, _ = x.shape

    # g-gate lane mask, hoisted once and shared by all layers / time steps.
    lane = lax.broadcasted_iota(jnp.int32, (B, 4 * H), 1)
    g_mask = (lane >= 2 * H) & (lane < 3 * H)

    idx = 1
    for _ in range(num_layers):
        wih_ref, whh_ref, b_ref = refs[idx], refs[idx + 1], refs[idx + 2]
        idx += 3
        x = _bilstm_layer(x, wih_ref[...], whh_ref[...], b_ref[...], H, g_mask)

    # SelfAttention: Linear(2H,64) -> ReLU -> Linear(64,1), softmax over the
    # sequence axis; weighted-sum pooling; final fc.  Stays time-major so no
    # in-kernel (T,B,*) <-> (B,T,*) transpose is needed.
    h_att = jnp.einsum(
        "tbd,dk->tbk", x.astype(jnp.bfloat16), w1_ref[...].astype(jnp.bfloat16),
        preferred_element_type=jnp.float32) + b1_ref[...]
    h_att = jnp.maximum(h_att, 0.0)                               # (T, B, 64)
    energy = (jnp.sum(h_att * w2_ref[...], axis=-1, keepdims=True)
              + b2_ref[...])                                      # (T, B, 1)
    m = jnp.max(energy, axis=0, keepdims=True)
    e = jnp.exp(energy - m)
    att_w = e / jnp.sum(e, axis=0, keepdims=True)                 # (T, B, 1)
    pooled = jnp.sum(att_w * x, axis=0)                           # (B, 2H)

    out_ref[...] = (
        jnp.dot(pooled, wfc_ref[...], preferred_element_type=jnp.float32)
        + bfc_ref[...])


# ----------------------------------------------------------------------------
# Wrapper
# ----------------------------------------------------------------------------
def _full_spec(arr):
    zeros = (0,) * arr.ndim
    return pl.BlockSpec(arr.shape, lambda i, _z=zeros: _z)


@functools.partial(jax.jit, static_argnames=("hidden", "class_num"))
def lstm_att_forward(params, tokens, *, hidden, class_num):
    # Frozen-embedding lookup stays a plain-JAX exact gather, emitted time-major.
    x = jnp.take(params["embedding"], tokens.T, axis=0)          # (T, B, E) f32
    T, B, _ = x.shape

    layer_ws = []
    for layer in params["lstm_layers"]:
        layer_ws += [layer["wih"], layer["whh"], layer["b"]]
    num_layers = len(params["lstm_layers"])

    inputs = [x] + layer_ws + [
        params["att_w1"], params["att_b1"], params["att_w2"], params["att_b2"],
        params["fc_w"], params["fc_b"],
    ]

    kernel = functools.partial(
        lstm_att_kernel, num_layers=num_layers, hidden=hidden)

    return pl.pallas_call(
        kernel,
        out_shape=jax.ShapeDtypeStruct((B, class_num), jnp.float32),
        grid_spec=pltpu.PrefetchScalarGridSpec(
            num_scalar_prefetch=0,
            grid=(1,),
            in_specs=[_full_spec(a) for a in inputs],
            out_specs=pl.BlockSpec((B, class_num), lambda i: (0, 0)),
        ),
        compiler_params=pltpu.CompilerParams(
            dimension_semantics=("arbitrary",),
        ),
    )(*inputs)


# ----------------------------------------------------------------------------
# Deterministic parameter construction (f32 masters; bf16 casts happen in-kernel)
# ----------------------------------------------------------------------------
def init_params(key, *, vocab, embedding_len, hidden, num_layers, class_num):
    keys = jax.random.split(key, 1 + 4 * num_layers + 6)
    k_it = iter(keys)

    def rnd(shape, scale=0.1):
        return scale * jax.random.normal(next(k_it), shape, dtype=jnp.float32)

    params = {"embedding": rnd((vocab, embedding_len), 1.0)}

    layers = []
    for layer_idx in range(num_layers):
        d_in = embedding_len if layer_idx == 0 else 2 * hidden
        # [W_ih fwd | W_ih bwd] as (d_in, 8H) == concat of PyTorch
        # weight_ih_l{k}.T and weight_ih_l{k}_reverse.T (gate order i,f,g,o);
        # bias is the combined b_ih + b_hh for both directions.
        wih = rnd((d_in, 8 * hidden))
        whh_f = rnd((hidden, 4 * hidden))          # weight_hh_l{k}.T
        whh_b = rnd((hidden, 4 * hidden))          # weight_hh_l{k}_reverse.T
        whh = jnp.zeros((2 * hidden, 8 * hidden), jnp.float32)
        whh = whh.at[:hidden, :4 * hidden].set(whh_f)
        whh = whh.at[hidden:, 4 * hidden:].set(whh_b)   # block-diagonal
        layers.append({"wih": wih, "whh": whh, "b": rnd((1, 1, 8 * hidden))})
    params["lstm_layers"] = layers

    # SelfAttention: Linear(2H, 64) -> ReLU -> Linear(64, 1)
    params["att_w1"] = rnd((2 * hidden, 64))
    params["att_b1"] = rnd((1, 1, 64))
    params["att_w2"] = rnd((1, 1, 64))     # second Linear weight (out=1, in=64)
    params["att_b2"] = rnd((1, 1, 1))      # second Linear bias
    # fc: Linear(2H, class_num)
    params["fc_w"] = rnd((2 * hidden, class_num))
    params["fc_b"] = rnd((1, class_num))
    return params


# ----------------------------------------------------------------------------
if __name__ == "__main__":
    B, T = 2, 8
    VOCAB = 50
    EMBEDDING_LEN = 32
    HIDDEN = 32
    NUM_LAYERS = 2
    CLASS_NUM = 4

    root = jax.random.PRNGKey(0)
    k_params, k_tok = jax.random.split(root)
    params = init_params(
        k_params,
        vocab=VOCAB, embedding_len=EMBEDDING_LEN,
        hidden=HIDDEN, num_layers=NUM_LAYERS, class_num=CLASS_NUM,
    )
    tokens = jax.random.randint(k_tok, (B, T), 0, VOCAB, dtype=jnp.int32)

    logits = lstm_att_forward(params, tokens, hidden=HIDDEN, class_num=CLASS_NUM)
    logits = jax.block_until_ready(logits)

    assert logits.shape == (B, CLASS_NUM)
    assert bool(jnp.all(jnp.isfinite(logits)))
    print("KERNEL_OK")
</pallas_src>

<mosaic_0001>
module attributes {stable_mosaic.version = 11 : i64} {
  func.func @lstm_att_kernel(%arg0: i32, %arg1: memref<8x2x32xf32, #tpu.memory_space<vmem>>, %arg2: memref<32x256xf32, #tpu.memory_space<vmem>>, %arg3: memref<64x256xf32, #tpu.memory_space<vmem>>, %arg4: memref<1x1x256xf32, #tpu.memory_space<vmem>>, %arg5: memref<64x256xf32, #tpu.memory_space<vmem>>, %arg6: memref<64x256xf32, #tpu.memory_space<vmem>>, %arg7: memref<1x1x256xf32, #tpu.memory_space<vmem>>, %arg8: memref<64x64xf32, #tpu.memory_space<vmem>>, %arg9: memref<1x1x64xf32, #tpu.memory_space<vmem>>, %arg10: memref<1x1x64xf32, #tpu.memory_space<vmem>>, %arg11: memref<1x1x1xf32, #tpu.memory_space<vmem>>, %arg12: memref<64x4xf32, #tpu.memory_space<vmem>>, %arg13: memref<1x4xf32, #tpu.memory_space<vmem>>, %arg14: memref<2x4xf32, #tpu.memory_space<vmem>>) attributes {dimension_semantics = [#tpu.dimension_semantics<arbitrary>], iteration_bounds = array<i64: 1>, scalar_prefetch = 0 : i64, scratch_operands = 0 : i64, tpu.core_type = #tpu.core_type<tc>, window_params = [{pipeline_mode = #tpu.pipeline_mode<synchronous>, transform_indices = @transform_0, window_bounds = array<i64: 8, 2, 32>}, {pipeline_mode = #tpu.pipeline_mode<synchronous>, transform_indices = @transform_1, window_bounds = array<i64: 32, 256>}, {pipeline_mode = #tpu.pipeline_mode<synchronous>, transform_indices = @transform_2, window_bounds = array<i64: 64, 256>}, {pipeline_mode = #tpu.pipeline_mode<synchronous>, transform_indices = @transform_3, window_bounds = array<i64: 1, 1, 256>}, {pipeline_mode = #tpu.pipeline_mode<synchronous>, transform_indices = @transform_4, window_bounds = array<i64: 64, 256>}, {pipeline_mode = #tpu.pipeline_mode<synchronous>, transform_indices = @transform_5, window_bounds = array<i64: 64, 256>}, {pipeline_mode = #tpu.pipeline_mode<synchronous>, transform_indices = @transform_6, window_bounds = array<i64: 1, 1, 256>}, {pipeline_mode = #tpu.pipeline_mode<synchronous>, transform_indices = @transform_7, window_bounds = array<i64: 64, 64>}, {pipeline_mode = #tpu.pipeline_mode<synchronous>, transform_indices = @transform_8, window_bounds = array<i64: 1, 1, 64>}, {pipeline_mode = #tpu.pipeline_mode<synchronous>, transform_indices = @transform_9, window_bounds = array<i64: 1, 1, 64>}, {pipeline_mode = #tpu.pipeline_mode<synchronous>, transform_indices = @transform_10, window_bounds = array<i64: 1, 1, 1>}, {pipeline_mode = #tpu.pipeline_mode<synchronous>, transform_indices = @transform_11, window_bounds = array<i64: 64, 4>}, {pipeline_mode = #tpu.pipeline_mode<synchronous>, transform_indices = @transform_12, window_bounds = array<i64: 1, 4>}, {pipeline_mode = #tpu.pipeline_mode<synchronous>, transform_indices = @transform_13, window_bounds = array<i64: 2, 4>}]} {
    %c0 = arith.constant 0 : index
    %c0_0 = arith.constant 0 : index
    %c0_1 = arith.constant 0 : index
    %0 = vector.load %arg1[%c0, %c0_0, %c0_1] : memref<8x2x32xf32, #tpu.memory_space<vmem>>, vector<8x2x32xf32>
    %1 = tpu.iota {dimensions = array<i32: 1>} : vector<2x128xi32>
    %c64_i32 = arith.constant 64 : i32
    %2 = vector.broadcast %c64_i32 : i32 to vector<2x128xi32>
    %3 = arith.cmpi sge, %1, %2 : vector<2x128xi32>
    %c96_i32 = arith.constant 96 : i32
    %4 = vector.broadcast %c96_i32 : i32 to vector<2x128xi32>
    %5 = arith.cmpi slt, %1, %4 : vector<2x128xi32>
    %6 = arith.andi %3, %5 : vector<2x128xi1>
    %c0_2 = arith.constant 0 : index
    %c0_3 = arith.constant 0 : index
    %7 = vector.load %arg2[%c0_2, %c0_3] : memref<32x256xf32, #tpu.memory_space<vmem>>, vector<32x256xf32>
    %c0_4 = arith.constant 0 : index
    %c0_5 = arith.constant 0 : index
    %8 = vector.load %arg3[%c0_4, %c0_5] : memref<64x256xf32, #tpu.memory_space<vmem>>, vector<64x256xf32>
    %c0_6 = arith.constant 0 : index
    %c0_7 = arith.constant 0 : index
    %c0_8 = arith.constant 0 : index
    %9 = vector.load %arg4[%c0_6, %c0_7, %c0_8] : memref<1x1x256xf32, #tpu.memory_space<vmem>>, vector<1x1x256xf32>
    %10 = arith.truncf %0 : vector<8x2x32xf32> to vector<8x2x32xbf16>
    %11 = arith.truncf %7 : vector<32x256xf32> to vector<32x256xbf16>
    "tpu.trace_start"() <{level = 10 : i32, message = "tbd,dg->tbg"}> : () -> ()
    %cst = arith.constant dense<0.000000e+00> : vector<8x2x256xf32>
    %12 = tpu.matmul %10, %11, %cst {dimension_numbers = #tpu.dot_dimension_numbers<[2], [0], [0, 1], [1], [0, 0, 0, 1, 1, 1], [], []>} : vector<8x2x32xbf16>, vector<32x256xbf16>, vector<8x2x256xf32> -> vector<8x2x256xf32>
    "tpu.trace_stop"() : () -> ()
    %13 = vector.broadcast %9 : vector<1x1x256xf32> to vector<8x2x256xf32>
    %14 = arith.addf %12, %13 : vector<8x2x256xf32>
    %15 = arith.truncf %8 : vector<64x256xf32> to vector<64x256xbf16>
    %cst_9 = arith.constant 0.000000e+00 : f32
    %16 = vector.broadcast %cst_9 : f32 to vector<2x32xf32>
    %cst_10 = arith.constant 0.000000e+00 : f32
    %17 = vector.broadcast %cst_10 : f32 to vector<2x32xf32>
    %cst_11 = arith.constant 0.000000e+00 : f32
    %18 = vector.broadcast %cst_11 : f32 to vector<2x32xf32>
    %cst_12 = arith.constant 0.000000e+00 : f32
    %19 = vector.broadcast %cst_12 : f32 to vector<2x32xf32>
    %20 = tpu.concatenate %16, %18 in 1 : vector<2x32xf32>, vector<2x32xf32> -> vector<2x64xf32>
    %21 = arith.truncf %20 : vector<2x64xf32> to vector<2x64xbf16>
    %cst_13 = arith.constant dense<0.000000e+00> : vector<2x256xf32>
    %22 = tpu.matmul %21, %15, %cst_13 {dimension_numbers = #tpu.dot_dimension_numbers<[1], [0], [0], [1], [0, 0, 1, 1], [], []>} : vector<2x64xbf16>, vector<64x256xbf16>, vector<2x256xf32> -> vector<2x256xf32>
    %23 = vector.extract_strided_slice %14 {offsets = [0, 0, 0], sizes = [1, 2, 128], strides = [1, 1, 1]} : vector<8x2x256xf32> to vector<1x2x128xf32>
    %24 = vector.shape_cast %23 : vector<1x2x128xf32> to vector<2x128xf32>
    %25 = vector.extract_strided_slice %22 {offsets = [0, 0], sizes = [2, 128], strides = [1, 1]} : vector<2x256xf32> to vector<2x128xf32>
    %26 = arith.addf %24, %25 : vector<2x128xf32>
    %27 = math.tanh %26 : vector<2x128xf32>
    %28 = arith.negf %26 : vector<2x128xf32>
    %29 = math.exp %28 : vector<2x128xf32>
    %cst_14 = arith.constant 1.000000e+00 : f32
    %30 = vector.broadcast %cst_14 : f32 to vector<2x128xf32>
    %31 = arith.addf %30, %29 : vector<2x128xf32>
    %32 = arith.divf %30, %31 : vector<2x128xf32>
    %33 = arith.select %6, %27, %32 : vector<2x128xi1>, vector<2x128xf32>
    %34 = vector.extract_strided_slice %33 {offsets = [0, 0], sizes = [2, 32], strides = [1, 1]} : vector<2x128xf32> to vector<2x32xf32>
    %35 = vector.extract_strided_slice %33 {offsets = [0, 32], sizes = [2, 32], strides = [1, 1]} : vector<2x128xf32> to vector<2x32xf32>
    %36 = vector.extract_strided_slice %33 {offsets = [0, 64], sizes = [2, 32], strides = [1, 1]} : vector<2x128xf32> to vector<2x32xf32>
    %37 = vector.extract_strided_slice %33 {offsets = [0, 96], sizes = [2, 32], strides = [1, 1]} : vector<2x128xf32> to vector<2x32xf32>
    %38 = arith.mulf %35, %17 : vector<2x32xf32>
    %39 = arith.mulf %34, %36 : vector<2x32xf32>
    %40 = arith.addf %38, %39 : vector<2x32xf32>
    %41 = math.tanh %40 : vector<2x32xf32>
    %42 = arith.mulf %37, %41 : vector<2x32xf32>
    %43 = vector.extract_strided_slice %14 {offsets = [7, 0, 128], sizes = [1, 2, 128], strides = [1, 1, 1]} : vector<8x2x256xf32> to vector<1x2x128xf32>
    %44 = vector.shape_cast %43 : vector<1x2x128xf32> to vector<2x128xf32>
    %45 = vector.extract_strided_slice %22 {offsets = [0, 128], sizes = [2, 128], strides = [1, 1]} : vector<2x256xf32> to vector<2x128xf32>
    %46 = arith.addf %44, %45 : vector<2x128xf32>
    %47 = math.tanh %46 : vector<2x128xf32>
    %48 = arith.negf %46 : vector<2x128xf32>
    %49 = math.exp %48 : vector<2x128xf32>
    %cst_15 = arith.constant 1.000000e+00 : f32
    %50 = vector.broadcast %cst_15 : f32 to vector<2x128xf32>
    %51 = arith.addf %50, %49 : vector<2x128xf32>
    %52 = arith.divf %50, %51 : vector<2x128xf32>
    %53 = arith.select %6, %47, %52 : vector<2x128xi1>, vector<2x128xf32>
    %54 = vector.extract_strided_slice %53 {offsets = [0, 0], sizes = [2, 32], strides = [1, 1]} : vector<2x128xf32> to vector<2x32xf32>
    %55 = vector.extract_strided_slice %53 {offsets = [0, 32], sizes = [2, 32], strides = [1, 1]} : vector<2x128xf32> to vector<2x32xf32>
    %56 = vector.extract_strided_slice %53 {offsets = [0, 64], sizes = [2, 32], strides = [1, 1]} : vector<2x128xf32> to vector<2x32xf32>
    %57 = vector.extract_strided_slice %53 {offsets = [0, 96], sizes = [2, 32], strides = [1, 1]} : vector<2x128xf32> to vector<2x32xf32>
    %58 = arith.mulf %55, %19 : vector<2x32xf32>
    %59 = arith.mulf %54, %56 : vector<2x32xf32>
    %60 = arith.addf %58, %59 : vector<2x32xf32>
    %61 = math.tanh %60 : vector<2x32xf32>
    %62 = arith.mulf %57, %61 : vector<2x32xf32>
    %63 = tpu.concatenate %42, %62 in 1 : vector<2x32xf32>, vector<2x32xf32> -> vector<2x64xf32>
    %64 = arith.truncf %63 : vector<2x64xf32> to vector<2x64xbf16>
    %cst_16 = arith.constant dense<0.000000e+00> : vector<2x256xf32>
    %65 = tpu.matmul %64, %15, %cst_16 {dimension_numbers = #tpu.dot_dimension_numbers<[1], [0], [0], [1], [0, 0, 1, 1], [], []>} : vector<2x64xbf16>, vector<64x256xbf16>, vector<2x256xf32> -> vector<2x256xf32>
    %66 = vector.extract_strided_slice %14 {offsets = [1, 0, 0], sizes = [1, 2, 128], strides = [1, 1, 1]} : vector<8x2x256xf32> to vector<1x2x128xf32>
    %67 = vector.shape_cast %66 : vector<1x2x128xf32> to vector<2x128xf32>
    %68 = vector.extract_strided_slice %65 {offsets = [0, 0], sizes = [2, 128], strides = [1, 1]} : vector<2x256xf32> to vector<2x128xf32>
    %69 = arith.addf %67, %68 : vector<2x128xf32>
    %70 = math.tanh %69 : vector<2x128xf32>
    %71 = arith.negf %69 : vector<2x128xf32>
    %72 = math.exp %71 : vector<2x128xf32>
    %cst_17 = arith.constant 1.000000e+00 : f32
    %73 = vector.broadcast %cst_17 : f32 to vector<2x128xf32>
    %74 = arith.addf %73, %72 : vector<2x128xf32>
    %75 = arith.divf %73, %74 : vector<2x128xf32>
    %76 = arith.select %6, %70, %75 : vector<2x128xi1>, vector<2x128xf32>
    %77 = vector.extract_strided_slice %76 {offsets = [0, 0], sizes = [2, 32], strides = [1, 1]} : vector<2x128xf32> to vector<2x32xf32>
    %78 = vector.extract_strided_slice %76 {offsets = [0, 32], sizes = [2, 32], strides = [1, 1]} : vector<2x128xf32> to vector<2x32xf32>
    %79 = vector.extract_strided_slice %76 {offsets = [0, 64], sizes = [2, 32], strides = [1, 1]} : vector<2x128xf32> to vector<2x32xf32>
    %80 = vector.extract_strided_slice %76 {offsets = [0, 96], sizes = [2, 32], strides = [1, 1]} : vector<2x128xf32> to vector<2x32xf32>
    %81 = arith.mulf %78, %40 : vector<2x32xf32>
    %82 = arith.mulf %77, %79 : vector<2x32xf32>
    %83 = arith.addf %81, %82 : vector<2x32xf32>
    %84 = math.tanh %83 : vector<2x32xf32>
    %85 = arith.mulf %80, %84 : vector<2x32xf32>
    %86 = vector.extract_strided_slice %14 {offsets = [6, 0, 128], sizes = [1, 2, 128], strides = [1, 1, 1]} : vector<8x2x256xf32> to vector<1x2x128xf32>
    %87 = vector.shape_cast %86 : vector<1x2x128xf32> to vector<2x128xf32>
    %88 = vector.extract_strided_slice %65 {offsets = [0, 128], sizes = [2, 128], strides = [1, 1]} : vector<2x256xf32> to vector<2x128xf32>
    %89 = arith.addf %87, %88 : vector<2x128xf32>
    %90 = math.tanh %89 : vector<2x128xf32>
    %91 = arith.negf %89 : vector<2x128xf32>
    %92 = math.exp %91 : vector<2x128xf32>
    %cst_18 = arith.constant 1.000000e+00 : f32
    %93 = vector.broadcast %cst_18 : f32 to vector<2x128xf32>
    %94 = arith.addf %93, %92 : vector<2x128xf32>
    %95 = arith.divf %93, %94 : vector<2x128xf32>
    %96 = arith.select %6, %90, %95 : vector<2x128xi1>, vector<2x128xf32>
    %97 = vector.extract_strided_slice %96 {offsets = [0, 0], sizes = [2, 32], strides = [1, 1]} : vector<2x128xf32> to vector<2x32xf32>
    %98 = vector.extract_strided_slice %96 {offsets = [0, 32], sizes = [2, 32], strides = [1, 1]} : vector<2x128xf32> to vector<2x32xf32>
    %99 = vector.extract_strided_slice %96 {offsets = [0, 64], sizes = [2, 32], strides = [1, 1]} : vector<2x128xf32> to vector<2x32xf32>
    %100 = vector.extract_strided_slice %96 {offsets = [0, 96], sizes = [2, 32], strides = [1, 1]} : vector<2x128xf32> to vector<2x32xf32>
    %101 = arith.mulf %98, %60 : vector<2x32xf32>
    %102 = arith.mulf %97, %99 : vector<2x32xf32>
    %103 = arith.addf %101, %102 : vector<2x32xf32>
    %104 = math.tanh %103 : vector<2x32xf32>
    %105 = arith.mulf %100, %104 : vector<2x32xf32>
    %106 = tpu.concatenate %85, %105 in 1 : vector<2x32xf32>, vector<2x32xf32> -> vector<2x64xf32>
    %107 = arith.truncf %106 : vector<2x64xf32> to vector<2x64xbf16>
    %cst_19 = arith.constant dense<0.000000e+00> : vector<2x256xf32>
    %108 = tpu.matmul %107, %15, %cst_19 {dimension_numbers = #tpu.dot_dimension_numbers<[1], [0], [0], [1], [0, 0, 1, 1], [], []>} : vector<2x64xbf16>, vector<64x256xbf16>, vector<2x256xf32> -> vector<2x256xf32>
    %109 = vector.extract_strided_slice %14 {offsets = [2, 0, 0], sizes = [1, 2, 128], strides = [1, 1, 1]} : vector<8x2x256xf32> to vector<1x2x128xf32>
    %110 = vector.shape_cast %109 : vector<1x2x128xf32> to vector<2x128xf32>
    %111 = vector.extract_strided_slice %108 {offsets = [0, 0], sizes = [2, 128], strides = [1, 1]} : vector<2x256xf32> to vector<2x128xf32>
    %112 = arith.addf %110, %111 : vector<2x128xf32>
    %113 = math.tanh %112 : vector<2x128xf32>
    %114 = arith.negf %112 : vector<2x128xf32>
    %115 = math.exp %114 : vector<2x128xf32>
    %cst_20 = arith.constant 1.000000e+00 : f32
    %116 = vector.broadcast %cst_20 : f32 to vector<2x128xf32>
    %117 = arith.addf %116, %115 : vector<2x128xf32>
    %118 = arith.divf %116, %117 : vector<2x128xf32>
    %119 = arith.select %6, %113, %118 : vector<2x128xi1>, vector<2x128xf32>
    %120 = vector.extract_strided_slice %119 {offsets = [0, 0], sizes = [2, 32], strides = [1, 1]} : vector<2x128xf32> to vector<2x32xf32>
    %121 = vector.extract_strided_slice %119 {offsets = [0, 32], sizes = [2, 32], strides = [1, 1]} : vector<2x128xf32> to vector<2x32xf32>
    %122 = vector.extract_strided_slice %119 {offsets = [0, 64], sizes = [2, 32], strides = [1, 1]} : vector<2x128xf32> to vector<2x32xf32>
    %123 = vector.extract_strided_slice %119 {offsets = [0, 96], sizes = [2, 32], strides = [1, 1]} : vector<2x128xf32> to vector<2x32xf32>
    %124 = arith.mulf %121, %83 : vector<2x32xf32>
    %125 = arith.mulf %120, %122 : vector<2x32xf32>
    %126 = arith.addf %124, %125 : vector<2x32xf32>
    %127 = math.tanh %126 : vector<2x32xf32>
    %128 = arith.mulf %123, %127 : vector<2x32xf32>
    %129 = vector.extract_strided_slice %14 {offsets = [5, 0, 128], sizes = [1, 2, 128], strides = [1, 1, 1]} : vector<8x2x256xf32> to vector<1x2x128xf32>
    %130 = vector.shape_cast %129 : vector<1x2x128xf32> to vector<2x128xf32>
    %131 = vector.extract_strided_slice %108 {offsets = [0, 128], sizes = [2, 128], strides = [1, 1]} : vector<2x256xf32> to vector<2x128xf32>
    %132 = arith.addf %130, %131 : vector<2x128xf32>
    %133 = math.tanh %132 : vector<2x128xf32>
    %134 = arith.negf %132 : vector<2x128xf32>
    %135 = math.exp %134 : vector<2x128xf32>
    %cst_21 = arith.constant 1.000000e+00 : f32
    %136 = vector.broadcast %cst_21 : f32 to vector<2x128xf32>
    %137 = arith.addf %136, %135 : vector<2x128xf32>
    %138 = arith.divf %136, %137 : vector<2x128xf32>
    %139 = arith.select %6, %133, %138 : vector<2x128xi1>, vector<2x128xf32>
    %140 = vector.extract_strided_slice %139 {offsets = [0, 0], sizes = [2, 32], strides = [1, 1]} : vector<2x128xf32> to vector<2x32xf32>
    %141 = vector.extract_strided_slice %139 {offsets = [0, 32], sizes = [2, 32], strides = [1, 1]} : vector<2x128xf32> to vector<2x32xf32>
    %142 = vector.extract_strided_slice %139 {offsets = [0, 64], sizes = [2, 32], strides = [1, 1]} : vector<2x128xf32> to vector<2x32xf32>
    %143 = vector.extract_strided_slice %139 {offsets = [0, 96], sizes = [2, 32], strides = [1, 1]} : vector<2x128xf32> to vector<2x32xf32>
    %144 = arith.mulf %141, %103 : vector<2x32xf32>
    %145 = arith.mulf %140, %142 : vector<2x32xf32>
    %146 = arith.addf %144, %145 : vector<2x32xf32>
    %147 = math.tanh %146 : vector<2x32xf32>
    %148 = arith.mulf %143, %147 : vector<2x32xf32>
    %149 = tpu.concatenate %128, %148 in 1 : vector<2x32xf32>, vector<2x32xf32> -> vector<2x64xf32>
    %150 = arith.truncf %149 : vector<2x64xf32> to vector<2x64xbf16>
    %cst_22 = arith.constant dense<0.000000e+00> : vector<2x256xf32>
    %151 = tpu.matmul %150, %15, %cst_22 {dimension_numbers = #tpu.dot_dimension_numbers<[1], [0], [0], [1], [0, 0, 1, 1], [], []>} : vector<2x64xbf16>, vector<64x256xbf16>, vector<2x256xf32> -> vector<2x256xf32>
    %152 = vector.extract_strided_slice %14 {offsets = [3, 0, 0], sizes = [1, 2, 128], strides = [1, 1, 1]} : vector<8x2x256xf32> to vector<1x2x128xf32>
    %153 = vector.shape_cast %152 : vector<1x2x128xf32> to vector<2x128xf32>
    %154 = vector.extract_strided_slice %151 {offsets = [0, 0], sizes = [2, 128], strides = [1, 1]} : vector<2x256xf32> to vector<2x128xf32>
    %155 = arith.addf %153, %154 : vector<2x128xf32>
    %156 = math.tanh %155 : vector<2x128xf32>
    %157 = arith.negf %155 : vector<2x128xf32>
    %158 = math.exp %157 : vector<2x128xf32>
    %cst_23 = arith.constant 1.000000e+00 : f32
    %159 = vector.broadcast %cst_23 : f32 to vector<2x128xf32>
    %160 = arith.addf %159, %158 : vector<2x128xf32>
    %161 = arith.divf %159, %160 : vector<2x128xf32>
    %162 = arith.select %6, %156, %161 : vector<2x128xi1>, vector<2x128xf32>
    %163 = vector.extract_strided_slice %162 {offsets = [0, 0], sizes = [2, 32], strides = [1, 1]} : vector<2x128xf32> to vector<2x32xf32>
    %164 = vector.extract_strided_slice %162 {offsets = [0, 32], sizes = [2, 32], strides = [1, 1]} : vector<2x128xf32> to vector<2x32xf32>
    %165 = vector.extract_strided_slice %162 {offsets = [0, 64], sizes = [2, 32], strides = [1, 1]} : vector<2x128xf32> to vector<2x32xf32>
    %166 = vector.extract_strided_slice %162 {offsets = [0, 96], sizes = [2, 32], strides = [1, 1]} : vector<2x128xf32> to vector<2x32xf32>
    %167 = arith.mulf %164, %126 : vector<2x32xf32>
    %168 = arith.mulf %163, %165 : vector<2x32xf32>
    %169 = arith.addf %167, %168 : vector<2x32xf32>
    %170 = math.tanh %169 : vector<2x32xf32>
    %171 = arith.mulf %166, %170 : vector<2x32xf32>
    %172 = vector.extract_strided_slice %14 {offsets = [4, 0, 128], sizes = [1, 2, 128], strides = [1, 1, 1]} : vector<8x2x256xf32> to vector<1x2x128xf32>
    %173 = vector.shape_cast %172 : vector<1x2x128xf32> to vector<2x128xf32>
    %174 = vector.extract_strided_slice %151 {offsets = [0, 128], sizes = [2, 128], strides = [1, 1]} : vector<2x256xf32> to vector<2x128xf32>
    %175 = arith.addf %173, %174 : vector<2x128xf32>
    %176 = math.tanh %175 : vector<2x128xf32>
    %177 = arith.negf %175 : vector<2x128xf32>
    %178 = math.exp %177 : vector<2x128xf32>
    %cst_24 = arith.constant 1.000000e+00 : f32
    %179 = vector.broadcast %cst_24 : f32 to vector<2x128xf32>
    %180 = arith.addf %179, %178 : vector<2x128xf32>
    %181 = arith.divf %179, %180 : vector<2x128xf32>
    %182 = arith.select %6, %176, %181 : vector<2x128xi1>, vector<2x128xf32>
    %183 = vector.extract_strided_slice %182 {offsets = [0, 0], sizes = [2, 32], strides = [1, 1]} : vector<2x128xf32> to vector<2x32xf32>
    %184 = vector.extract_strided_slice %182 {offsets = [0, 32], sizes = [2, 32], strides = [1, 1]} : vector<2x128xf32> to vector<2x32xf32>
    %185 = vector.extract_strided_slice %182 {offsets = [0, 64], sizes = [2, 32], strides = [1, 1]} : vector<2x128xf32> to vector<2x32xf32>
    %186 = vector.extract_strided_slice %182 {offsets = [0, 96], sizes = [2, 32], strides = [1, 1]} : vector<2x128xf32> to vector<2x32xf32>
    %187 = arith.mulf %184, %146 : vector<2x32xf32>
    %188 = arith.mulf %183, %185 : vector<2x32xf32>
    %189 = arith.addf %187, %188 : vector<2x32xf32>
    %190 = math.tanh %189 : vector<2x32xf32>
    %191 = arith.mulf %186, %190 : vector<2x32xf32>
    %192 = tpu.concatenate %171, %191 in 1 : vector<2x32xf32>, vector<2x32xf32> -> vector<2x64xf32>
    %193 = arith.truncf %192 : vector<2x64xf32> to vector<2x64xbf16>
    %cst_25 = arith.constant dense<0.000000e+00> : vector<2x256xf32>
    %194 = tpu.matmul %193, %15, %cst_25 {dimension_numbers = #tpu.dot_dimension_numbers<[1], [0], [0], [1], [0, 0, 1, 1], [], []>} : vector<2x64xbf16>, vector<64x256xbf16>, vector<2x256xf32> -> vector<2x256xf32>
    %195 = vector.extract_strided_slice %14 {offsets = [4, 0, 0], sizes = [1, 2, 128], strides = [1, 1, 1]} : vector<8x2x256xf32> to vector<1x2x128xf32>
    %196 = vector.shape_cast %195 : vector<1x2x128xf32> to vector<2x128xf32>
    %197 = vector.extract_strided_slice %194 {offsets = [0, 0], sizes = [2, 128], strides = [1, 1]} : vector<2x256xf32> to vector<2x128xf32>
    %198 = arith.addf %196, %197 : vector<2x128xf32>
    %199 = math.tanh %198 : vector<2x128xf32>
    %200 = arith.negf %198 : vector<2x128xf32>
    %201 = math.exp %200 : vector<2x128xf32>
    %cst_26 = arith.constant 1.000000e+00 : f32
    %202 = vector.broadcast %cst_26 : f32 to vector<2x128xf32>
    %203 = arith.addf %202, %201 : vector<2x128xf32>
    %204 = arith.divf %202, %203 : vector<2x128xf32>
    %205 = arith.select %6, %199, %204 : vector<2x128xi1>, vector<2x128xf32>
    %206 = vector.extract_strided_slice %205 {offsets = [0, 0], sizes = [2, 32], strides = [1, 1]} : vector<2x128xf32> to vector<2x32xf32>
    %207 = vector.extract_strided_slice %205 {offsets = [0, 32], sizes = [2, 32], strides = [1, 1]} : vector<2x128xf32> to vector<2x32xf32>
    %208 = vector.extract_strided_slice %205 {offsets = [0, 64], sizes = [2, 32], strides = [1, 1]} : vector<2x128xf32> to vector<2x32xf32>
    %209 = vector.extract_strided_slice %205 {offsets = [0, 96], sizes = [2, 32], strides = [1, 1]} : vector<2x128xf32> to vector<2x32xf32>
    %210 = arith.mulf %207, %169 : vector<2x32xf32>
    %211 = arith.mulf %206, %208 : vector<2x32xf32>
    %212 = arith.addf %210, %211 : vector<2x32xf32>
    %213 = math.tanh %212 : vector<2x32xf32>
    %214 = arith.mulf %209, %213 : vector<2x32xf32>
    %215 = vector.extract_strided_slice %14 {offsets = [3, 0, 128], sizes = [1, 2, 128], strides = [1, 1, 1]} : vector<8x2x256xf32> to vector<1x2x128xf32>
    %216 = vector.shape_cast %215 : vector<1x2x128xf32> to vector<2x128xf32>
    %217 = vector.extract_strided_slice %194 {offsets = [0, 128], sizes = [2, 128], strides = [1, 1]} : vector<2x256xf32> to vector<2x128xf32>
    %218 = arith.addf %216, %217 : vector<2x128xf32>
    %219 = math.tanh %218 : vector<2x128xf32>
    %220 = arith.negf %218 : vector<2x128xf32>
    %221 = math.exp %220 : vector<2x128xf32>
    %cst_27 = arith.constant 1.000000e+00 : f32
    %222 = vector.broadcast %cst_27 : f32 to vector<2x128xf32>
    %223 = arith.addf %222, %221 : vector<2x128xf32>
    %224 = arith.divf %222, %223 : vector<2x128xf32>
    %225 = arith.select %6, %219, %224 : vector<2x128xi1>, vector<2x128xf32>
    %226 = vector.extract_strided_slice %225 {offsets = [0, 0], sizes = [2, 32], strides = [1, 1]} : vector<2x128xf32> to vector<2x32xf32>
    %227 = vector.extract_strided_slice %225 {offsets = [0, 32], sizes = [2, 32], strides = [1, 1]} : vector<2x128xf32> to vector<2x32xf32>
    %228 = vector.extract_strided_slice %225 {offsets = [0, 64], sizes = [2, 32], strides = [1, 1]} : vector<2x128xf32> to vector<2x32xf32>
    %229 = vector.extract_strided_slice %225 {offsets = [0, 96], sizes = [2, 32], strides = [1, 1]} : vector<2x128xf32> to vector<2x32xf32>
    %230 = arith.mulf %227, %189 : vector<2x32xf32>
    %231 = arith.mulf %226, %228 : vector<2x32xf32>
    %232 = arith.addf %230, %231 : vector<2x32xf32>
    %233 = math.tanh %232 : vector<2x32xf32>
    %234 = arith.mulf %229, %233 : vector<2x32xf32>
    %235 = tpu.concatenate %214, %234 in 1 : vector<2x32xf32>, vector<2x32xf32> -> vector<2x64xf32>
    %236 = arith.truncf %235 : vector<2x64xf32> to vector<2x64xbf16>
    %cst_28 = arith.constant dense<0.000000e+00> : vector<2x256xf32>
    %237 = tpu.matmul %236, %15, %cst_28 {dimension_numbers = #tpu.dot_dimension_numbers<[1], [0], [0], [1], [0, 0, 1, 1], [], []>} : vector<2x64xbf16>, vector<64x256xbf16>, vector<2x256xf32> -> vector<2x256xf32>
    %238 = vector.extract_strided_slice %14 {offsets = [5, 0, 0], sizes = [1, 2, 128], strides = [1, 1, 1]} : vector<8x2x256xf32> to vector<1x2x128xf32>
    %239 = vector.shape_cast %238 : vector<1x2x128xf32> to vector<2x128xf32>
    %240 = vector.extract_strided_slice %237 {offsets = [0, 0], sizes = [2, 128], strides = [1, 1]} : vector<2x256xf32> to vector<2x128xf32>
    %241 = arith.addf %239, %240 : vector<2x128xf32>
    %242 = math.tanh %241 : vector<2x128xf32>
    %243 = arith.negf %241 : vector<2x128xf32>
    %244 = math.exp %243 : vector<2x128xf32>
    %cst_29 = arith.constant 1.000000e+00 : f32
    %245 = vector.broadcast %cst_29 : f32 to vector<2x128xf32>
    %246 = arith.addf %245, %244 : vector<2x128xf32>
    %247 = arith.divf %245, %246 : vector<2x128xf32>
    %248 = arith.select %6, %242, %247 : vector<2x128xi1>, vector<2x128xf32>
    %249 = vector.extract_strided_slice %248 {offsets = [0, 0], sizes = [2, 32], strides = [1, 1]} : vector<2x128xf32> to vector<2x32xf32>
    %250 = vector.extract_strided_slice %248 {offsets = [0, 32], sizes = [2, 32], strides = [1, 1]} : vector<2x128xf32> to vector<2x32xf32>
    %251 = vector.extract_strided_slice %248 {offsets = [0, 64], sizes = [2, 32], strides = [1, 1]} : vector<2x128xf32> to vector<2x32xf32>
    %252 = vector.extract_strided_slice %248 {offsets = [0, 96], sizes = [2, 32], strides = [1, 1]} : vector<2x128xf32> to vector<2x32xf32>
    %253 = arith.mulf %250, %212 : vector<2x32xf32>
    %254 = arith.mulf %249, %251 : vector<2x32xf32>
    %255 = arith.addf %253, %254 : vector<2x32xf32>
    %256 = math.tanh %255 : vector<2x32xf32>
    %257 = arith.mulf %252, %256 : vector<2x32xf32>
    %258 = vector.extract_strided_slice %14 {offsets = [2, 0, 128], sizes = [1, 2, 128], strides = [1, 1, 1]} : vector<8x2x256xf32> to vector<1x2x128xf32>
    %259 = vector.shape_cast %258 : vector<1x2x128xf32> to vector<2x128xf32>
    %260 = vector.extract_strided_slice %237 {offsets = [0, 128], sizes = [2, 128], strides = [1, 1]} : vector<2x256xf32> to vector<2x128xf32>
    %261 = arith.addf %259, %260 : vector<2x128xf32>
    %262 = math.tanh %261 : vector<2x128xf32>
    %263 = arith.negf %261 : vector<2x128xf32>
    %264 = math.exp %263 : vector<2x128xf32>
    %cst_30 = arith.constant 1.000000e+00 : f32
    %265 = vector.broadcast %cst_30 : f32 to vector<2x128xf32>
    %266 = arith.addf %265, %264 : vector<2x128xf32>
    %267 = arith.divf %265, %266 : vector<2x128xf32>
    %268 = arith.select %6, %262, %267 : vector<2x128xi1>, vector<2x128xf32>
    %269 = vector.extract_strided_slice %268 {offsets = [0, 0], sizes = [2, 32], strides = [1, 1]} : vector<2x128xf32> to vector<2x32xf32>
    %270 = vector.extract_strided_slice %268 {offsets = [0, 32], sizes = [2, 32], strides = [1, 1]} : vector<2x128xf32> to vector<2x32xf32>
    %271 = vector.extract_strided_slice %268 {offsets = [0, 64], sizes = [2, 32], strides = [1, 1]} : vector<2x128xf32> to vector<2x32xf32>
    %272 = vector.extract_strided_slice %268 {offsets = [0, 96], sizes = [2, 32], strides = [1, 1]} : vector<2x128xf32> to vector<2x32xf32>
    %273 = arith.mulf %270, %232 : vector<2x32xf32>
    %274 = arith.mulf %269, %271 : vector<2x32xf32>
    %275 = arith.addf %273, %274 : vector<2x32xf32>
    %276 = math.tanh %275 : vector<2x32xf32>
    %277 = arith.mulf %272, %276 : vector<2x32xf32>
    %278 = tpu.concatenate %257, %277 in 1 : vector<2x32xf32>, vector<2x32xf32> -> vector<2x64xf32>
    %279 = arith.truncf %278 : vector<2x64xf32> to vector<2x64xbf16>
    %cst_31 = arith.constant dense<0.000000e+00> : vector<2x256xf32>
    %280 = tpu.matmul %279, %15, %cst_31 {dimension_numbers = #tpu.dot_dimension_numbers<[1], [0], [0], [1], [0, 0, 1, 1], [], []>} : vector<2x64xbf16>, vector<64x256xbf16>, vector<2x256xf32> -> vector<2x256xf32>
    %281 = vector.extract_strided_slice %14 {offsets = [6, 0, 0], sizes = [1, 2, 128], strides = [1, 1, 1]} : vector<8x2x256xf32> to vector<1x2x128xf32>
    %282 = vector.shape_cast %281 : vector<1x2x128xf32> to vector<2x128xf32>
    %283 = vector.extract_strided_slice %280 {offsets = [0, 0], sizes = [2, 128], strides = [1, 1]} : vector<2x256xf32> to vector<2x128xf32>
    %284 = arith.addf %282, %283 : vector<2x128xf32>
    %285 = math.tanh %284 : vector<2x128xf32>
    %286 = arith.negf %284 : vector<2x128xf32>
    %287 = math.exp %286 : vector<2x128xf32>
    %cst_32 = arith.constant 1.000000e+00 : f32
    %288 = vector.broadcast %cst_32 : f32 to vector<2x128xf32>
    %289 = arith.addf %288, %287 : vector<2x128xf32>
    %290 = arith.divf %288, %289 : vector<2x128xf32>
    %291 = arith.select %6, %285, %290 : vector<2x128xi1>, vector<2x128xf32>
    %292 = vector.extract_strided_slice %291 {offsets = [0, 0], sizes = [2, 32], strides = [1, 1]} : vector<2x128xf32> to vector<2x32xf32>
    %293 = vector.extract_strided_slice %291 {offsets = [0, 32], sizes = [2, 32], strides = [1, 1]} : vector<2x128xf32> to vector<2x32xf32>
    %294 = vector.extract_strided_slice %291 {offsets = [0, 64], sizes = [2, 32], strides = [1, 1]} : vector<2x128xf32> to vector<2x32xf32>
    %295 = vector.extract_strided_slice %291 {offsets = [0, 96], sizes = [2, 32], strides = [1, 1]} : vector<2x128xf32> to vector<2x32xf32>
    %296 = arith.mulf %293, %255 : vector<2x32xf32>
    %297 = arith.mulf %292, %294 : vector<2x32xf32>
    %298 = arith.addf %296, %297 : vector<2x32xf32>
    %299 = math.tanh %298 : vector<2x32xf32>
    %300 = arith.mulf %295, %299 : vector<2x32xf32>
    %301 = vector.extract_strided_slice %14 {offsets = [1, 0, 128], sizes = [1, 2, 128], strides = [1, 1, 1]} : vector<8x2x256xf32> to vector<1x2x128xf32>
    %302 = vector.shape_cast %301 : vector<1x2x128xf32> to vector<2x128xf32>
    %303 = vector.extract_strided_slice %280 {offsets = [0, 128], sizes = [2, 128], strides = [1, 1]} : vector<2x256xf32> to vector<2x128xf32>
    %304 = arith.addf %302, %303 : vector<2x128xf32>
    %305 = math.tanh %304 : vector<2x128xf32>
    %306 = arith.negf %304 : vector<2x128xf32>
    %307 = math.exp %306 : vector<2x128xf32>
    %cst_33 = arith.constant 1.000000e+00 : f32
    %308 = vector.broadcast %cst_33 : f32 to vector<2x128xf32>
    %309 = arith.addf %308, %307 : vector<2x128xf32>
    %310 = arith.divf %308, %309 : vector<2x128xf32>
    %311 = arith.select %6, %305, %310 : vector<2x128xi1>, vector<2x128xf32>
    %312 = vector.extract_strided_slice %311 {offsets = [0, 0], sizes = [2, 32], strides = [1, 1]} : vector<2x128xf32> to vector<2x32xf32>
    %313 = vector.extract_strided_slice %311 {offsets = [0, 32], sizes = [2, 32], strides = [1, 1]} : vector<2x128xf32> to vector<2x32xf32>
    %314 = vector.extract_strided_slice %311 {offsets = [0, 64], sizes = [2, 32], strides = [1, 1]} : vector<2x128xf32> to vector<2x32xf32>
    %315 = vector.extract_strided_slice %311 {offsets = [0, 96], sizes = [2, 32], strides = [1, 1]} : vector<2x128xf32> to vector<2x32xf32>
    %316 = arith.mulf %313, %275 : vector<2x32xf32>
    %317 = arith.mulf %312, %314 : vector<2x32xf32>
    %318 = arith.addf %316, %317 : vector<2x32xf32>
    %319 = math.tanh %318 : vector<2x32xf32>
    %320 = arith.mulf %315, %319 : vector<2x32xf32>
    %321 = tpu.concatenate %300, %320 in 1 : vector<2x32xf32>, vector<2x32xf32> -> vector<2x64xf32>
    %322 = arith.truncf %321 : vector<2x64xf32> to vector<2x64xbf16>
    %cst_34 = arith.constant dense<0.000000e+00> : vector<2x256xf32>
    %323 = tpu.matmul %322, %15, %cst_34 {dimension_numbers = #tpu.dot_dimension_numbers<[1], [0], [0], [1], [0, 0, 1, 1], [], []>} : vector<2x64xbf16>, vector<64x256xbf16>, vector<2x256xf32> -> vector<2x256xf32>
    %324 = vector.extract_strided_slice %14 {offsets = [7, 0, 0], sizes = [1, 2, 128], strides = [1, 1, 1]} : vector<8x2x256xf32> to vector<1x2x128xf32>
    %325 = vector.shape_cast %324 : vector<1x2x128xf32> to vector<2x128xf32>
    %326 = vector.extract_strided_slice %323 {offsets = [0, 0], sizes = [2, 128], strides = [1, 1]} : vector<2x256xf32> to vector<2x128xf32>
    %327 = arith.addf %325, %326 : vector<2x128xf32>
    %328 = math.tanh %327 : vector<2x128xf32>
    %329 = arith.negf %327 : vector<2x128xf32>
    %330 = math.exp %329 : vector<2x128xf32>
    %cst_35 = arith.constant 1.000000e+00 : f32
    %331 = vector.broadcast %cst_35 : f32 to vector<2x128xf32>
    %332 = arith.addf %331, %330 : vector<2x128xf32>
    %333 = arith.divf %331, %332 : vector<2x128xf32>
    %334 = arith.select %6, %328, %333 : vector<2x128xi1>, vector<2x128xf32>
    %335 = vector.extract_strided_slice %334 {offsets = [0, 0], sizes = [2, 32], strides = [1, 1]} : vector<2x128xf32> to vector<2x32xf32>
    %336 = vector.extract_strided_slice %334 {offsets = [0, 32], sizes = [2, 32], strides = [1, 1]} : vector<2x128xf32> to vector<2x32xf32>
    %337 = vector.extract_strided_slice %334 {offsets = [0, 64], sizes = [2, 32], strides = [1, 1]} : vector<2x128xf32> to vector<2x32xf32>
    %338 = vector.extract_strided_slice %334 {offsets = [0, 96], sizes = [2, 32], strides = [1, 1]} : vector<2x128xf32> to vector<2x32xf32>
    %339 = arith.mulf %336, %298 : vector<2x32xf32>
    %340 = arith.mulf %335, %337 : vector<2x32xf32>
    %341 = arith.addf %339, %340 : vector<2x32xf32>
    %342 = math.tanh %341 : vector<2x32xf32>
    %343 = arith.mulf %338, %342 : vector<2x32xf32>
    %344 = vector.extract_strided_slice %14 {offsets = [0, 0, 128], sizes = [1, 2, 128], strides = [1, 1, 1]} : vector<8x2x256xf32> to vector<1x2x128xf32>
    %345 = vector.shape_cast %344 : vector<1x2x128xf32> to vector<2x128xf32>
    %346 = vector.extract_strided_slice %323 {offsets = [0, 128], sizes = [2, 128], strides = [1, 1]} : vector<2x256xf32> to vector<2x128xf32>
    %347 = arith.addf %345, %346 : vector<2x128xf32>
    %348 = math.tanh %347 : vector<2x128xf32>
    %349 = arith.negf %347 : vector<2x128xf32>
    %350 = math.exp %349 : vector<2x128xf32>
    %cst_36 = arith.constant 1.000000e+00 : f32
    %351 = vector.broadcast %cst_36 : f32 to vector<2x128xf32>
    %352 = arith.addf %351, %350 : vector<2x128xf32>
    %353 = arith.divf %351, %352 : vector<2x128xf32>
    %354 = arith.select %6, %348, %353 : vector<2x128xi1>, vector<2x128xf32>
    %355 = vector.extract_strided_slice %354 {offsets = [0, 0], sizes = [2, 32], strides = [1, 1]} : vector<2x128xf32> to vector<2x32xf32>
    %356 = vector.extract_strided_slice %354 {offsets = [0, 32], sizes = [2, 32], strides = [1, 1]} : vector<2x128xf32> to vector<2x32xf32>
    %357 = vector.extract_strided_slice %354 {offsets = [0, 64], sizes = [2, 32], strides = [1, 1]} : vector<2x128xf32> to vector<2x32xf32>
    %358 = vector.extract_strided_slice %354 {offsets = [0, 96], sizes = [2, 32], strides = [1, 1]} : vector<2x128xf32> to vector<2x32xf32>
    %359 = arith.mulf %356, %318 : vector<2x32xf32>
    %360 = arith.mulf %355, %357 : vector<2x32xf32>
    %361 = arith.addf %359, %360 : vector<2x32xf32>
    %362 = math.tanh %361 : vector<2x32xf32>
    %363 = arith.mulf %358, %362 : vector<2x32xf32>
    %364 = vector.shape_cast %42 : vector<2x32xf32> to vector<1x2x32xf32>
    %365 = vector.shape_cast %85 : vector<2x32xf32> to vector<1x2x32xf32>
    %366 = vector.shape_cast %128 : vector<2x32xf32> to vector<1x2x32xf32>
    %367 = vector.shape_cast %171 : vector<2x32xf32> to vector<1x2x32xf32>
    %368 = vector.shape_cast %214 : vector<2x32xf32> to vector<1x2x32xf32>
    %369 = vector.shape_cast %257 : vector<2x32xf32> to vector<1x2x32xf32>
    %370 = vector.shape_cast %300 : vector<2x32xf32> to vector<1x2x32xf32>
    %371 = vector.shape_cast %343 : vector<2x32xf32> to vector<1x2x32xf32>
    %372 = tpu.concatenate %364, %365, %366, %367, %368, %369, %370, %371 in 0 : vector<1x2x32xf32>, vector<1x2x32xf32>, vector<1x2x32xf32>, vector<1x2x32xf32>, vector<1x2x32xf32>, vector<1x2x32xf32>, vector<1x2x32xf32>, vector<1x2x32xf32> -> vector<8x2x32xf32>
    %373 = vector.shape_cast %363 : vector<2x32xf32> to vector<1x2x32xf32>
    %374 = vector.shape_cast %320 : vector<2x32xf32> to vector<1x2x32xf32>
    %375 = vector.shape_cast %277 : vector<2x32xf32> to vector<1x2x32xf32>
    %376 = vector.shape_cast %234 : vector<2x32xf32> to vector<1x2x32xf32>
    %377 = vector.shape_cast %191 : vector<2x32xf32> to vector<1x2x32xf32>
    %378 = vector.shape_cast %148 : vector<2x32xf32> to vector<1x2x32xf32>
    %379 = vector.shape_cast %105 : vector<2x32xf32> to vector<1x2x32xf32>
    %380 = vector.shape_cast %62 : vector<2x32xf32> to vector<1x2x32xf32>
    %381 = tpu.concatenate %373, %374, %375, %376, %377, %378, %379, %380 in 0 : vector<1x2x32xf32>, vector<1x2x32xf32>, vector<1x2x32xf32>, vector<1x2x32xf32>, vector<1x2x32xf32>, vector<1x2x32xf32>, vector<1x2x32xf32>, vector<1x2x32xf32> -> vector<8x2x32xf32>
    %382 = tpu.concatenate %372, %381 in 2 : vector<8x2x32xf32>, vector<8x2x32xf32> -> vector<8x2x64xf32>
    %c0_37 = arith.constant 0 : index
    %c0_38 = arith.constant 0 : index
    %383 = vector.load %arg5[%c0_37, %c0_38] : memref<64x256xf32, #tpu.memory_space<vmem>>, vector<64x256xf32>
    %c0_39 = arith.constant 0 : index
    %c0_40 = arith.constant 0 : index
    %384 = vector.load %arg6[%c0_39, %c0_40] : memref<64x256xf32, #tpu.memory_space<vmem>>, vector<64x256xf32>
    %c0_41 = arith.constant 0 : index
    %c0_42 = arith.constant 0 : index
    %c0_43 = arith.constant 0 : index
    %385 = vector.load %arg7[%c0_41, %c0_42, %c0_43] : memref<1x1x256xf32, #tpu.memory_space<vmem>>, vector<1x1x256xf32>
    %386 = arith.truncf %382 : vector<8x2x64xf32> to vector<8x2x64xbf16>
    %387 = arith.truncf %383 : vector<64x256xf32> to vector<64x256xbf16>
    "tpu.trace_start"() <{level = 10 : i32, message = "tbd,dg->tbg"}> : () -> ()
    %cst_44 = arith.constant dense<0.000000e+00> : vector<8x2x256xf32>
    %388 = tpu.matmul %386, %387, %cst_44 {dimension_numbers = #tpu.dot_dimension_numbers<[2], [0], [0, 1], [1], [0, 0, 0, 1, 1, 1], [], []>} : vector<8x2x64xbf16>, vector<64x256xbf16>, vector<8x2x256xf32> -> vector<8x2x256xf32>
    "tpu.trace_stop"() : () -> ()
    %389 = vector.broadcast %385 : vector<1x1x256xf32> to vector<8x2x256xf32>
    %390 = arith.addf %388, %389 : vector<8x2x256xf32>
    %391 = arith.truncf %384 : vector<64x256xf32> to vector<64x256xbf16>
    %cst_45 = arith.constant 0.000000e+00 : f32
    %392 = vector.broadcast %cst_45 : f32 to vector<2x32xf32>
    %cst_46 = arith.constant 0.000000e+00 : f32
    %393 = vector.broadcast %cst_46 : f32 to vector<2x32xf32>
    %cst_47 = arith.constant 0.000000e+00 : f32
    %394 = vector.broadcast %cst_47 : f32 to vector<2x32xf32>
    %cst_48 = arith.constant 0.000000e+00 : f32
    %395 = vector.broadcast %cst_48 : f32 to vector<2x32xf32>
    %396 = tpu.concatenate %392, %394 in 1 : vector<2x32xf32>, vector<2x32xf32> -> vector<2x64xf32>
    %397 = arith.truncf %396 : vector<2x64xf32> to vector<2x64xbf16>
    %cst_49 = arith.constant dense<0.000000e+00> : vector<2x256xf32>
    %398 = tpu.matmul %397, %391, %cst_49 {dimension_numbers = #tpu.dot_dimension_numbers<[1], [0], [0], [1], [0, 0, 1, 1], [], []>} : vector<2x64xbf16>, vector<64x256xbf16>, vector<2x256xf32> -> vector<2x256xf32>
    %399 = vector.extract_strided_slice %390 {offsets = [0, 0, 0], sizes = [1, 2, 128], strides = [1, 1, 1]} : vector<8x2x256xf32> to vector<1x2x128xf32>
    %400 = vector.shape_cast %399 : vector<1x2x128xf32> to vector<2x128xf32>
    %401 = vector.extract_strided_slice %398 {offsets = [0, 0], sizes = [2, 128], strides = [1, 1]} : vector<2x256xf32> to vector<2x128xf32>
    %402 = arith.addf %400, %401 : vector<2x128xf32>
    %403 = math.tanh %402 : vector<2x128xf32>
    %404 = arith.negf %402 : vector<2x128xf32>
    %405 = math.exp %404 : vector<2x128xf32>
    %cst_50 = arith.constant 1.000000e+00 : f32
    %406 = vector.broadcast %cst_50 : f32 to vector<2x128xf32>
    %407 = arith.addf %406, %405 : vector<2x128xf32>
    %408 = arith.divf %406, %407 : vector<2x128xf32>
    %409 = arith.select %6, %403, %408 : vector<2x128xi1>, vector<2x128xf32>
    %410 = vector.extract_strided_slice %409 {offsets = [0, 0], sizes = [2, 32], strides = [1, 1]} : vector<2x128xf32> to vector<2x32xf32>
    %411 = vector.extract_strided_slice %409 {offsets = [0, 32], sizes = [2, 32], strides = [1, 1]} : vector<2x128xf32> to vector<2x32xf32>
    %412 = vector.extract_strided_slice %409 {offsets = [0, 64], sizes = [2, 32], strides = [1, 1]} : vector<2x128xf32> to vector<2x32xf32>
    %413 = vector.extract_strided_slice %409 {offsets = [0, 96], sizes = [2, 32], strides = [1, 1]} : vector<2x128xf32> to vector<2x32xf32>
    %414 = arith.mulf %411, %393 : vector<2x32xf32>
    %415 = arith.mulf %410, %412 : vector<2x32xf32>
    %416 = arith.addf %414, %415 : vector<2x32xf32>
    %417 = math.tanh %416 : vector<2x32xf32>
    %418 = arith.mulf %413, %417 : vector<2x32xf32>
    %419 = vector.extract_strided_slice %390 {offsets = [7, 0, 128], sizes = [1, 2, 128], strides = [1, 1, 1]} : vector<8x2x256xf32> to vector<1x2x128xf32>
    %420 = vector.shape_cast %419 : vector<1x2x128xf32> to vector<2x128xf32>
    %421 = vector.extract_strided_slice %398 {offsets = [0, 128], sizes = [2, 128], strides = [1, 1]} : vector<2x256xf32> to vector<2x128xf32>
    %422 = arith.addf %420, %421 : vector<2x128xf32>
    %423 = math.tanh %422 : vector<2x128xf32>
    %424 = arith.negf %422 : vector<2x128xf32>
    %425 = math.exp %424 : vector<2x128xf32>
    %cst_51 = arith.constant 1.000000e+00 : f32
    %426 = vector.broadcast %cst_51 : f32 to vector<2x128xf32>
    %427 = arith.addf %426, %425 : vector<2x128xf32>
    %428 = arith.divf %426, %427 : vector<2x128xf32>
    %429 = arith.select %6, %423, %428 : vector<2x128xi1>, vector<2x128xf32>
    %430 = vector.extract_strided_slice %429 {offsets = [0, 0], sizes = [2, 32], strides = [1, 1]} : vector<2x128xf32> to vector<2x32xf32>
    %431 = vector.extract_strided_slice %429 {offsets = [0, 32], sizes = [2, 32], strides = [1, 1]} : vector<2x128xf32> to vector<2x32xf32>
    %432 = vector.extract_strided_slice %429 {offsets = [0, 64], sizes = [2, 32], strides = [1, 1]} : vector<2x128xf32> to vector<2x32xf32>
    %433 = vector.extract_strided_slice %429 {offsets = [0, 96], sizes = [2, 32], strides = [1, 1]} : vector<2x128xf32> to vector<2x32xf32>
    %434 = arith.mulf %431, %395 : vector<2x32xf32>
    %435 = arith.mulf %430, %432 : vector<2x32xf32>
    %436 = arith.addf %434, %435 : vector<2x32xf32>
    %437 = math.tanh %436 : vector<2x32xf32>
    %438 = arith.mulf %433, %437 : vector<2x32xf32>
    %439 = tpu.concatenate %418, %438 in 1 : vector<2x32xf32>, vector<2x32xf32> -> vector<2x64xf32>
    %440 = arith.truncf %439 : vector<2x64xf32> to vector<2x64xbf16>
    %cst_52 = arith.constant dense<0.000000e+00> : vector<2x256xf32>
    %441 = tpu.matmul %440, %391, %cst_52 {dimension_numbers = #tpu.dot_dimension_numbers<[1], [0], [0], [1], [0, 0, 1, 1], [], []>} : vector<2x64xbf16>, vector<64x256xbf16>, vector<2x256xf32> -> vector<2x256xf32>
    %442 = vector.extract_strided_slice %390 {offsets = [1, 0, 0], sizes = [1, 2, 128], strides = [1, 1, 1]} : vector<8x2x256xf32> to vector<1x2x128xf32>
    %443 = vector.shape_cast %442 : vector<1x2x128xf32> to vector<2x128xf32>
    %444 = vector.extract_strided_slice %441 {offsets = [0, 0], sizes = [2, 128], strides = [1, 1]} : vector<2x256xf32> to vector<2x128xf32>
    %445 = arith.addf %443, %444 : vector<2x128xf32>
    %446 = math.tanh %445 : vector<2x128xf32>
    %447 = arith.negf %445 : vector<2x128xf32>
    %448 = math.exp %447 : vector<2x128xf32>
    %cst_53 = arith.constant 1.000000e+00 : f32
    %449 = vector.broadcast %cst_53 : f32 to vector<2x128xf32>
    %450 = arith.addf %449, %448 : vector<2x128xf32>
    %451 = arith.divf %449, %450 : vector<2x128xf32>
    %452 = arith.select %6, %446, %451 : vector<2x128xi1>, vector<2x128xf32>
    %453 = vector.extract_strided_slice %452 {offsets = [0, 0], sizes = [2, 32], strides = [1, 1]} : vector<2x128xf32> to vector<2x32xf32>
    %454 = vector.extract_strided_slice %452 {offsets = [0, 32], sizes = [2, 32], strides = [1, 1]} : vector<2x128xf32> to vector<2x32xf32>
    %455 = vector.extract_strided_slice %452 {offsets = [0, 64], sizes = [2, 32], strides = [1, 1]} : vector<2x128xf32> to vector<2x32xf32>
    %456 = vector.extract_strided_slice %452 {offsets = [0, 96], sizes = [2, 32], strides = [1, 1]} : vector<2x128xf32> to vector<2x32xf32>
    %457 = arith.mulf %454, %416 : vector<2x32xf32>
    %458 = arith.mulf %453, %455 : vector<2x32xf32>
    %459 = arith.addf %457, %458 : vector<2x32xf32>
    %460 = math.tanh %459 : vector<2x32xf32>
    %461 = arith.mulf %456, %460 : vector<2x32xf32>
    %462 = vector.extract_strided_slice %390 {offsets = [6, 0, 128], sizes = [1, 2, 128], strides = [1, 1, 1]} : vector<8x2x256xf32> to vector<1x2x128xf32>
    %463 = vector.shape_cast %462 : vector<1x2x128xf32> to vector<2x128xf32>
    %464 = vector.extract_strided_slice %441 {offsets = [0, 128], sizes = [2, 128], strides = [1, 1]} : vector<2x256xf32> to vector<2x128xf32>
    %465 = arith.addf %463, %464 : vector<2x128xf32>
    %466 = math.tanh %465 : vector<2x128xf32>
    %467 = arith.negf %465 : vector<2x128xf32>
    %468 = math.exp %467 : vector<2x128xf32>
    %cst_54 = arith.constant 1.000000e+00 : f32
    %469 = vector.broadcast %cst_54 : f32 to vector<2x128xf32>
    %470 = arith.addf %469, %468 : vector<2x128xf32>
    %471 = arith.divf %469, %470 : vector<2x128xf32>
    %472 = arith.select %6, %466, %471 : vector<2x128xi1>, vector<2x128xf32>
    %473 = vector.extract_strided_slice %472 {offsets = [0, 0], sizes = [2, 32], strides = [1, 1]} : vector<2x128xf32> to vector<2x32xf32>
    %474 = vector.extract_strided_slice %472 {offsets = [0, 32], sizes = [2, 32], strides = [1, 1]} : vector<2x128xf32> to vector<2x32xf32>
    %475 = vector.extract_strided_slice %472 {offsets = [0, 64], sizes = [2, 32], strides = [1, 1]} : vector<2x128xf32> to vector<2x32xf32>
    %476 = vector.extract_strided_slice %472 {offsets = [0, 96], sizes = [2, 32], strides = [1, 1]} : vector<2x128xf32> to vector<2x32xf32>
    %477 = arith.mulf %474, %436 : vector<2x32xf32>
    %478 = arith.mulf %473, %475 : vector<2x32xf32>
    %479 = arith.addf %477, %478 : vector<2x32xf32>
    %480 = math.tanh %479 : vector<2x32xf32>
    %481 = arith.mulf %476, %480 : vector<2x32xf32>
    %482 = tpu.concatenate %461, %481 in 1 : vector<2x32xf32>, vector<2x32xf32> -> vector<2x64xf32>
    %483 = arith.truncf %482 : vector<2x64xf32> to vector<2x64xbf16>
    %cst_55 = arith.constant dense<0.000000e+00> : vector<2x256xf32>
    %484 = tpu.matmul %483, %391, %cst_55 {dimension_numbers = #tpu.dot_dimension_numbers<[1], [0], [0], [1], [0, 0, 1, 1], [], []>} : vector<2x64xbf16>, vector<64x256xbf16>, vector<2x256xf32> -> vector<2x256xf32>
    %485 = vector.extract_strided_slice %390 {offsets = [2, 0, 0], sizes = [1, 2, 128], strides = [1, 1, 1]} : vector<8x2x256xf32> to vector<1x2x128xf32>
    %486 = vector.shape_cast %485 : vector<1x2x128xf32> to vector<2x128xf32>
    %487 = vector.extract_strided_slice %484 {offsets = [0, 0], sizes = [2, 128], strides = [1, 1]} : vector<2x256xf32> to vector<2x128xf32>
    %488 = arith.addf %486, %487 : vector<2x128xf32>
    %489 = math.tanh %488 : vector<2x128xf32>
    %490 = arith.negf %488 : vector<2x128xf32>
    %491 = math.exp %490 : vector<2x128xf32>
    %cst_56 = arith.constant 1.000000e+00 : f32
    %492 = vector.broadcast %cst_56 : f32 to vector<2x128xf32>
    %493 = arith.addf %492, %491 : vector<2x128xf32>
    %494 = arith.divf %492, %493 : vector<2x128xf32>
    %495 = arith.select %6, %489, %494 : vector<2x128xi1>, vector<2x128xf32>
    %496 = vector.extract_strided_slice %495 {offsets = [0, 0], sizes = [2, 32], strides = [1, 1]} : vector<2x128xf32> to vector<2x32xf32>
    %497 = vector.extract_strided_slice %495 {offsets = [0, 32], sizes = [2, 32], strides = [1, 1]} : vector<2x128xf32> to vector<2x32xf32>
    %498 = vector.extract_strided_slice %495 {offsets = [0, 64], sizes = [2, 32], strides = [1, 1]} : vector<2x128xf32> to vector<2x32xf32>
    %499 = vector.extract_strided_slice %495 {offsets = [0, 96], sizes = [2, 32], strides = [1, 1]} : vector<2x128xf32> to vector<2x32xf32>
    %500 = arith.mulf %497, %459 : vector<2x32xf32>
    %501 = arith.mulf %496, %498 : vector<2x32xf32>
    %502 = arith.addf %500, %501 : vector<2x32xf32>
    %503 = math.tanh %502 : vector<2x32xf32>
    %504 = arith.mulf %499, %503 : vector<2x32xf32>
    %505 = vector.extract_strided_slice %390 {offsets = [5, 0, 128], sizes = [1, 2, 128], strides = [1, 1, 1]} : vector<8x2x256xf32> to vector<1x2x128xf32>
    %506 = vector.shape_cast %505 : vector<1x2x128xf32> to vector<2x128xf32>
    %507 = vector.extract_strided_slice %484 {offsets = [0, 128], sizes = [2, 128], strides = [1, 1]} : vector<2x256xf32> to vector<2x128xf32>
    %508 = arith.addf %506, %507 : vector<2x128xf32>
    %509 = math.tanh %508 : vector<2x128xf32>
    %510 = arith.negf %508 : vector<2x128xf32>
    %511 = math.exp %510 : vector<2x128xf32>
    %cst_57 = arith.constant 1.000000e+00 : f32
    %512 = vector.broadcast %cst_57 : f32 to vector<2x128xf32>
    %513 = arith.addf %512, %511 : vector<2x128xf32>
    %514 = arith.divf %512, %513 : vector<2x128xf32>
    %515 = arith.select %6, %509, %514 : vector<2x128xi1>, vector<2x128xf32>
    %516 = vector.extract_strided_slice %515 {offsets = [0, 0], sizes = [2, 32], strides = [1, 1]} : vector<2x128xf32> to vector<2x32xf32>
    %517 = vector.extract_strided_slice %515 {offsets = [0, 32], sizes = [2, 32], strides = [1, 1]} : vector<2x128xf32> to vector<2x32xf32>
    %518 = vector.extract_strided_slice %515 {offsets = [0, 64], sizes = [2, 32], strides = [1, 1]} : vector<2x128xf32> to vector<2x32xf32>
    %519 = vector.extract_strided_slice %515 {offsets = [0, 96], sizes = [2, 32], strides = [1, 1]} : vector<2x128xf32> to vector<2x32xf32>
    %520 = arith.mulf %517, %479 : vector<2x32xf32>
    %521 = arith.mulf %516, %518 : vector<2x32xf32>
    %522 = arith.addf %520, %521 : vector<2x32xf32>
    %523 = math.tanh %522 : vector<2x32xf32>
    %524 = arith.mulf %519, %523 : vector<2x32xf32>
    %525 = tpu.concatenate %504, %524 in 1 : vector<2x32xf32>, vector<2x32xf32> -> vector<2x64xf32>
    %526 = arith.truncf %525 : vector<2x64xf32> to vector<2x64xbf16>
    %cst_58 = arith.constant dense<0.000000e+00> : vector<2x256xf32>
    %527 = tpu.matmul %526, %391, %cst_58 {dimension_numbers = #tpu.dot_dimension_numbers<[1], [0], [0], [1], [0, 0, 1, 1], [], []>} : vector<2x64xbf16>, vector<64x256xbf16>, vector<2x256xf32> -> vector<2x256xf32>
    %528 = vector.extract_strided_slice %390 {offsets = [3, 0, 0], sizes = [1, 2, 128], strides = [1, 1, 1]} : vector<8x2x256xf32> to vector<1x2x128xf32>
    %529 = vector.shape_cast %528 : vector<1x2x128xf32> to vector<2x128xf32>
    %530 = vector.extract_strided_slice %527 {offsets = [0, 0], sizes = [2, 128], strides = [1, 1]} : vector<2x256xf32> to vector<2x128xf32>
    %531 = arith.addf %529, %530 : vector<2x128xf32>
    %532 = math.tanh %531 : vector<2x128xf32>
    %533 = arith.negf %531 : vector<2x128xf32>
    %534 = math.exp %533 : vector<2x128xf32>
    %cst_59 = arith.constant 1.000000e+00 : f32
    %535 = vector.broadcast %cst_59 : f32 to vector<2x128xf32>
    %536 = arith.addf %535, %534 : vector<2x128xf32>
    %537 = arith.divf %535, %536 : vector<2x128xf32>
    %538 = arith.select %6, %532, %537 : vector<2x128xi1>, vector<2x128xf32>
    %539 = vector.extract_strided_slice %538 {offsets = [0, 0], sizes = [2, 32], strides = [1, 1]} : vector<2x128xf32> to vector<2x32xf32>
    %540 = vector.extract_strided_slice %538 {offsets = [0, 32], sizes = [2, 32], strides = [1, 1]} : vector<2x128xf32> to vector<2x32xf32>
    %541 = vector.extract_strided_slice %538 {offsets = [0, 64], sizes = [2, 32], strides = [1, 1]} : vector<2x128xf32> to vector<2x32xf32>
    %542 = vector.extract_strided_slice %538 {offsets = [0, 96], sizes = [2, 32], strides = [1, 1]} : vector<2x128xf32> to vector<2x32xf32>
    %543 = arith.mulf %540, %502 : vector<2x32xf32>
    %544 = arith.mulf %539, %541 : vector<2x32xf32>
    %545 = arith.addf %543, %544 : vector<2x32xf32>
    %546 = math.tanh %545 : vector<2x32xf32>
    %547 = arith.mulf %542, %546 : vector<2x32xf32>
    %548 = vector.extract_strided_slice %390 {offsets = [4, 0, 128], sizes = [1, 2, 128], strides = [1, 1, 1]} : vector<8x2x256xf32> to vector<1x2x128xf32>
    %549 = vector.shape_cast %548 : vector<1x2x128xf32> to vector<2x128xf32>
    %550 = vector.extract_strided_slice %527 {offsets = [0, 128], sizes = [2, 128], strides = [1, 1]} : vector<2x256xf32> to vector<2x128xf32>
    %551 = arith.addf %549, %550 : vector<2x128xf32>
    %552 = math.tanh %551 : vector<2x128xf32>
    %553 = arith.negf %551 : vector<2x128xf32>
    %554 = math.exp %553 : vector<2x128xf32>
    %cst_60 = arith.constant 1.000000e+00 : f32
    %555 = vector.broadcast %cst_60 : f32 to vector<2x128xf32>
    %556 = arith.addf %555, %554 : vector<2x128xf32>
    %557 = arith.divf %555, %556 : vector<2x128xf32>
    %558 = arith.select %6, %552, %557 : vector<2x128xi1>, vector<2x128xf32>
    %559 = vector.extract_strided_slice %558 {offsets = [0, 0], sizes = [2, 32], strides = [1, 1]} : vector<2x128xf32> to vector<2x32xf32>
    %560 = vector.extract_strided_slice %558 {offsets = [0, 32], sizes = [2, 32], strides = [1, 1]} : vector<2x128xf32> to vector<2x32xf32>
    %561 = vector.extract_strided_slice %558 {offsets = [0, 64], sizes = [2, 32], strides = [1, 1]} : vector<2x128xf32> to vector<2x32xf32>
    %562 = vector.extract_strided_slice %558 {offsets = [0, 96], sizes = [2, 32], strides = [1, 1]} : vector<2x128xf32> to vector<2x32xf32>
    %563 = arith.mulf %560, %522 : vector<2x32xf32>
    %564 = arith.mulf %559, %561 : vector<2x32xf32>
    %565 = arith.addf %563, %564 : vector<2x32xf32>
    %566 = math.tanh %565 : vector<2x32xf32>
    %567 = arith.mulf %562, %566 : vector<2x32xf32>
    %568 = tpu.concatenate %547, %567 in 1 : vector<2x32xf32>, vector<2x32xf32> -> vector<2x64xf32>
    %569 = arith.truncf %568 : vector<2x64xf32> to vector<2x64xbf16>
    %cst_61 = arith.constant dense<0.000000e+00> : vector<2x256xf32>
    %570 = tpu.matmul %569, %391, %cst_61 {dimension_numbers = #tpu.dot_dimension_numbers<[1], [0], [0], [1], [0, 0, 1, 1], [], []>} : vector<2x64xbf16>, vector<64x256xbf16>, vector<2x256xf32> -> vector<2x256xf32>
    %571 = vector.extract_strided_slice %390 {offsets = [4, 0, 0], sizes = [1, 2, 128], strides = [1, 1, 1]} : vector<8x2x256xf32> to vector<1x2x128xf32>
    %572 = vector.shape_cast %571 : vector<1x2x128xf32> to vector<2x128xf32>
    %573 = vector.extract_strided_slice %570 {offsets = [0, 0], sizes = [2, 128], strides = [1, 1]} : vector<2x256xf32> to vector<2x128xf32>
    %574 = arith.addf %572, %573 : vector<2x128xf32>
    %575 = math.tanh %574 : vector<2x128xf32>
    %576 = arith.negf %574 : vector<2x128xf32>
    %577 = math.exp %576 : vector<2x128xf32>
    %cst_62 = arith.constant 1.000000e+00 : f32
    %578 = vector.broadcast %cst_62 : f32 to vector<2x128xf32>
    %579 = arith.addf %578, %577 : vector<2x128xf32>
    %580 = arith.divf %578, %579 : vector<2x128xf32>
    %581 = arith.select %6, %575, %580 : vector<2x128xi1>, vector<2x128xf32>
    %582 = vector.extract_strided_slice %581 {offsets = [0, 0], sizes = [2, 32], strides = [1, 1]} : vector<2x128xf32> to vector<2x32xf32>
    %583 = vector.extract_strided_slice %581 {offsets = [0, 32], sizes = [2, 32], strides = [1, 1]} : vector<2x128xf32> to vector<2x32xf32>
    %584 = vector.extract_strided_slice %581 {offsets = [0, 64], sizes = [2, 32], strides = [1, 1]} : vector<2x128xf32> to vector<2x32xf32>
    %585 = vector.extract_strided_slice %581 {offsets = [0, 96], sizes = [2, 32], strides = [1, 1]} : vector<2x128xf32> to vector<2x32xf32>
    %586 = arith.mulf %583, %545 : vector<2x32xf32>
    %587 = arith.mulf %582, %584 : vector<2x32xf32>
    %588 = arith.addf %586, %587 : vector<2x32xf32>
    %589 = math.tanh %588 : vector<2x32xf32>
    %590 = arith.mulf %585, %589 : vector<2x32xf32>
    %591 = vector.extract_strided_slice %390 {offsets = [3, 0, 128], sizes = [1, 2, 128], strides = [1, 1, 1]} : vector<8x2x256xf32> to vector<1x2x128xf32>
    %592 = vector.shape_cast %591 : vector<1x2x128xf32> to vector<2x128xf32>
    %593 = vector.extract_strided_slice %570 {offsets = [0, 128], sizes = [2, 128], strides = [1, 1]} : vector<2x256xf32> to vector<2x128xf32>
    %594 = arith.addf %592, %593 : vector<2x128xf32>
    %595 = math.tanh %594 : vector<2x128xf32>
    %596 = arith.negf %594 : vector<2x128xf32>
    %597 = math.exp %596 : vector<2x128xf32>
    %cst_63 = arith.constant 1.000000e+00 : f32
    %598 = vector.broadcast %cst_63 : f32 to vector<2x128xf32>
    %599 = arith.addf %598, %597 : vector<2x128xf32>
    %600 = arith.divf %598, %599 : vector<2x128xf32>
    %601 = arith.select %6, %595, %600 : vector<2x128xi1>, vector<2x128xf32>
    %602 = vector.extract_strided_slice %601 {offsets = [0, 0], sizes = [2, 32], strides = [1, 1]} : vector<2x128xf32> to vector<2x32xf32>
    %603 = vector.extract_strided_slice %601 {offsets = [0, 32], sizes = [2, 32], strides = [1, 1]} : vector<2x128xf32> to vector<2x32xf32>
    %604 = vector.extract_strided_slice %601 {offsets = [0, 64], sizes = [2, 32], strides = [1, 1]} : vector<2x128xf32> to vector<2x32xf32>
    %605 = vector.extract_strided_slice %601 {offsets = [0, 96], sizes = [2, 32], strides = [1, 1]} : vector<2x128xf32> to vector<2x32xf32>
    %606 = arith.mulf %603, %565 : vector<2x32xf32>
    %607 = arith.mulf %602, %604 : vector<2x32xf32>
    %608 = arith.addf %606, %607 : vector<2x32xf32>
    %609 = math.tanh %608 : vector<2x32xf32>
    %610 = arith.mulf %605, %609 : vector<2x32xf32>
    %611 = tpu.concatenate %590, %610 in 1 : vector<2x32xf32>, vector<2x32xf32> -> vector<2x64xf32>
    %612 = arith.truncf %611 : vector<2x64xf32> to vector<2x64xbf16>
    %cst_64 = arith.constant dense<0.000000e+00> : vector<2x256xf32>
    %613 = tpu.matmul %612, %391, %cst_64 {dimension_numbers = #tpu.dot_dimension_numbers<[1], [0], [0], [1], [0, 0, 1, 1], [], []>} : vector<2x64xbf16>, vector<64x256xbf16>, vector<2x256xf32> -> vector<2x256xf32>
    %614 = vector.extract_strided_slice %390 {offsets = [5, 0, 0], sizes = [1, 2, 128], strides = [1, 1, 1]} : vector<8x2x256xf32> to vector<1x2x128xf32>
    %615 = vector.shape_cast %614 : vector<1x2x128xf32> to vector<2x128xf32>
    %616 = vector.extract_strided_slice %613 {offsets = [0, 0], sizes = [2, 128], strides = [1, 1]} : vector<2x256xf32> to vector<2x128xf32>
    %617 = arith.addf %615, %616 : vector<2x128xf32>
    %618 = math.tanh %617 : vector<2x128xf32>
    %619 = arith.negf %617 : vector<2x128xf32>
    %620 = math.exp %619 : vector<2x128xf32>
    %cst_65 = arith.constant 1.000000e+00 : f32
    %621 = vector.broadcast %cst_65 : f32 to vector<2x128xf32>
    %622 = arith.addf %621, %620 : vector<2x128xf32>
    %623 = arith.divf %621, %622 : vector<2x128xf32>
    %624 = arith.select %6, %618, %623 : vector<2x128xi1>, vector<2x128xf32>
    %625 = vector.extract_strided_slice %624 {offsets = [0, 0], sizes = [2, 32], strides = [1, 1]} : vector<2x128xf32> to vector<2x32xf32>
    %626 = vector.extract_strided_slice %624 {offsets = [0, 32], sizes = [2, 32], strides = [1, 1]} : vector<2x128xf32> to vector<2x32xf32>
    %627 = vector.extract_strided_slice %624 {offsets = [0, 64], sizes = [2, 32], strides = [1, 1]} : vector<2x128xf32> to vector<2x32xf32>
    %628 = vector.extract_strided_slice %624 {offsets = [0, 96], sizes = [2, 32], strides = [1, 1]} : vector<2x128xf32> to vector<2x32xf32>
    %629 = arith.mulf %626, %588 : vector<2x32xf32>
    %630 = arith.mulf %625, %627 : vector<2x32xf32>
    %631 = arith.addf %629, %630 : vector<2x32xf32>
    %632 = math.tanh %631 : vector<2x32xf32>
    %633 = arith.mulf %628, %632 : vector<2x32xf32>
    %634 = vector.extract_strided_slice %390 {offsets = [2, 0, 128], sizes = [1, 2, 128], strides = [1, 1, 1]} : vector<8x2x256xf32> to vector<1x2x128xf32>
    %635 = vector.shape_cast %634 : vector<1x2x128xf32> to vector<2x128xf32>
    %636 = vector.extract_strided_slice %613 {offsets = [0, 128], sizes = [2, 128], strides = [1, 1]} : vector<2x256xf32> to vector<2x128xf32>
    %637 = arith.addf %635, %636 : vector<2x128xf32>
    %638 = math.tanh %637 : vector<2x128xf32>
    %639 = arith.negf %637 : vector<2x128xf32>
    %640 = math.exp %639 : vector<2x128xf32>
    %cst_66 = arith.constant 1.000000e+00 : f32
    %641 = vector.broadcast %cst_66 : f32 to vector<2x128xf32>
    %642 = arith.addf %641, %640 : vector<2x128xf32>
    %643 = arith.divf %641, %642 : vector<2x128xf32>
    %644 = arith.select %6, %638, %643 : vector<2x128xi1>, vector<2x128xf32>
    %645 = vector.extract_strided_slice %644 {offsets = [0, 0], sizes = [2, 32], strides = [1, 1]} : vector<2x128xf32> to vector<2x32xf32>
    %646 = vector.extract_strided_slice %644 {offsets = [0, 32], sizes = [2, 32], strides = [1, 1]} : vector<2x128xf32> to vector<2x32xf32>
    %647 = vector.extract_strided_slice %644 {offsets = [0, 64], sizes = [2, 32], strides = [1, 1]} : vector<2x128xf32> to vector<2x32xf32>
    %648 = vector.extract_strided_slice %644 {offsets = [0, 96], sizes = [2, 32], strides = [1, 1]} : vector<2x128xf32> to vector<2x32xf32>
    %649 = arith.mulf %646, %608 : vector<2x32xf32>
    %650 = arith.mulf %645, %647 : vector<2x32xf32>
    %651 = arith.addf %649, %650 : vector<2x32xf32>
    %652 = math.tanh %651 : vector<2x32xf32>
    %653 = arith.mulf %648, %652 : vector<2x32xf32>
    %654 = tpu.concatenate %633, %653 in 1 : vector<2x32xf32>, vector<2x32xf32> -> vector<2x64xf32>
    %655 = arith.truncf %654 : vector<2x64xf32> to vector<2x64xbf16>
    %cst_67 = arith.constant dense<0.000000e+00> : vector<2x256xf32>
    %656 = tpu.matmul %655, %391, %cst_67 {dimension_numbers = #tpu.dot_dimension_numbers<[1], [0], [0], [1], [0, 0, 1, 1], [], []>} : vector<2x64xbf16>, vector<64x256xbf16>, vector<2x256xf32> -> vector<2x256xf32>
    %657 = vector.extract_strided_slice %390 {offsets = [6, 0, 0], sizes = [1, 2, 128], strides = [1, 1, 1]} : vector<8x2x256xf32> to vector<1x2x128xf32>
    %658 = vector.shape_cast %657 : vector<1x2x128xf32> to vector<2x128xf32>
    %659 = vector.extract_strided_slice %656 {offsets = [0, 0], sizes = [2, 128], strides = [1, 1]} : vector<2x256xf32> to vector<2x128xf32>
    %660 = arith.addf %658, %659 : vector<2x128xf32>
    %661 = math.tanh %660 : vector<2x128xf32>
    %662 = arith.negf %660 : vector<2x128xf32>
    %663 = math.exp %662 : vector<2x128xf32>
    %cst_68 = arith.constant 1.000000e+00 : f32
    %664 = vector.broadcast %cst_68 : f32 to vector<2x128xf32>
    %665 = arith.addf %664, %663 : vector<2x128xf32>
    %666 = arith.divf %664, %665 : vector<2x128xf32>
    %667 = arith.select %6, %661, %666 : vector<2x128xi1>, vector<2x128xf32>
    %668 = vector.extract_strided_slice %667 {offsets = [0, 0], sizes = [2, 32], strides = [1, 1]} : vector<2x128xf32> to vector<2x32xf32>
    %669 = vector.extract_strided_slice %667 {offsets = [0, 32], sizes = [2, 32], strides = [1, 1]} : vector<2x128xf32> to vector<2x32xf32>
    %670 = vector.extract_strided_slice %667 {offsets = [0, 64], sizes = [2, 32], strides = [1, 1]} : vector<2x128xf32> to vector<2x32xf32>
    %671 = vector.extract_strided_slice %667 {offsets = [0, 96], sizes = [2, 32], strides = [1, 1]} : vector<2x128xf32> to vector<2x32xf32>
    %672 = arith.mulf %669, %631 : vector<2x32xf32>
    %673 = arith.mulf %668, %670 : vector<2x32xf32>
    %674 = arith.addf %672, %673 : vector<2x32xf32>
    %675 = math.tanh %674 : vector<2x32xf32>
    %676 = arith.mulf %671, %675 : vector<2x32xf32>
    %677 = vector.extract_strided_slice %390 {offsets = [1, 0, 128], sizes = [1, 2, 128], strides = [1, 1, 1]} : vector<8x2x256xf32> to vector<1x2x128xf32>
    %678 = vector.shape_cast %677 : vector<1x2x128xf32> to vector<2x128xf32>
    %679 = vector.extract_strided_slice %656 {offsets = [0, 128], sizes = [2, 128], strides = [1, 1]} : vector<2x256xf32> to vector<2x128xf32>
    %680 = arith.addf %678, %679 : vector<2x128xf32>
    %681 = math.tanh %680 : vector<2x128xf32>
    %682 = arith.negf %680 : vector<2x128xf32>
    %683 = math.exp %682 : vector<2x128xf32>
    %cst_69 = arith.constant 1.000000e+00 : f32
    %684 = vector.broadcast %cst_69 : f32 to vector<2x128xf32>
    %685 = arith.addf %684, %683 : vector<2x128xf32>
    %686 = arith.divf %684, %685 : vector<2x128xf32>
    %687 = arith.select %6, %681, %686 : vector<2x128xi1>, vector<2x128xf32>
    %688 = vector.extract_strided_slice %687 {offsets = [0, 0], sizes = [2, 32], strides = [1, 1]} : vector<2x128xf32> to vector<2x32xf32>
    %689 = vector.extract_strided_slice %687 {offsets = [0, 32], sizes = [2, 32], strides = [1, 1]} : vector<2x128xf32> to vector<2x32xf32>
    %690 = vector.extract_strided_slice %687 {offsets = [0, 64], sizes = [2, 32], strides = [1, 1]} : vector<2x128xf32> to vector<2x32xf32>
    %691 = vector.extract_strided_slice %687 {offsets = [0, 96], sizes = [2, 32], strides = [1, 1]} : vector<2x128xf32> to vector<2x32xf32>
    %692 = arith.mulf %689, %651 : vector<2x32xf32>
    %693 = arith.mulf %688, %690 : vector<2x32xf32>
    %694 = arith.addf %692, %693 : vector<2x32xf32>
    %695 = math.tanh %694 : vector<2x32xf32>
    %696 = arith.mulf %691, %695 : vector<2x32xf32>
    %697 = tpu.concatenate %676, %696 in 1 : vector<2x32xf32>, vector<2x32xf32> -> vector<2x64xf32>
    %698 = arith.truncf %697 : vector<2x64xf32> to vector<2x64xbf16>
    %cst_70 = arith.constant dense<0.000000e+00> : vector<2x256xf32>
    %699 = tpu.matmul %698, %391, %cst_70 {dimension_numbers = #tpu.dot_dimension_numbers<[1], [0], [0], [1], [0, 0, 1, 1], [], []>} : vector<2x64xbf16>, vector<64x256xbf16>, vector<2x256xf32> -> vector<2x256xf32>
    %700 = vector.extract_strided_slice %390 {offsets = [7, 0, 0], sizes = [1, 2, 128], strides = [1, 1, 1]} : vector<8x2x256xf32> to vector<1x2x128xf32>
    %701 = vector.shape_cast %700 : vector<1x2x128xf32> to vector<2x128xf32>
    %702 = vector.extract_strided_slice %699 {offsets = [0, 0], sizes = [2, 128], strides = [1, 1]} : vector<2x256xf32> to vector<2x128xf32>
    %703 = arith.addf %701, %702 : vector<2x128xf32>
    %704 = math.tanh %703 : vector<2x128xf32>
    %705 = arith.negf %703 : vector<2x128xf32>
    %706 = math.exp %705 : vector<2x128xf32>
    %cst_71 = arith.constant 1.000000e+00 : f32
    %707 = vector.broadcast %cst_71 : f32 to vector<2x128xf32>
    %708 = arith.addf %707, %706 : vector<2x128xf32>
    %709 = arith.divf %707, %708 : vector<2x128xf32>
    %710 = arith.select %6, %704, %709 : vector<2x128xi1>, vector<2x128xf32>
    %711 = vector.extract_strided_slice %710 {offsets = [0, 0], sizes = [2, 32], strides = [1, 1]} : vector<2x128xf32> to vector<2x32xf32>
    %712 = vector.extract_strided_slice %710 {offsets = [0, 32], sizes = [2, 32], strides = [1, 1]} : vector<2x128xf32> to vector<2x32xf32>
    %713 = vector.extract_strided_slice %710 {offsets = [0, 64], sizes = [2, 32], strides = [1, 1]} : vector<2x128xf32> to vector<2x32xf32>
    %714 = vector.extract_strided_slice %710 {offsets = [0, 96], sizes = [2, 32], strides = [1, 1]} : vector<2x128xf32> to vector<2x32xf32>
    %715 = arith.mulf %712, %674 : vector<2x32xf32>
    %716 = arith.mulf %711, %713 : vector<2x32xf32>
    %717 = arith.addf %715, %716 : vector<2x32xf32>
    %718 = math.tanh %717 : vector<2x32xf32>
    %719 = arith.mulf %714, %718 : vector<2x32xf32>
    %720 = vector.extract_strided_slice %390 {offsets = [0, 0, 128], sizes = [1, 2, 128], strides = [1, 1, 1]} : vector<8x2x256xf32> to vector<1x2x128xf32>
    %721 = vector.shape_cast %720 : vector<1x2x128xf32> to vector<2x128xf32>
    %722 = vector.extract_strided_slice %699 {offsets = [0, 128], sizes = [2, 128], strides = [1, 1]} : vector<2x256xf32> to vector<2x128xf32>
    %723 = arith.addf %721, %722 : vector<2x128xf32>
    %724 = math.tanh %723 : vector<2x128xf32>
    %725 = arith.negf %723 : vector<2x128xf32>
    %726 = math.exp %725 : vector<2x128xf32>
    %cst_72 = arith.constant 1.000000e+00 : f32
    %727 = vector.broadcast %cst_72 : f32 to vector<2x128xf32>
    %728 = arith.addf %727, %726 : vector<2x128xf32>
    %729 = arith.divf %727, %728 : vector<2x128xf32>
    %730 = arith.select %6, %724, %729 : vector<2x128xi1>, vector<2x128xf32>
    %731 = vector.extract_strided_slice %730 {offsets = [0, 0], sizes = [2, 32], strides = [1, 1]} : vector<2x128xf32> to vector<2x32xf32>
    %732 = vector.extract_strided_slice %730 {offsets = [0, 32], sizes = [2, 32], strides = [1, 1]} : vector<2x128xf32> to vector<2x32xf32>
    %733 = vector.extract_strided_slice %730 {offsets = [0, 64], sizes = [2, 32], strides = [1, 1]} : vector<2x128xf32> to vector<2x32xf32>
    %734 = vector.extract_strided_slice %730 {offsets = [0, 96], sizes = [2, 32], strides = [1, 1]} : vector<2x128xf32> to vector<2x32xf32>
    %735 = arith.mulf %732, %694 : vector<2x32xf32>
    %736 = arith.mulf %731, %733 : vector<2x32xf32>
    %737 = arith.addf %735, %736 : vector<2x32xf32>
    %738 = math.tanh %737 : vector<2x32xf32>
    %739 = arith.mulf %734, %738 : vector<2x32xf32>
    %740 = vector.shape_cast %418 : vector<2x32xf32> to vector<1x2x32xf32>
    %741 = vector.shape_cast %461 : vector<2x32xf32> to vector<1x2x32xf32>
    %742 = vector.shape_cast %504 : vector<2x32xf32> to vector<1x2x32xf32>
    %743 = vector.shape_cast %547 : vector<2x32xf32> to vector<1x2x32xf32>
    %744 = vector.shape_cast %590 : vector<2x32xf32> to vector<1x2x32xf32>
    %745 = vector.shape_cast %633 : vector<2x32xf32> to vector<1x2x32xf32>
    %746 = vector.shape_cast %676 : vector<2x32xf32> to vector<1x2x32xf32>
    %747 = vector.shape_cast %719 : vector<2x32xf32> to vector<1x2x32xf32>
    %748 = tpu.concatenate %740, %741, %742, %743, %744, %745, %746, %747 in 0 : vector<1x2x32xf32>, vector<1x2x32xf32>, vector<1x2x32xf32>, vector<1x2x32xf32>, vector<1x2x32xf32>, vector<1x2x32xf32>, vector<1x2x32xf32>, vector<1x2x32xf32> -> vector<8x2x32xf32>
    %749 = vector.shape_cast %739 : vector<2x32xf32> to vector<1x2x32xf32>
    %750 = vector.shape_cast %696 : vector<2x32xf32> to vector<1x2x32xf32>
    %751 = vector.shape_cast %653 : vector<2x32xf32> to vector<1x2x32xf32>
    %752 = vector.shape_cast %610 : vector<2x32xf32> to vector<1x2x32xf32>
    %753 = vector.shape_cast %567 : vector<2x32xf32> to vector<1x2x32xf32>
    %754 = vector.shape_cast %524 : vector<2x32xf32> to vector<1x2x32xf32>
    %755 = vector.shape_cast %481 : vector<2x32xf32> to vector<1x2x32xf32>
    %756 = vector.shape_cast %438 : vector<2x32xf32> to vector<1x2x32xf32>
    %757 = tpu.concatenate %749, %750, %751, %752, %753, %754, %755, %756 in 0 : vector<1x2x32xf32>, vector<1x2x32xf32>, vector<1x2x32xf32>, vector<1x2x32xf32>, vector<1x2x32xf32>, vector<1x2x32xf32>, vector<1x2x32xf32>, vector<1x2x32xf32> -> vector<8x2x32xf32>
    %758 = tpu.concatenate %748, %757 in 2 : vector<8x2x32xf32>, vector<8x2x32xf32> -> vector<8x2x64xf32>
    %759 = arith.truncf %758 : vector<8x2x64xf32> to vector<8x2x64xbf16>
    %c0_73 = arith.constant 0 : index
    %c0_74 = arith.constant 0 : index
    %760 = vector.load %arg8[%c0_73, %c0_74] : memref<64x64xf32, #tpu.memory_space<vmem>>, vector<64x64xf32>
    %761 = arith.truncf %760 : vector<64x64xf32> to vector<64x64xbf16>
    "tpu.trace_start"() <{level = 10 : i32, message = "tbd,dk->tbk"}> : () -> ()
    %cst_75 = arith.constant dense<0.000000e+00> : vector<8x2x64xf32>
    %762 = tpu.matmul %759, %761, %cst_75 {dimension_numbers = #tpu.dot_dimension_numbers<[2], [0], [0, 1], [1], [0, 0, 0, 1, 1, 1], [], []>} : vector<8x2x64xbf16>, vector<64x64xbf16>, vector<8x2x64xf32> -> vector<8x2x64xf32>
    "tpu.trace_stop"() : () -> ()
    %c0_76 = arith.constant 0 : index
    %c0_77 = arith.constant 0 : index
    %c0_78 = arith.constant 0 : index
    %763 = vector.load %arg9[%c0_76, %c0_77, %c0_78] : memref<1x1x64xf32, #tpu.memory_space<vmem>>, vector<1x1x64xf32>
    %764 = vector.broadcast %763 : vector<1x1x64xf32> to vector<8x2x64xf32>
    %765 = arith.addf %762, %764 : vector<8x2x64xf32>
    %cst_79 = arith.constant 0.000000e+00 : f32
    %766 = vector.broadcast %cst_79 : f32 to vector<8x2x64xf32>
    %767 = arith.maximumf %765, %766 : vector<8x2x64xf32>
    %c0_80 = arith.constant 0 : index
    %c0_81 = arith.constant 0 : index
    %c0_82 = arith.constant 0 : index
    %768 = vector.load %arg10[%c0_80, %c0_81, %c0_82] : memref<1x1x64xf32, #tpu.memory_space<vmem>>, vector<1x1x64xf32>
    %769 = vector.broadcast %768 : vector<1x1x64xf32> to vector<8x2x64xf32>
    %770 = arith.mulf %767, %769 : vector<8x2x64xf32>
    %cst_83 = arith.constant dense<0.000000e+00> : vector<8x2xf32>
    %771 = vector.multi_reduction <add>, %770, %cst_83 [2] : vector<8x2x64xf32> to vector<8x2xf32>
    %772 = vector.shape_cast %771 : vector<8x2xf32> to vector<8x2x1xf32>
    %c0_84 = arith.constant 0 : index
    %c0_85 = arith.constant 0 : index
    %c0_86 = arith.constant 0 : index
    %773 = vector.load %arg11[%c0_84, %c0_85, %c0_86] : memref<1x1x1xf32, #tpu.memory_space<vmem>>, vector<1x1x1xf32>
    %774 = vector.broadcast %773 : vector<1x1x1xf32> to vector<8x2x1xf32>
    %775 = arith.addf %772, %774 : vector<8x2x1xf32>
    %cst_87 = arith.constant dense<0xFF800000> : vector<2x1xf32>
    %776 = vector.multi_reduction <maximumf>, %775, %cst_87 [0] : vector<8x2x1xf32> to vector<2x1xf32>
    %777 = vector.shape_cast %776 : vector<2x1xf32> to vector<1x2x1xf32>
    %778 = vector.broadcast %777 : vector<1x2x1xf32> to vector<8x2x1xf32>
    %779 = arith.subf %775, %778 : vector<8x2x1xf32>
    %780 = math.exp %779 : vector<8x2x1xf32>
    %cst_88 = arith.constant dense<0.000000e+00> : vector<2x1xf32>
    %781 = vector.multi_reduction <add>, %780, %cst_88 [0] : vector<8x2x1xf32> to vector<2x1xf32>
    %782 = vector.shape_cast %781 : vector<2x1xf32> to vector<1x2x1xf32>
    %783 = vector.broadcast %782 : vector<1x2x1xf32> to vector<8x2x1xf32>
    %784 = arith.divf %780, %783 : vector<8x2x1xf32>
    %785 = vector.broadcast %784 : vector<8x2x1xf32> to vector<8x2x64xf32>
    %786 = arith.mulf %785, %758 : vector<8x2x64xf32>
    %cst_89 = arith.constant dense<0.000000e+00> : vector<2x64xf32>
    %787 = vector.multi_reduction <add>, %786, %cst_89 [0] : vector<8x2x64xf32> to vector<2x64xf32>
    %c0_90 = arith.constant 0 : index
    %c0_91 = arith.constant 0 : index
    %788 = vector.load %arg12[%c0_90, %c0_91] : memref<64x4xf32, #tpu.memory_space<vmem>>, vector<64x4xf32>
    %cst_92 = arith.constant dense<0.000000e+00> : vector<2x4xf32>
    %789 = tpu.matmul %787, %788, %cst_92 {dimension_numbers = #tpu.dot_dimension_numbers<[1], [0], [0], [1], [0, 0, 1, 1], [], []>} : vector<2x64xf32>, vector<64x4xf32>, vector<2x4xf32> -> vector<2x4xf32>
    %c0_93 = arith.constant 0 : index
    %c0_94 = arith.constant 0 : index
    %790 = vector.load %arg13[%c0_93, %c0_94] : memref<1x4xf32, #tpu.memory_space<vmem>>, vector<1x4xf32>
    %791 = vector.broadcast %790 : vector<1x4xf32> to vector<2x4xf32>
    %792 = arith.addf %789, %791 : vector<2x4xf32>
    %c0_95 = arith.constant 0 : index
    %c0_96 = arith.constant 0 : index
    %793 = vector.load %arg14[%c0_95, %c0_96] : memref<2x4xf32, #tpu.memory_space<vmem>>, vector<2x4xf32>
    tpu.vector_store %arg14[%c0_95, %c0_96], %792 {strides = array<i32>} : memref<2x4xf32, #tpu.memory_space<vmem>>, vector<2x4xf32>,
    return
  }
  func.func @transform_0(%arg0: i32) -> (i32, i32, i32) {
    %c0_i32 = arith.constant 0 : i32
    %c0_i32_0 = arith.constant 0 : i32
    %c0_i32_1 = arith.constant 0 : i32
    %c0_i32_2 = arith.constant 0 : i32
    return %c0_i32, %c0_i32_0, %c0_i32_1 : i32, i32, i32
  }
  func.func @transform_1(%arg0: i32) -> (i32, i32) {
    %c0_i32 = arith.constant 0 : i32
    %c0_i32_0 = arith.constant 0 : i32
    %c0_i32_1 = arith.constant 0 : i32
    return %c0_i32, %c0_i32_0 : i32, i32
  }
  func.func @transform_2(%arg0: i32) -> (i32, i32) {
    %c0_i32 = arith.constant 0 : i32
    %c0_i32_0 = arith.constant 0 : i32
    %c0_i32_1 = arith.constant 0 : i32
    return %c0_i32, %c0_i32_0 : i32, i32
  }
  func.func @transform_3(%arg0: i32) -> (i32, i32, i32) {
    %c0_i32 = arith.constant 0 : i32
    %c0_i32_0 = arith.constant 0 : i32
    %c0_i32_1 = arith.constant 0 : i32
    %c0_i32_2 = arith.constant 0 : i32
    return %c0_i32, %c0_i32_0, %c0_i32_1 : i32, i32, i32
  }
  func.func @transform_4(%arg0: i32) -> (i32, i32) {
    %c0_i32 = arith.constant 0 : i32
    %c0_i32_0 = arith.constant 0 : i32
    %c0_i32_1 = arith.constant 0 : i32
    return %c0_i32, %c0_i32_0 : i32, i32
  }
  func.func @transform_5(%arg0: i32) -> (i32, i32) {
    %c0_i32 = arith.constant 0 : i32
    %c0_i32_0 = arith.constant 0 : i32
    %c0_i32_1 = arith.constant 0 : i32
    return %c0_i32, %c0_i32_0 : i32, i32
  }
  func.func @transform_6(%arg0: i32) -> (i32, i32, i32) {
    %c0_i32 = arith.constant 0 : i32
    %c0_i32_0 = arith.constant 0 : i32
    %c0_i32_1 = arith.constant 0 : i32
    %c0_i32_2 = arith.constant 0 : i32
    return %c0_i32, %c0_i32_0, %c0_i32_1 : i32, i32, i32
  }
  func.func @transform_7(%arg0: i32) -> (i32, i32) {
    %c0_i32 = arith.constant 0 : i32
    %c0_i32_0 = arith.constant 0 : i32
    %c0_i32_1 = arith.constant 0 : i32
    return %c0_i32, %c0_i32_0 : i32, i32
  }
  func.func @transform_8(%arg0: i32) -> (i32, i32, i32) {
    %c0_i32 = arith.constant 0 : i32
    %c0_i32_0 = arith.constant 0 : i32
    %c0_i32_1 = arith.constant 0 : i32
    %c0_i32_2 = arith.constant 0 : i32
    return %c0_i32, %c0_i32_0, %c0_i32_1 : i32, i32, i32
  }
  func.func @transform_9(%arg0: i32) -> (i32, i32, i32) {
    %c0_i32 = arith.constant 0 : i32
    %c0_i32_0 = arith.constant 0 : i32
    %c0_i32_1 = arith.constant 0 : i32
    %c0_i32_2 = arith.constant 0 : i32
    return %c0_i32, %c0_i32_0, %c0_i32_1 : i32, i32, i32
  }
  func.func @transform_10(%arg0: i32) -> (i32, i32, i32) {
    %c0_i32 = arith.constant 0 : i32
    %c0_i32_0 = arith.constant 0 : i32
    %c0_i32_1 = arith.constant 0 : i32
    %c0_i32_2 = arith.constant 0 : i32
    return %c0_i32, %c0_i32_0, %c0_i32_1 : i32, i32, i32
  }
  func.func @transform_11(%arg0: i32) -> (i32, i32) {
    %c0_i32 = arith.constant 0 : i32
    %c0_i32_0 = arith.constant 0 : i32
    %c0_i32_1 = arith.constant 0 : i32
    return %c0_i32, %c0_i32_0 : i32, i32
  }
  func.func @transform_12(%arg0: i32) -> (i32, i32) {
    %c0_i32 = arith.constant 0 : i32
    %c0_i32_0 = arith.constant 0 : i32
    %c0_i32_1 = arith.constant 0 : i32
    return %c0_i32, %c0_i32_0 : i32, i32
  }
  func.func @transform_13(%arg0: i32) -> (i32, i32) {
    %c0_i32 = arith.constant 0 : i32
    %c0_i32_0 = arith.constant 0 : i32
    %c0_i32_1 = arith.constant 0 : i32
    return %c0_i32, %c0_i32_0 : i32, i32
  }
}

</mosaic_0001>

<llo_original>
// kernel: lstm_att_forward.1
$region0: #{lstm_att_forward.1}
  #allocation0 [shape = 'u32[]', space=smem, size = 0x4, offset = 0x4, fixed_abs, tag = 'smem constant byte address 0x4 - core index']
  #allocation1 [shape = 'u32[144,128]{1,0:T(1,128)}', space=vmem, size = 0x12000, scoped, tag = 'internal scratch']
  #allocation2 [shape = 'f32[1,1,1]{2,1,0:T(1,128)S(1)}', space=vmem, size = 0x200, scoped, tag = 'scoped memory for lstm_att_forward.1']
  %s0 = inlined_call_operand.vmem [shape: f32[8,2,32], index: 0, kind: input, shape index: {}]
  %s1 = inlined_call_operand.hbm [shape: f32[32,256], index: 1, kind: input, shape index: {}]
  %s2 = inlined_call_operand.vmem [shape: f32[64,256], index: 2, kind: input, shape index: {}]
  %s3 = inlined_call_operand.vmem [shape: f32[1,1,256], index: 3, kind: input, shape index: {}]
  %s4 = inlined_call_operand.vmem [shape: f32[64,256], index: 4, kind: input, shape index: {}]
  %s5 = inlined_call_operand.vmem [shape: f32[64,256], index: 5, kind: input, shape index: {}]
  %s6 = inlined_call_operand.vmem [shape: f32[1,1,256], index: 6, kind: input, shape index: {}]
  %s7 = inlined_call_operand.hbm [shape: f32[64,64], index: 7, kind: input, shape index: {}]
  %s8 = inlined_call_operand.hbm [shape: f32[1,1,64], index: 8, kind: input, shape index: {}]
  %s9 = inlined_call_operand.hbm [shape: f32[1,1,64], index: 9, kind: input, shape index: {}]
  %s10 = inlined_call_operand.<no memory space> [shape: f32[1,1,1], index: 10, kind: input, shape index: {}]
  %s11 = inlined_call_operand.vmem [shape: f32[64,4], index: 11, kind: input, shape index: {}]
  %s12 = inlined_call_operand.hbm [shape: f32[1,4], index: 12, kind: input, shape index: {}]
  %s13 = inlined_call_operand.hbm [shape: f32[2,4], index: 13, kind: output, shape index: {}]
  %s14 = sld [smem:[#allocation0]]
  $region82: #{lstm_att_forward.1} parent=0
    _
  %s16 = ssub.s32 1, %s14
  %s17 = scalar_select 0, %s16, %s14
  %v18 = vstv %s10
  %19 = vst [vmem:[#allocation2] sm:$0x1] %v18
  $region1: #{lstm_att_forward.1} parent=0
    #allocation3 [shape = 'u8[32768]{0}', space=vmem, size = 0x8000, scoped, tag = 'input window, operand 1, single buffered']
    #allocation4 [shape = 's32[1]{0}', space=sflag, size = 0x4, scoped, tag = 'scoped memory for lstm_att_forward.1']
    #allocation5 [shape = 's32[1]{0}', space=sflag, size = 0x4, scoped, tag = 'scoped memory for lstm_att_forward.1']
    #allocation6 [shape = 'u8[32768]{0}', space=vmem, size = 0x8000, scoped, tag = 'input window, operand 7, single buffered']
    #allocation7 [shape = 's32[1]{0}', space=sflag, size = 0x4, scoped, tag = 'scoped memory for lstm_att_forward.1']
    #allocation8 [shape = 'u8[512]{0}', space=vmem, size = 0x400, scoped, tag = 'input window, operand 8, single buffered']
    #allocation9 [shape = 'u8[512]{0}', space=vmem, size = 0x400, scoped, tag = 'input window, operand 9, single buffered']
    #allocation10 [shape = 's32[1]{0}', space=sflag, size = 0x4, scoped, tag = 'scoped memory for lstm_att_forward.1']
    #allocation11 [shape = 'u8[512]{0}', space=vmem, size = 0x400, scoped, tag = 'input window, operand 12, single buffered']
    #allocation12 [shape = 'u8[1024]{0}', space=vmem, size = 0x400, scoped, tag = 'output window, operand 0, single buffered']
    %20 = vsyncpa [#allocation4], 0
    %21 = vsyncpa [#allocation7], 0
    %22 = vsyncpa [#allocation10], 0
    %23 = vsyncpa [#allocation5], 0
    // Predicated region
    $region2: #{lstm_att_forward.1} parent=1 // pred_check
      _
    $region3: #{lstm_att_forward.1} parent=1 // pred_check_branch
      %25 = sbr.rel (0) target = $region5
    $region4: #{lstm_att_forward.1} parent=1 // pred_region
      _
    $region5: #{lstm_att_forward.1} parent=1 // pred_fallthru
      _
    // Predicated region
    $region6: #{lstm_att_forward.1} parent=1 // pred_check
      _
    $region7: #{lstm_att_forward.1} parent=1 // pred_check_branch
      %27 = sbr.rel (0) target = $region9
    $region8: #{lstm_att_forward.1} parent=1 // pred_region
      %s29 = ssub.s32 1024, 1024
      %30 = vsyncadd [#allocation4], %s29
      %s31 = sshll.u32 [#allocation3], 4
      %s32 = int_to_ptr.vmem [resolvable:$true] %s31
      %37 = dma.hbm_to_vmem [thread:$0]  %s1, 1024, %s32, [#allocation4], 256, 256, 16
    $region9: #{lstm_att_forward.1} parent=1 // pred_fallthru
      _
    // Predicated region
    $region10: #{lstm_att_forward.1} parent=1 // pred_check
      _
    $region11: #{lstm_att_forward.1} parent=1 // pred_check_branch
      %39 = sbr.rel (0) target = $region13
    $region12: #{lstm_att_forward.1} parent=1 // pred_region
      _
    $region13: #{lstm_att_forward.1} parent=1 // pred_fallthru
      _
    // Predicated region
    $region14: #{lstm_att_forward.1} parent=1 // pred_check
      _
    $region15: #{lstm_att_forward.1} parent=1 // pred_check_branch
      %41 = sbr.rel (0) target = $region17
    $region16: #{lstm_att_forward.1} parent=1 // pred_region
      _
    $region17: #{lstm_att_forward.1} parent=1 // pred_fallthru
      _
    // Predicated region
    $region18: #{lstm_att_forward.1} parent=1 // pred_check
      _
    $region19: #{lstm_att_forward.1} parent=1 // pred_check_branch
      %43 = sbr.rel (0) target = $region21
    $region20: #{lstm_att_forward.1} parent=1 // pred_region
      _
    $region21: #{lstm_att_forward.1} parent=1 // pred_fallthru
      _
    // Predicated region
    $region22: #{lstm_att_forward.1} parent=1 // pred_check
      _
    $region23: #{lstm_att_forward.1} parent=1 // pred_check_branch
      %45 = sbr.rel (0) target = $region25
    $region24: #{lstm_att_forward.1} parent=1 // pred_region
      _
    $region25: #{lstm_att_forward.1} parent=1 // pred_fallthru
      _
    // Predicated region
    $region26: #{lstm_att_forward.1} parent=1 // pred_check
      _
    $region27: #{lstm_att_forward.1} parent=1 // pred_check_branch
      %47 = sbr.rel (0) target = $region29
    $region28: #{lstm_att_forward.1} parent=1 // pred_region
      _
    $region29: #{lstm_att_forward.1} parent=1 // pred_fallthru
      _
    // Predicated region
    $region30: #{lstm_att_forward.1} parent=1 // pred_check
      _
    $region31: #{lstm_att_forward.1} parent=1 // pred_check_branch
      %49 = sbr.rel (0) target = $region33
    $region32: #{lstm_att_forward.1} parent=1 // pred_region
      %s51 = ssub.s32 1024, 1024
      %52 = vsyncadd [#allocation7], %s51
      %s53 = sshll.u32 [#allocation6], 4
      %s54 = int_to_ptr.vmem [resolvable:$true] %s53
      %59 = dma.hbm_to_vmem [thread:$0]  %s7, 1024, %s54, [#allocation7], 128, 128, 8
    $region33: #{lstm_att_forward.1} parent=1 // pred_fallthru
      _
    // Predicated region
    $region34: #{lstm_att_forward.1} parent=1 // pred_check
      _
    $region35: #{lstm_att_forward.1} parent=1 // pred_check_branch
      %61 = sbr.rel (0) target = $region37
    $region36: #{lstm_att_forward.1} parent=1 // pred_region
      %s63 = ssub.s32 16, 16
      %64 = vsyncadd [#allocation7], %s63
      %s66 = sshll.u32 [#allocation8], 4
      %s67 = int_to_ptr.vmem [resolvable:$true] %s66
      %69 = dma.hbm_to_vmem [thread:$0]  %s8, 16, %s67, [#allocation7]
    $region37: #{lstm_att_forward.1} parent=1 // pred_fallthru
      _
    // Predicated region
    $region38: #{lstm_att_forward.1} parent=1 // pred_check
      _
    $region39: #{lstm_att_forward.1} parent=1 // pred_check_branch
      %71 = sbr.rel (0) target = $region41
    $region40: #{lstm_att_forward.1} parent=1 // pred_region
      %s73 = ssub.s32 16, 16
      %74 = vsyncadd [#allocation10], %s73
      %s76 = sshll.u32 [#allocation9], 4
      %s77 = int_to_ptr.vmem [resolvable:$true] %s76
      %79 = dma.hbm_to_vmem [thread:$0]  %s9, 16, %s77, [#allocation10]
    $region41: #{lstm_att_forward.1} parent=1 // pred_fallthru
      _
    // Predicated region
    $region42: #{lstm_att_forward.1} parent=1 // pred_check
      _
    $region43: #{lstm_att_forward.1} parent=1 // pred_check_branch
      %81 = sbr.rel (0) target = $region45
    $region44: #{lstm_att_forward.1} parent=1 // pred_region
      _
    $region45: #{lstm_att_forward.1} parent=1 // pred_fallthru
      _
    // Predicated region
    $region46: #{lstm_att_forward.1} parent=1 // pred_check
      _
    $region47: #{lstm_att_forward.1} parent=1 // pred_check_branch
      %83 = sbr.rel (0) target = $region49
    $region48: #{lstm_att_forward.1} parent=1 // pred_region
      _
    $region49: #{lstm_att_forward.1} parent=1 // pred_fallthru
      _
    // Predicated region
    $region50: #{lstm_att_forward.1} parent=1 // pred_check
      _
    $region51: #{lstm_att_forward.1} parent=1 // pred_check_branch
      %85 = sbr.rel (0) target = $region53
    $region52: #{lstm_att_forward.1} parent=1 // pred_region
      %s87 = ssub.s32 16, 16
      %88 = vsyncadd [#allocation10], %s87
      %s90 = sshll.u32 [#allocation11], 4
      %s91 = int_to_ptr.vmem [resolvable:$true] %s90
      %93 = dma.hbm_to_vmem [thread:$0]  %s12, 16, %s91, [#allocation10]
    $region53: #{lstm_att_forward.1} parent=1 // pred_fallthru
      _
    // Predicated region
    $region54: #{lstm_att_forward.1} parent=1 // pred_check
      _
    $region55: #{lstm_att_forward.1} parent=1 // pred_check_branch
      %95 = sbr.rel (0) target = $region57
    $region56: #{lstm_att_forward.1} parent=1 // pred_region
      %96 = dma.done [#allocation4], 1024
    $region57: #{lstm_att_forward.1} parent=1 // pred_fallthru
      _
    // Predicated region
    $region58: #{lstm_att_forward.1} parent=1 // pred_check
      _
    $region59: #{lstm_att_forward.1} parent=1 // pred_check_branch
      %98 = sbr.rel (0) target = $region61
    $region60: #{lstm_att_forward.1} parent=1 // pred_region
      %99 = dma.done [#allocation7], 1024
    $region61: #{lstm_att_forward.1} parent=1 // pred_fallthru
      _
    // Predicated region
    $region62: #{lstm_att_forward.1} parent=1 // pred_check
      _
    $region63: #{lstm_att_forward.1} parent=1 // pred_check_branch
      %101 = sbr.rel (0) target = $region65
    $region64: #{lstm_att_forward.1} parent=1 // pred_region
      %102 = dma.done [#allocation7], 16
    $region65: #{lstm_att_forward.1} parent=1 // pred_fallthru
      _
    // Predicated region
    $region66: #{lstm_att_forward.1} parent=1 // pred_check
      _
    $region67: #{lstm_att_forward.1} parent=1 // pred_check_branch
      %104 = sbr.rel (0) target = $region69
    $region68: #{lstm_att_forward.1} parent=1 // pred_region
      %105 = dma.done [#allocation10], 16
    $region69: #{lstm_att_forward.1} parent=1 // pred_fallthru
      _
    // Predicated region
    $region70: #{lstm_att_forward.1} parent=1 // pred_check
      _
    $region71: #{lstm_att_forward.1} parent=1 // pred_check_branch
      %107 = sbr.rel (0) target = $region73
    $region72: #{lstm_att_forward.1} parent=1 // pred_region
      %108 = dma.done [#allocation10], 16
    $region73: #{lstm_att_forward.1} parent=1 // pred_fallthru
      _
    %v110 = vld [vmem:[%s0] sm:$0x3]
    %v111 = vld [vmem:[%s0 + $0x2] sm:$0x3]
    %v112 = vld [vmem:[%s0 + $0x4] sm:$0x3]
    %v113 = vld [vmem:[%s0 + $0x6] sm:$0x3]
    %v114 = vld [vmem:[%s0 + $0x8] sm:$0x3]
    %v115 = vld [vmem:[%s0 + $0xa] sm:$0x3]
    %v116 = vld [vmem:[%s0 + $0xc] sm:$0x3]
    %v117 = vld [vmem:[%s0 + $0xe] sm:$0x3]
    %v118 = vlaneseq
    %v119 = vand.u32 %v118, 127
    %vm120 = vcmp.ge.s32.totalorder %v119, 64
    %vm121 = vcmp.lt.s32.totalorder %v119, 96
    %vm122 = vmand %vm120, %vm121
    %v123 = vld [vmem:[#allocation3] sm:$0xff]
    %v124 = vld [vmem:[#allocation3 + $0x8] sm:$0xff]
    %v125 = vld [vmem:[#allocation3 + $0x10] sm:$0xff]
    %v126 = vld [vmem:[#allocation3 + $0x18] sm:$0xff]
    %v127 = vld [vmem:[#allocation3 + $0x20] sm:$0xff]
    %v128 = vld [vmem:[#allocation3 + $0x28] sm:$0xff]
    %v129 = vld [vmem:[#allocation3 + $0x30] sm:$0xff]
    %v130 = vld [vmem:[#allocation3 + $0x38] sm:$0xff]
    %v131 = vld [vmem:[%s2] sm:$0xff]
    %v132 = vld [vmem:[%s2 + $0x8] sm:$0xff]
    %v133 = vld [vmem:[%s2 + $0x10] sm:$0xff]
    %v134 = vld [vmem:[%s2 + $0x18] sm:$0xff]
    %v135 = vld [vmem:[%s2 + $0x20] sm:$0xff]
    %v136 = vld [vmem:[%s2 + $0x28] sm:$0xff]
    %v137 = vld [vmem:[%s2 + $0x30] sm:$0xff]
    %v138 = vld [vmem:[%s2 + $0x38] sm:$0xff]
    %v139 = vld [vmem:[%s2 + $0x40] sm:$0xff]
    %v140 = vld [vmem:[%s2 + $0x48] sm:$0xff]
    %v141 = vld [vmem:[%s2 + $0x50] sm:$0xff]
    %v142 = vld [vmem:[%s2 + $0x58] sm:$0xff]
    %v143 = vld [vmem:[%s2 + $0x60] sm:$0xff]
    %v144 = vld [vmem:[%s2 + $0x68] sm:$0xff]
    %v145 = vld [vmem:[%s2 + $0x70] sm:$0xff]
    %v146 = vld [vmem:[%s2 + $0x78] sm:$0xff]
    %v147 = vld [vmem:[%s3] sm:$0x3]
    %v148 = vpack.c.bf16 %v110, %v110
    %v149 = vpack.c.bf16 %v111, %v111
    %v150 = vpack.c.bf16 %v112, %v112
    %v151 = vpack.c.bf16 %v113, %v113
    %v152 = vpack.c.bf16 %v114, %v114
    %v153 = vpack.c.bf16 %v115, %v115
    %v154 = vpack.c.bf16 %v116, %v116
    %v155 = vpack.c.bf16 %v117, %v117
    %v156 = vpack.c.bf16 %v125, %v123
    %v157 = vpack.c.bf16 %v126, %v124
    %v158 = vpack.c.bf16 %v129, %v127
    %v159 = vpack.c.bf16 %v130, %v128
    %v161 = vlaneseq
    %v162 = vshrl.u32 %v161, 7
    %v163 = vsub.s32 0, %v162
    %v164 = vrot.slane %v147, %v163
    %v165 = vlaneseq
    %v166 = vshrl.u32 %v165, 7
    %v167 = vsub.s32 1, %v166
    %v168 = vrot.slane %v147, %v167
    %v169 = vcombine.low %v164, %v168
    %v171 = vunpack.c.l.s4 1983009808
    %v172 = vunpack.c.0.s8 %v171
    %v173 = vlaneseq
    %v174 = vshrl.u32 %v173, 7
    %v175 = vsub.s32 %v172, %v174
    %v176 = vrot.slane %v169, %v175
    %v185 = vcombine.low %v148, %v149
    %v186 = vcombine.low %v150, %v151
    %v187 = vcombine.low %v152, %v153
    %v188 = vcombine.low %v154, %v155
    %v190 = vunpack.c.l.s4 1966171168
    %v191 = vunpack.c.0.s8 %v190
    %v192 = vlaneseq
    %v193 = vshrl.u32 %v192, 7
    %v194 = vsub.s32 %v191, %v193
    %v195 = vrot.slane %v185, %v194
    %v197 = vunpack.c.l.s4 1966171168
    %v198 = vunpack.c.0.s8 %v197
    %v199 = vlaneseq
    %v200 = vshrl.u32 %v199, 7
    %v201 = vsub.s32 %v198, %v200
    %v202 = vrot.slane %v186, %v201
    %v204 = vunpack.c.l.s4 1966171168
    %v205 = vunpack.c.0.s8 %v204
    %v206 = vlaneseq
    %v207 = vshrl.u32 %v206, 7
    %v208 = vsub.s32 %v205, %v207
    %v209 = vrot.slane %v187, %v208
    %v211 = vunpack.c.l.s4 1966171168
    %v212 = vunpack.c.0.s8 %v211
    %v213 = vlaneseq
    %v214 = vshrl.u32 %v213, 7
    %v215 = vsub.s32 %v212, %v214
    %v216 = vrot.slane %v188, %v215
    %v217 = vcombine.low %v195, %v202
    %v218 = vcombine.low %v209, %v216
    %v220 = vunpack.c.l.s4 1966171168
    %v221 = vunpack.c.0.s8 %v220
    %v222 = vlaneseq
    %v223 = vshrl.u32 %v222, 7
    %v224 = vsub.s32 %v221, %v223
    %v225 = vrot.slane %v217, %v224
    %v227 = vunpack.c.l.s4 1966171168
    %v228 = vunpack.c.0.s8 %v227
    %v229 = vlaneseq
    %v230 = vshrl.u32 %v229, 7
    %v231 = vsub.s32 %v228, %v230
    %v232 = vrot.slane %v218, %v231
    %v233 = vcombine.low %v225, %v232
    %v234 = vcombine.low %v176, %v176
    %v236 = vunpack.c.l.s4 1983009808
    %v237 = vunpack.c.0.s8 %v236
    %v238 = vlaneseq
    %v239 = vshrl.u32 %v238, 7
    %v240 = vsub.s32 %v237, %v239
    %v241 = vrot.slane %v234, %v240
    %v242 = vcombine.low %v241, %v241
    %v243 = vcombine.high %v241, %v241
    %vm246 = vcmask 261120
    %v248 = vsel %vm246, %v233, 0
    %250 = vmatprep.subr.bf16.mxu0 0
    %251 = vmatpush1.bf16.msra.mxu0 0
    %252 = vmatprep.subr.bf16.mxu0 0
    %253 = vmatpush1.bf16.msra.mxu0 0
    %254 = vmatprep.subr.bf16.mxu0 0
    %255 = vmatpush1.bf16.msra.mxu0 0
    %256 = vmatprep.subr.bf16.mxu0 0
    %257 = vmatpush1.bf16.msra.mxu0 0
    %258 = vmatprep.subr.bf16.mxu0 0
    %259 = vmatpush1.bf16.msra.mxu0 0
    %260 = vmatprep.subr.bf16.mxu0 0
    %261 = vmatpush1.bf16.msra.mxu0 0
    %262 = vmatprep.subr.bf16.mxu0 %v159
    %263 = vmatpush1.bf16.msra.mxu0 %v158
    %264 = vmatprep.subr.bf16.mxu0 %v157
    %265 = vmatpush1.bf16.msra.mxu0 %v156
    %266 = vmatprep.subr.bf16.mxu0 0
    %267 = vmatpush2.bf16.msra.mxu0 0
    %268 = vmatprep.subr.bf16.mxu0 0
    %269 = vmatpush2.bf16.msra.mxu0 0
    %270 = vmatprep.subr.bf16.mxu0 0
    %271 = vmatpush2.bf16.msra.mxu0 0
    %272 = vmatprep.subr.bf16.mxu0 0
    %273 = vmatpush2.bf16.msra.mxu0 0
    %274 = vmatprep.subr.bf16.mxu0 0
    %275 = vmatpush2.bf16.msra.mxu0 0
    %276 = vmatprep.subr.bf16.mxu0 0
    %277 = vmatpush2.bf16.msra.mxu0 0
    %278 = vmatprep.subr.bf16.mxu0 0
    %279 = vmatpush2.bf16.msra.mxu0 0
    %280 = vmatprep.subr.bf16.mxu0 0
    %281 = vmatpush2.bf16.msra.mxu0 0
    %282 = vmatprep.mubr.bf16.mxu0 0
    %283 = vmatmul.mubr.bf16.gmra.mxu0 %v248
    %v284 = vpop.f32.mrf.mxu0
    %v285 = vadd.f32 %v242, %v284
    %v286 = vpop.f32.mrf.mxu0
    %v287 = vadd.f32 %v243, %v286
    %v288 = vpop.f32.mrf.mxu0
    %v289 = vadd.f32 %v242, %v288
    %v290 = vpop.f32.mrf.mxu0
    %v291 = vadd.f32 %v243, %v290
    %292 = vdwg.mxu0
    %v297 = vcombine.low %v285, %v287
    %v298 = vcombine.high %v285, %v287
    %v300 = vunpack.c.l.s4 1983009808
    %v301 = vunpack.c.0.s8 %v300
    %v302 = vlaneseq
    %v303 = vshrl.u32 %v302, 7
    %v304 = vsub.s32 %v301, %v303
    %v305 = vrot.slane %v297, %v304
    %v307 = vunpack.c.l.s4 1983009808
    %v308 = vunpack.c.0.s8 %v307
    %v309 = vlaneseq
    %v310 = vshrl.u32 %v309, 7
    %v311 = vsub.s32 %v308, %v310
    %v312 = vrot.slane %v298, %v311
    %v313 = vcombine.high %v305, %v305
    %v314 = vcombine.high %v312, %v312
    %v315 = vcombine.low %v289, %v291
    %v316 = vcombine.high %v289, %v291
    %v318 = vunpack.c.l.s4 1983009808
    %v319 = vunpack.c.0.s8 %v318
    %v320 = vlaneseq
    %v321 = vshrl.u32 %v320, 7
    %v322 = vsub.s32 %v319, %v321
    %v323 = vrot.slane %v315, %v322
    %v325 = vunpack.c.l.s4 1983009808
    %v326 = vunpack.c.0.s8 %v325
    %v327 = vlaneseq
    %v328 = vshrl.u32 %v327, 7
    %v329 = vsub.s32 %v326, %v328
    %v330 = vrot.slane %v316, %v329
    %v331 = vcombine.high %v323, %v323
    %v332 = vcombine.high %v330, %v330
    %v341 = vpack.c.bf16 %v133, %v131
    %v342 = vpack.c.bf16 %v134, %v132
    %v343 = vpack.c.bf16 %v137, %v135
    %v344 = vpack.c.bf16 %v138, %v136
    %v345 = vpack.c.bf16 %v141, %v139
    %v346 = vpack.c.bf16 %v142, %v140
    %v347 = vpack.c.bf16 %v145, %v143
    %v348 = vpack.c.bf16 %v146, %v144
    %v349 = vpack.c.bf16 0.0, 0.0
    %vm350 = vcmask 523264
    %v352 = vsel %vm350, %v349, 0
    %354 = vmatprep.subr.bf16.mxu0 0
    %355 = vmatpush1.bf16.msra.mxu0 0
    %356 = vmatprep.subr.bf16.mxu0 0
    %357 = vmatpush1.bf16.msra.mxu0 0
    %358 = vmatprep.subr.bf16.mxu0 0
    %359 = vmatpush1.bf16.msra.mxu0 0
    %360 = vmatprep.subr.bf16.mxu0 0
    %361 = vmatpush1.bf16.msra.mxu0 0
    %362 = vmatprep.subr.bf16.mxu0 %v348
    %363 = vmatpush1.bf16.msra.mxu0 %v347
    %364 = vmatprep.subr.bf16.mxu0 %v346
    %365 = vmatpush1.bf16.msra.mxu0 %v345
    %366 = vmatprep.subr.bf16.mxu0 %v344
    %367 = vmatpush1.bf16.msra.mxu0 %v343
    %368 = vmatprep.subr.bf16.mxu0 %v342
    %369 = vmatpush1.bf16.msra.mxu0 %v341
    %370 = vmatprep.subr.bf16.mxu0 0
    %371 = vmatpush2.bf16.msra.mxu0 0
    %372 = vmatprep.subr.bf16.mxu0 0
    %373 = vmatpush2.bf16.msra.mxu0 0
    %374 = vmatprep.subr.bf16.mxu0 0
    %375 = vmatpush2.bf16.msra.mxu0 0
    %376 = vmatprep.subr.bf16.mxu0 0
    %377 = vmatpush2.bf16.msra.mxu0 0
    %378 = vmatprep.subr.bf16.mxu0 0
    %379 = vmatpush2.bf16.msra.mxu0 0
    %380 = vmatprep.subr.bf16.mxu0 0
    %381 = vmatpush2.bf16.msra.mxu0 0
    %382 = vmatprep.subr.bf16.mxu0 0
    %383 = vmatpush2.bf16.msra.mxu0 0
    %384 = vmatprep.subr.bf16.mxu0 0
    %385 = vmatpush2.bf16.msra.mxu0 0
    %386 = vmatprep.mubr.bf16.mxu0 0
    %387 = vmatmul.mubr.bf16.gmra.mxu0 %v352
    %v388 = vpop.f32.mrf.mxu0
    %v389 = vadd.f32 0.0, %v388
    %v390 = vpop.f32.mrf.mxu0
    %v391 = vadd.f32 0.0, %v390
    %v392 = vpop.f32.mrf.mxu0
    %v393 = vpop.f32.mrf.mxu0
    %394 = vdwg.mxu0
    %v395 = vadd.f32 %v305, %v389
    %v396 = vtanh.pop %v395
    %v397 = vxor.u32 %v395, 2147483648
    %v398 = vmul.f32 %v397, 1.442695
    %v399 = vpow.pop %v398
    %v400 = vadd.f32 %v399, 1.0
    %v401 = vrcp.pop %v400
    %v402 = vmul.f32 1.0, %v401
    %v403 = vsel %vm122, %v396, %v402
    %v404 = vmul.f32 %v403, 0.0
    %406 = vrot.lane.b32.xlu0 %v403, 64
    %v407 = vpop.permute.xlu0 %406
    %v409 = vmul.f32 %v403, %v407
    %411 = vrot.lane.b32.xlu0 %v409, 32
    %v412 = vpop.permute.xlu0 %411
    %v414 = vadd.f32 %v404, %v412
    %v415 = vtanh.pop %v414
    %417 = vrot.lane.b32.xlu0 %v415, 64
    %v418 = vpop.permute.xlu0 %417
    %v420 = vmul.f32 %v403, %v418
    %v421 = vrot.slane %v332, 2
    %v423 = vadd.f32 %v421, %v391
    %v424 = vtanh.pop %v423
    %v425 = vxor.u32 %v423, 2147483648
    %v426 = vmul.f32 %v425, 1.442695
    %v427 = vpow.pop %v426
    %v428 = vadd.f32 %v427, 1.0
    %v429 = vrcp.pop %v428
    %v430 = vmul.f32 1.0, %v429
    %v431 = vsel %vm122, %v424, %v430
    %v432 = vmul.f32 %v431, 0.0
    %434 = vrot.lane.b32.xlu0 %v431, 64
    %v435 = vpop.permute.xlu0 %434
    %v437 = vmul.f32 %v431, %v435
    %439 = vrot.lane.b32.xlu0 %v437, 32
    %v440 = vpop.permute.xlu0 %439
    %v442 = vadd.f32 %v432, %v440
    %v443 = vtanh.pop %v442
    %445 = vrot.lane.b32.xlu0 %v443, 64
    %v446 = vpop.permute.xlu0 %445
    %v448 = vmul.f32 %v431, %v446
    %450 = vrot.lane.b32.xlu0 %v420, 32
    %v451 = vpop.permute.xlu0 %450
    %454 = vrot.lane.b32.xlu0 %v448, 64
    %v455 = vpop.permute.xlu0 %454
    %v457 = vsel %vm246, %v451, %v455
    %v458 = vpack.c.bf16 %v457, %v457
    %v460 = vsel %vm350, %v458, 0
    %462 = vmatprep.subr.bf16.mxu0 0
    %463 = vmatpush1.bf16.msra.mxu0 0
    %464 = vmatprep.subr.bf16.mxu0 0
    %465 = vmatpush1.bf16.msra.mxu0 0
    %466 = vmatprep.subr.bf16.mxu0 0
    %467 = vmatpush1.bf16.msra.mxu0 0
    %468 = vmatprep.subr.bf16.mxu0 0
    %469 = vmatpush1.bf16.msra.mxu0 0
    %470 = vmatprep.subr.bf16.mxu0 %v348
    %471 = vmatpush1.bf16.msra.mxu0 %v347
    %472 = vmatprep.subr.bf16.mxu0 %v346
    %473 = vmatpush1.bf16.msra.mxu0 %v345
    %474 = vmatprep.subr.bf16.mxu0 %v344
    %475 = vmatpush1.bf16.msra.mxu0 %v343
    %476 = vmatprep.subr.bf16.mxu0 %v342
    %477 = vmatpush1.bf16.msra.mxu0 %v341
    %478 = vmatprep.subr.bf16.mxu0 0
    %479 = vmatpush2.bf16.msra.mxu0 0
    %480 = vmatprep.subr.bf16.mxu0 0
    %481 = vmatpush2.bf16.msra.mxu0 0
    %482 = vmatprep.subr.bf16.mxu0 0
    %483 = vmatpush2.bf16.msra.mxu0 0
    %484 = vmatprep.subr.bf16.mxu0 0
    %485 = vmatpush2.bf16.msra.mxu0 0
    %486 = vmatprep.subr.bf16.mxu0 0
    %487 = vmatpush2.bf16.msra.mxu0 0
    %488 = vmatprep.subr.bf16.mxu0 0
    %489 = vmatpush2.bf16.msra.mxu0 0
    %490 = vmatprep.subr.bf16.mxu0 0
    %491 = vmatpush2.bf16.msra.mxu0 0
    %492 = vmatprep.subr.bf16.mxu0 0
    %493 = vmatpush2.bf16.msra.mxu0 0
    %494 = vmatprep.mubr.bf16.mxu0 0
    %495 = vmatmul.mubr.bf16.gmra.mxu0 %v460
    %v496 = vpop.f32.mrf.mxu0
    %v497 = vadd.f32 0.0, %v496
    %v498 = vpop.f32.mrf.mxu0
    %v499 = vadd.f32 0.0, %v498
    %v500 = vpop.f32.mrf.mxu0
    %v501 = vpop.f32.mrf.mxu0
    %502 = vdwg.mxu0
    %v503 = vadd.f32 %v313, %v497
    %v504 = vtanh.pop %v503
    %v505 = vxor.u32 %v503, 2147483648
    %v506 = vmul.f32 %v505, 1.442695
    %v507 = vpow.pop %v506
    %v508 = vadd.f32 %v507, 1.0
    %v509 = vrcp.pop %v508
    %v510 = vmul.f32 1.0, %v509
    %v511 = vsel %vm122, %v504, %v510
    %v512 = vmul.f32 %v511, %v414
    %514 = vrot.lane.b32.xlu0 %v511, 64
    %v515 = vpop.permute.xlu0 %514
    %v517 = vmul.f32 %v511, %v515
    %519 = vrot.lane.b32.xlu0 %v517, 32
    %v520 = vpop.permute.xlu0 %519
    %v522 = vadd.f32 %v512, %v520
    %v523 = vtanh.pop %v522
    %525 = vrot.lane.b32.xlu0 %v523, 64
    %v526 = vpop.permute.xlu0 %525
    %v528 = vmul.f32 %v511, %v526
    %v529 = vrot.slane %v330, 2
    %v531 = vadd.f32 %v529, %v499
    %v532 = vtanh.pop %v531
    %v533 = vxor.u32 %v531, 2147483648
    %v534 = vmul.f32 %v533, 1.442695
    %v535 = vpow.pop %v534
    %v536 = vadd.f32 %v535, 1.0
    %v537 = vrcp.pop %v536
    %v538 = vmul.f32 1.0, %v537
    %v539 = vsel %vm122, %v532, %v538
    %v540 = vmul.f32 %v539, %v442
    %542 = vrot.lane.b32.xlu0 %v539, 64
    %v543 = vpop.permute.xlu0 %542
    %v545 = vmul.f32 %v539, %v543
    %547 = vrot.lane.b32.xlu0 %v545, 32
    %v548 = vpop.permute.xlu0 %547
    %v550 = vadd.f32 %v540, %v548
    %v551 = vtanh.pop %v550
    %553 = vrot.lane.b32.xlu0 %v551, 64
    %v554 = vpop.permute.xlu0 %553
    %v556 = vmul.f32 %v539, %v554
    %558 = vrot.lane.b32.xlu0 %v528, 32
    %v559 = vpop.permute.xlu0 %558
    %562 = vrot.lane.b32.xlu0 %v556, 64
    %v563 = vpop.permute.xlu0 %562
    %v565 = vsel %vm246, %v559, %v563
    %v566 = vpack.c.bf16 %v565, %v565
    %v568 = vsel %vm350, %v566, 0
    %570 = vmatprep.subr.bf16.mxu0 0
    %571 = vmatpush1.bf16.msra.mxu0 0
    %572 = vmatprep.subr.bf16.mxu0 0
    %573 = vmatpush1.bf16.msra.mxu0 0
    %574 = vmatprep.subr.bf16.mxu0 0
    %575 = vmatpush1.bf16.msra.mxu0 0
    %576 = vmatprep.subr.bf16.mxu0 0
    %577 = vmatpush1.bf16.msra.mxu0 0
    %578 = vmatprep.subr.bf16.mxu0 %v348
    %579 = vmatpush1.bf16.msra.mxu0 %v347
    %580 = vmatprep.subr.bf16.mxu0 %v346
    %581 = vmatpush1.bf16.msra.mxu0 %v345
    %582 = vmatprep.subr.bf16.mxu0 %v344
    %583 = vmatpush1.bf16.msra.mxu0 %v343
    %584 = vmatprep.subr.bf16.mxu0 %v342
    %585 = vmatpush1.bf16.msra.mxu0 %v341
    %586 = vmatprep.subr.bf16.mxu0 0
    %587 = vmatpush2.bf16.msra.mxu0 0
    %588 = vmatprep.subr.bf16.mxu0 0
    %589 = vmatpush2.bf16.msra.mxu0 0
    %590 = vmatprep.subr.bf16.mxu0 0
    %591 = vmatpush2.bf16.msra.mxu0 0
    %592 = vmatprep.subr.bf16.mxu0 0
    %593 = vmatpush2.bf16.msra.mxu0 0
    %594 = vmatprep.subr.bf16.mxu0 0
    %595 = vmatpush2.bf16.msra.mxu0 0
    %596 = vmatprep.subr.bf16.mxu0 0
    %597 = vmatpush2.bf16.msra.mxu0 0
    %598 = vmatprep.subr.bf16.mxu0 0
    %599 = vmatpush2.bf16.msra.mxu0 0
    %600 = vmatprep.subr.bf16.mxu0 0
    %601 = vmatpush2.bf16.msra.mxu0 0
    %602 = vmatprep.mubr.bf16.mxu0 0
    %603 = vmatmul.mubr.bf16.gmra.mxu0 %v568
    %v604 = vpop.f32.mrf.mxu0
    %v605 = vadd.f32 0.0, %v604
    %v606 = vpop.f32.mrf.mxu0
    %v607 = vadd.f32 0.0, %v606
    %v608 = vpop.f32.mrf.mxu0
    %v609 = vpop.f32.mrf.mxu0
    %610 = vdwg.mxu0
    %v611 = vadd.f32 %v312, %v605
    %v612 = vtanh.pop %v611
    %v613 = vxor.u32 %v611, 2147483648
    %v614 = vmul.f32 %v613, 1.442695
    %v615 = vpow.pop %v614
    %v616 = vadd.f32 %v615, 1.0
    %v617 = vrcp.pop %v616
    %v618 = vmul.f32 1.0, %v617
    %v619 = vsel %vm122, %v612, %v618
    %v620 = vmul.f32 %v619, %v522
    %622 = vrot.lane.b32.xlu0 %v619, 64
    %v623 = vpop.permute.xlu0 %622
    %v625 = vmul.f32 %v619, %v623
    %627 = vrot.lane.b32.xlu0 %v625, 32
    %v628 = vpop.permute.xlu0 %627
    %v630 = vadd.f32 %v620, %v628
    %v631 = vtanh.pop %v630
    %633 = vrot.lane.b32.xlu0 %v631, 64
    %v634 = vpop.permute.xlu0 %633
    %v636 = vmul.f32 %v619, %v634
    %v637 = vrot.slane %v331, 2
    %v639 = vadd.f32 %v637, %v607
    %v640 = vtanh.pop %v639
    %v641 = vxor.u32 %v639, 2147483648
    %v642 = vmul.f32 %v641, 1.442695
    %v643 = vpow.pop %v642
    %v644 = vadd.f32 %v643, 1.0
    %v645 = vrcp.pop %v644
    %v646 = vmul.f32 1.0, %v645
    %v647 = vsel %vm122, %v640, %v646
    %v648 = vmul.f32 %v647, %v550
    %650 = vrot.lane.b32.xlu0 %v647, 64
    %v651 = vpop.permute.xlu0 %650
    %v653 = vmul.f32 %v647, %v651
    %655 = vrot.lane.b32.xlu0 %v653, 32
    %v656 = vpop.permute.xlu0 %655
    %v658 = vadd.f32 %v648, %v656
    %v659 = vtanh.pop %v658
    %661 = vrot.lane.b32.xlu0 %v659, 64
    %v662 = vpop.permute.xlu0 %661
    %v664 = vmul.f32 %v647, %v662
    %666 = vrot.lane.b32.xlu0 %v636, 32
    %v667 = vpop.permute.xlu0 %666
    %670 = vrot.lane.b32.xlu0 %v664, 64
    %v671 = vpop.permute.xlu0 %670
    %v673 = vsel %vm246, %v667, %v671
    %v674 = vpack.c.bf16 %v673, %v673
    %v676 = vsel %vm350, %v674, 0
    %678 = vmatprep.subr.bf16.mxu0 0
    %679 = vmatpush1.bf16.msra.mxu0 0
    %680 = vmatprep.subr.bf16.mxu0 0
    %681 = vmatpush1.bf16.msra.mxu0 0
    %682 = vmatprep.subr.bf16.mxu0 0
    %683 = vmatpush1.bf16.msra.mxu0 0
    %684 = vmatprep.subr.bf16.mxu0 0
    %685 = vmatpush1.bf16.msra.mxu0 0
    %686 = vmatprep.subr.bf16.mxu0 %v348
    %687 = vmatpush1.bf16.msra.mxu0 %v347
    %688 = vmatprep.subr.bf16.mxu0 %v346
    %689 = vmatpush1.bf16.msra.mxu0 %v345
    %690 = vmatprep.subr.bf16.mxu0 %v344
    %691 = vmatpush1.bf16.msra.mxu0 %v343
    %692 = vmatprep.subr.bf16.mxu0 %v342
    %693 = vmatpush1.bf16.msra.mxu0 %v341
    %694 = vmatprep.subr.bf16.mxu0 0
    %695 = vmatpush2.bf16.msra.mxu0 0
    %696 = vmatprep.subr.bf16.mxu0 0
    %697 = vmatpush2.bf16.msra.mxu0 0
    %698 = vmatprep.subr.bf16.mxu0 0
    %699 = vmatpush2.bf16.msra.mxu0 0
    %700 = vmatprep.subr.bf16.mxu0 0
    %701 = vmatpush2.bf16.msra.mxu0 0
    %702 = vmatprep.subr.bf16.mxu0 0
    %703 = vmatpush2.bf16.msra.mxu0 0
    %704 = vmatprep.subr.bf16.mxu0 0
    %705 = vmatpush2.bf16.msra.mxu0 0
    %706 = vmatprep.subr.bf16.mxu0 0
    %707 = vmatpush2.bf16.msra.mxu0 0
    %708 = vmatprep.subr.bf16.mxu0 0
    %709 = vmatpush2.bf16.msra.mxu0 0
    %710 = vmatprep.mubr.bf16.mxu0 0
    %711 = vmatmul.mubr.bf16.gmra.mxu0 %v676
    %v712 = vpop.f32.mrf.mxu0
    %v713 = vadd.f32 0.0, %v712
    %v714 = vpop.f32.mrf.mxu0
    %v715 = vadd.f32 0.0, %v714
    %v716 = vpop.f32.mrf.mxu0
    %v717 = vpop.f32.mrf.mxu0
    %718 = vdwg.mxu0
    %v719 = vadd.f32 %v314, %v713
    %v720 = vtanh.pop %v719
    %v721 = vxor.u32 %v719, 2147483648
    %v722 = vmul.f32 %v721, 1.442695
    %v723 = vpow.pop %v722
    %v724 = vadd.f32 %v723, 1.0
    %v725 = vrcp.pop %v724
    %v726 = vmul.f32 1.0, %v725
    %v727 = vsel %vm122, %v720, %v726
    %v728 = vmul.f32 %v727, %v630
    %730 = vrot.lane.b32.xlu0 %v727, 64
    %v731 = vpop.permute.xlu0 %730
    %v733 = vmul.f32 %v727, %v731
    %735 = vrot.lane.b32.xlu0 %v733, 32
    %v736 = vpop.permute.xlu0 %735
    %v738 = vadd.f32 %v728, %v736
    %v739 = vtanh.pop %v738
    %741 = vrot.lane.b32.xlu0 %v739, 64
    %v742 = vpop.permute.xlu0 %741
    %v744 = vmul.f32 %v727, %v742
    %v745 = vrot.slane %v323, 2
    %v747 = vadd.f32 %v745, %v715
    %v748 = vtanh.pop %v747
    %v749 = vxor.u32 %v747, 2147483648
    %v750 = vmul.f32 %v749, 1.442695
    %v751 = vpow.pop %v750
    %v752 = vadd.f32 %v751, 1.0
    %v753 = vrcp.pop %v752
    %v754 = vmul.f32 1.0, %v753
    %v755 = vsel %vm122, %v748, %v754
    %v756 = vmul.f32 %v755, %v658
    %758 = vrot.lane.b32.xlu0 %v755, 64
    %v759 = vpop.permute.xlu0 %758
    %v761 = vmul.f32 %v755, %v759
    %763 = vrot.lane.b32.xlu0 %v761, 32
    %v764 = vpop.permute.xlu0 %763
    %v766 = vadd.f32 %v756, %v764
    %v767 = vtanh.pop %v766
    %769 = vrot.lane.b32.xlu0 %v767, 64
    %v770 = vpop.permute.xlu0 %769
    %v772 = vmul.f32 %v755, %v770
    %774 = vrot.lane.b32.xlu0 %v744, 32
    %v775 = vpop.permute.xlu0 %774
    %778 = vrot.lane.b32.xlu0 %v772, 64
    %v779 = vpop.permute.xlu0 %778
    %v781 = vsel %vm246, %v775, %v779
    %v782 = vpack.c.bf16 %v781, %v781
    %v784 = vsel %vm350, %v782, 0
    %786 = vmatprep.subr.bf16.mxu0 0
    %787 = vmatpush1.bf16.msra.mxu0 0
    %788 = vmatprep.subr.bf16.mxu0 0
    %789 = vmatpush1.bf16.msra.mxu0 0
    %790 = vmatprep.subr.bf16.mxu0 0
    %791 = vmatpush1.bf16.msra.mxu0 0
    %792 = vmatprep.subr.bf16.mxu0 0
    %793 = vmatpush1.bf16.msra.mxu0 0
    %794 = vmatprep.subr.bf16.mxu0 %v348
    %795 = vmatpush1.bf16.msra.mxu0 %v347
    %796 = vmatprep.subr.bf16.mxu0 %v346
    %797 = vmatpush1.bf16.msra.mxu0 %v345
    %798 = vmatprep.subr.bf16.mxu0 %v344
    %799 = vmatpush1.bf16.msra.mxu0 %v343
    %800 = vmatprep.subr.bf16.mxu0 %v342
    %801 = vmatpush1.bf16.msra.mxu0 %v341
    %802 = vmatprep.subr.bf16.mxu0 0
    %803 = vmatpush2.bf16.msra.mxu0 0
    %804 = vmatprep.subr.bf16.mxu0 0
    %805 = vmatpush2.bf16.msra.mxu0 0
    %806 = vmatprep.subr.bf16.mxu0 0
    %807 = vmatpush2.bf16.msra.mxu0 0
    %808 = vmatprep.subr.bf16.mxu0 0
    %809 = vmatpush2.bf16.msra.mxu0 0
    %810 = vmatprep.subr.bf16.mxu0 0
    %811 = vmatpush2.bf16.msra.mxu0 0
    %812 = vmatprep.subr.bf16.mxu0 0
    %813 = vmatpush2.bf16.msra.mxu0 0
    %814 = vmatprep.subr.bf16.mxu0 0
    %815 = vmatpush2.bf16.msra.mxu0 0
    %816 = vmatprep.subr.bf16.mxu0 0
    %817 = vmatpush2.bf16.msra.mxu0 0
    %818 = vmatprep.mubr.bf16.mxu0 0
    %819 = vmatmul.mubr.bf16.gmra.mxu0 %v784
    %v820 = vpop.f32.mrf.mxu0
    %v821 = vadd.f32 0.0, %v820
    %v822 = vpop.f32.mrf.mxu0
    %v823 = vadd.f32 0.0, %v822
    %v824 = vpop.f32.mrf.mxu0
    %v825 = vpop.f32.mrf.mxu0
    %826 = vdwg.mxu0
    %v827 = vadd.f32 %v323, %v821
    %v828 = vtanh.pop %v827
    %v829 = vxor.u32 %v827, 2147483648
    %v830 = vmul.f32 %v829, 1.442695
    %v831 = vpow.pop %v830
    %v832 = vadd.f32 %v831, 1.0
    %v833 = vrcp.pop %v832
    %v834 = vmul.f32 1.0, %v833
    %v835 = vsel %vm122, %v828, %v834
    %v836 = vmul.f32 %v835, %v738
    %838 = vrot.lane.b32.xlu0 %v835, 64
    %v839 = vpop.permute.xlu0 %838
    %v841 = vmul.f32 %v835, %v839
    %843 = vrot.lane.b32.xlu0 %v841, 32
    %v844 = vpop.permute.xlu0 %843
    %v846 = vadd.f32 %v836, %v844
    %v847 = vtanh.pop %v846
    %849 = vrot.lane.b32.xlu0 %v847, 64
    %v850 = vpop.permute.xlu0 %849
    %v852 = vmul.f32 %v835, %v850
    %v853 = vrot.slane %v314, 2
    %v855 = vadd.f32 %v853, %v823
    %v856 = vtanh.pop %v855
    %v857 = vxor.u32 %v855, 2147483648
    %v858 = vmul.f32 %v857, 1.442695
    %v859 = vpow.pop %v858
    %v860 = vadd.f32 %v859, 1.0
    %v861 = vrcp.pop %v860
    %v862 = vmul.f32 1.0, %v861
    %v863 = vsel %vm122, %v856, %v862
    %v864 = vmul.f32 %v863, %v766
    %866 = vrot.lane.b32.xlu0 %v863, 64
    %v867 = vpop.permute.xlu0 %866
    %v869 = vmul.f32 %v863, %v867
    %871 = vrot.lane.b32.xlu0 %v869, 32
    %v872 = vpop.permute.xlu0 %871
    %v874 = vadd.f32 %v864, %v872
    %v875 = vtanh.pop %v874
    %877 = vrot.lane.b32.xlu0 %v875, 64
    %v878 = vpop.permute.xlu0 %877
    %v880 = vmul.f32 %v863, %v878
    %882 = vrot.lane.b32.xlu0 %v852, 32
    %v883 = vpop.permute.xlu0 %882
    %886 = vrot.lane.b32.xlu0 %v880, 64
    %v887 = vpop.permute.xlu0 %886
    %v889 = vsel %vm246, %v883, %v887
    %v890 = vpack.c.bf16 %v889, %v889
    %v892 = vsel %vm350, %v890, 0
    %894 = vmatprep.subr.bf16.mxu0 0
    %895 = vmatpush1.bf16.msra.mxu0 0
    %896 = vmatprep.subr.bf16.mxu0 0
    %897 = vmatpush1.bf16.msra.mxu0 0
    %898 = vmatprep.subr.bf16.mxu0 0
    %899 = vmatpush1.bf16.msra.mxu0 0
    %900 = vmatprep.subr.bf16.mxu0 0
    %901 = vmatpush1.bf16.msra.mxu0 0
    %902 = vmatprep.subr.bf16.mxu0 %v348
    %903 = vmatpush1.bf16.msra.mxu0 %v347
    %904 = vmatprep.subr.bf16.mxu0 %v346
    %905 = vmatpush1.bf16.msra.mxu0 %v345
    %906 = vmatprep.subr.bf16.mxu0 %v344
    %907 = vmatpush1.bf16.msra.mxu0 %v343
    %908 = vmatprep.subr.bf16.mxu0 %v342
    %909 = vmatpush1.bf16.msra.mxu0 %v341
    %910 = vmatprep.subr.bf16.mxu0 0
    %911 = vmatpush2.bf16.msra.mxu0 0
    %912 = vmatprep.subr.bf16.mxu0 0
    %913 = vmatpush2.bf16.msra.mxu0 0
    %914 = vmatprep.subr.bf16.mxu0 0
    %915 = vmatpush2.bf16.msra.mxu0 0
    %916 = vmatprep.subr.bf16.mxu0 0
    %917 = vmatpush2.bf16.msra.mxu0 0
    %918 = vmatprep.subr.bf16.mxu0 0
    %919 = vmatpush2.bf16.msra.mxu0 0
    %920 = vmatprep.subr.bf16.mxu0 0
    %921 = vmatpush2.bf16.msra.mxu0 0
    %922 = vmatprep.subr.bf16.mxu0 0
    %923 = vmatpush2.bf16.msra.mxu0 0
    %924 = vmatprep.subr.bf16.mxu0 0
    %925 = vmatpush2.bf16.msra.mxu0 0
    %926 = vmatprep.mubr.bf16.mxu0 0
    %927 = vmatmul.mubr.bf16.gmra.mxu0 %v892
    %v928 = vpop.f32.mrf.mxu0
    %v929 = vadd.f32 0.0, %v928
    %v930 = vpop.f32.mrf.mxu0
    %v931 = vadd.f32 0.0, %v930
    %v932 = vpop.f32.mrf.mxu0
    %v933 = vpop.f32.mrf.mxu0
    %934 = vdwg.mxu0
    %v935 = vadd.f32 %v331, %v929
    %v936 = vtanh.pop %v935
    %v937 = vxor.u32 %v935, 2147483648
    %v938 = vmul.f32 %v937, 1.442695
    %v939 = vpow.pop %v938
    %v940 = vadd.f32 %v939, 1.0
    %v941 = vrcp.pop %v940
    %v942 = vmul.f32 1.0, %v941
    %v943 = vsel %vm122, %v936, %v942
    %v944 = vmul.f32 %v943, %v846
    %946 = vrot.lane.b32.xlu0 %v943, 64
    %v947 = vpop.permute.xlu0 %946
    %v949 = vmul.f32 %v943, %v947
    %951 = vrot.lane.b32.xlu0 %v949, 32
    %v952 = vpop.permute.xlu0 %951
    %v954 = vadd.f32 %v944, %v952
    %v955 = vtanh.pop %v954
    %957 = vrot.lane.b32.xlu0 %v955, 64
    %v958 = vpop.permute.xlu0 %957
    %v960 = vmul.f32 %v943, %v958
    %v961 = vrot.slane %v312, 2
    %v963 = vadd.f32 %v961, %v931
    %v964 = vtanh.pop %v963
    %v965 = vxor.u32 %v963, 2147483648
    %v966 = vmul.f32 %v965, 1.442695
    %v967 = vpow.pop %v966
    %v968 = vadd.f32 %v967, 1.0
    %v969 = vrcp.pop %v968
    %v970 = vmul.f32 1.0, %v969
    %v971 = vsel %vm122, %v964, %v970
    %v972 = vmul.f32 %v971, %v874
    %974 = vrot.lane.b32.xlu0 %v971, 64
    %v975 = vpop.permute.xlu0 %974
    %v977 = vmul.f32 %v971, %v975
    %979 = vrot.lane.b32.xlu0 %v977, 32
    %v980 = vpop.permute.xlu0 %979
    %v982 = vadd.f32 %v972, %v980
    %v983 = vtanh.pop %v982
    %985 = vrot.lane.b32.xlu0 %v983, 64
    %v986 = vpop.permute.xlu0 %985
    %v988 = vmul.f32 %v971, %v986
    %990 = vrot.lane.b32.xlu0 %v960, 32
    %v991 = vpop.permute.xlu0 %990
    %994 = vrot.lane.b32.xlu0 %v988, 64
    %v995 = vpop.permute.xlu0 %994
    %v997 = vsel %vm246, %v991, %v995
    %v998 = vpack.c.bf16 %v997, %v997
    %v1000 = vsel %vm350, %v998, 0
    %1002 = vmatprep.subr.bf16.mxu0 0
    %1003 = vmatpush1.bf16.msra.mxu0 0
    %1004 = vmatprep.subr.bf16.mxu0 0
    %1005 = vmatpush1.bf16.msra.mxu0 0
    %1006 = vmatprep.subr.bf16.mxu0 0
    %1007 = vmatpush1.bf16.msra.mxu0 0
    %1008 = vmatprep.subr.bf16.mxu0 0
    %1009 = vmatpush1.bf16.msra.mxu0 0
    %1010 = vmatprep.subr.bf16.mxu0 %v348
    %1011 = vmatpush1.bf16.msra.mxu0 %v347
    %1012 = vmatprep.subr.bf16.mxu0 %v346
    %1013 = vmatpush1.bf16.msra.mxu0 %v345
    %1014 = vmatprep.subr.bf16.mxu0 %v344
    %1015 = vmatpush1.bf16.msra.mxu0 %v343
    %1016 = vmatprep.subr.bf16.mxu0 %v342
    %1017 = vmatpush1.bf16.msra.mxu0 %v341
    %1018 = vmatprep.subr.bf16.mxu0 0
    %1019 = vmatpush2.bf16.msra.mxu0 0
    %1020 = vmatprep.subr.bf16.mxu0 0
    %1021 = vmatpush2.bf16.msra.mxu0 0
    %1022 = vmatprep.subr.bf16.mxu0 0
    %1023 = vmatpush2.bf16.msra.mxu0 0
    %1024 = vmatprep.subr.bf16.mxu0 0
    %1025 = vmatpush2.bf16.msra.mxu0 0
    %1026 = vmatprep.subr.bf16.mxu0 0
    %1027 = vmatpush2.bf16.msra.mxu0 0
    %1028 = vmatprep.subr.bf16.mxu0 0
    %1029 = vmatpush2.bf16.msra.mxu0 0
    %1030 = vmatprep.subr.bf16.mxu0 0
    %1031 = vmatpush2.bf16.msra.mxu0 0
    %1032 = vmatprep.subr.bf16.mxu0 0
    %1033 = vmatpush2.bf16.msra.mxu0 0
    %1034 = vmatprep.mubr.bf16.mxu0 0
    %1035 = vmatmul.mubr.bf16.gmra.mxu0 %v1000
    %v1036 = vpop.f32.mrf.mxu0
    %v1037 = vadd.f32 0.0, %v1036
    %v1038 = vpop.f32.mrf.mxu0
    %v1039 = vadd.f32 0.0, %v1038
    %v1040 = vpop.f32.mrf.mxu0
    %v1041 = vpop.f32.mrf.mxu0
    %1042 = vdwg.mxu0
    %v1043 = vadd.f32 %v330, %v1037
    %v1044 = vtanh.pop %v1043
    %v1045 = vxor.u32 %v1043, 2147483648
    %v1046 = vmul.f32 %v1045, 1.442695
    %v1047 = vpow.pop %v1046
    %v1048 = vadd.f32 %v1047, 1.0
    %v1049 = vrcp.pop %v1048
    %v1050 = vmul.f32 1.0, %v1049
    %v1051 = vsel %vm122, %v1044, %v1050
    %v1052 = vmul.f32 %v1051, %v954
    %1054 = vrot.lane.b32.xlu0 %v1051, 64
    %v1055 = vpop.permute.xlu0 %1054
    %v1057 = vmul.f32 %v1051, %v1055
    %1059 = vrot.lane.b32.xlu0 %v1057, 32
    %v1060 = vpop.permute.xlu0 %1059
    %v1062 = vadd.f32 %v1052, %v1060
    %v1063 = vtanh.pop %v1062
    %1065 = vrot.lane.b32.xlu0 %v1063, 64
    %v1066 = vpop.permute.xlu0 %1065
    %v1068 = vmul.f32 %v1051, %v1066
    %v1069 = vrot.slane %v313, 2
    %v1071 = vadd.f32 %v1069, %v1039
    %v1072 = vtanh.pop %v1071
    %v1073 = vxor.u32 %v1071, 2147483648
    %v1074 = vmul.f32 %v1073, 1.442695
    %v1075 = vpow.pop %v1074
    %v1076 = vadd.f32 %v1075, 1.0
    %v1077 = vrcp.pop %v1076
    %v1078 = vmul.f32 1.0, %v1077
    %v1079 = vsel %vm122, %v1072, %v1078
    %v1080 = vmul.f32 %v1079, %v982
    %1082 = vrot.lane.b32.xlu0 %v1079, 64
    %v1083 = vpop.permute.xlu0 %1082
    %v1085 = vmul.f32 %v1079, %v1083
    %1087 = vrot.lane.b32.xlu0 %v1085, 32
    %v1088 = vpop.permute.xlu0 %1087
    %v1090 = vadd.f32 %v1080, %v1088
    %v1091 = vtanh.pop %v1090
    %1093 = vrot.lane.b32.xlu0 %v1091, 64
    %v1094 = vpop.permute.xlu0 %1093
    %v1096 = vmul.f32 %v1079, %v1094
    %1098 = vrot.lane.b32.xlu0 %v1068, 32
    %v1099 = vpop.permute.xlu0 %1098
    %1102 = vrot.lane.b32.xlu0 %v1096, 64
    %v1103 = vpop.permute.xlu0 %1102
    %v1105 = vsel %vm246, %v1099, %v1103
    %v1106 = vpack.c.bf16 %v1105, %v1105
    %v1108 = vsel %vm350, %v1106, 0
    %1110 = vmatprep.subr.bf16.mxu0 0
    %1111 = vmatpush1.bf16.msra.mxu0 0
    %1112 = vmatprep.subr.bf16.mxu0 0
    %1113 = vmatpush1.bf16.msra.mxu0 0
    %1114 = vmatprep.subr.bf16.mxu0 0
    %1115 = vmatpush1.bf16.msra.mxu0 0
    %1116 = vmatprep.subr.bf16.mxu0 0
    %1117 = vmatpush1.bf16.msra.mxu0 0
    %1118 = vmatprep.subr.bf16.mxu0 %v348
    %1119 = vmatpush1.bf16.msra.mxu0 %v347
    %1120 = vmatprep.subr.bf16.mxu0 %v346
    %1121 = vmatpush1.bf16.msra.mxu0 %v345
    %1122 = vmatprep.subr.bf16.mxu0 %v344
    %1123 = vmatpush1.bf16.msra.mxu0 %v343
    %1124 = vmatprep.subr.bf16.mxu0 %v342
    %1125 = vmatpush1.bf16.msra.mxu0 %v341
    %1126 = vmatprep.subr.bf16.mxu0 0
    %1127 = vmatpush2.bf16.msra.mxu0 0
    %1128 = vmatprep.subr.bf16.mxu0 0
    %1129 = vmatpush2.bf16.msra.mxu0 0
    %1130 = vmatprep.subr.bf16.mxu0 0
    %1131 = vmatpush2.bf16.msra.mxu0 0
    %1132 = vmatprep.subr.bf16.mxu0 0
    %1133 = vmatpush2.bf16.msra.mxu0 0
    %1134 = vmatprep.subr.bf16.mxu0 0
    %1135 = vmatpush2.bf16.msra.mxu0 0
    %1136 = vmatprep.subr.bf16.mxu0 0
    %1137 = vmatpush2.bf16.msra.mxu0 0
    %1138 = vmatprep.subr.bf16.mxu0 0
    %1139 = vmatpush2.bf16.msra.mxu0 0
    %1140 = vmatprep.subr.bf16.mxu0 0
    %1141 = vmatpush2.bf16.msra.mxu0 0
    %1142 = vmatprep.mubr.bf16.mxu0 0
    %1143 = vmatmul.mubr.bf16.gmra.mxu0 %v1108
    %v1144 = vpop.f32.mrf.mxu0
    %v1145 = vadd.f32 0.0, %v1144
    %v1146 = vpop.f32.mrf.mxu0
    %v1147 = vadd.f32 0.0, %v1146
    %v1148 = vpop.f32.mrf.mxu0
    %v1149 = vpop.f32.mrf.mxu0
    %1150 = vdwg.mxu0
    %v1151 = vadd.f32 %v332, %v1145
    %v1152 = vtanh.pop %v1151
    %v1153 = vxor.u32 %v1151, 2147483648
    %v1154 = vmul.f32 %v1153, 1.442695
    %v1155 = vpow.pop %v1154
    %v1156 = vadd.f32 %v1155, 1.0
    %v1157 = vrcp.pop %v1156
    %v1158 = vmul.f32 1.0, %v1157
    %v1159 = vsel %vm122, %v1152, %v1158
    %v1160 = vmul.f32 %v1159, %v1062
    %1162 = vrot.lane.b32.xlu0 %v1159, 64
    %v1163 = vpop.permute.xlu0 %1162
    %v1165 = vmul.f32 %v1159, %v1163
    %1167 = vrot.lane.b32.xlu0 %v1165, 32
    %v1168 = vpop.permute.xlu0 %1167
    %v1170 = vadd.f32 %v1160, %v1168
    %v1171 = vtanh.pop %v1170
    %1173 = vrot.lane.b32.xlu0 %v1171, 64
    %v1174 = vpop.permute.xlu0 %1173
    %v1176 = vmul.f32 %v1159, %v1174
    %v1177 = vrot.slane %v305, 2
    %v1179 = vadd.f32 %v1177, %v1147
    %v1180 = vtanh.pop %v1179
    %v1181 = vxor.u32 %v1179, 2147483648
    %v1182 = vmul.f32 %v1181, 1.442695
    %v1183 = vpow.pop %v1182
    %v1184 = vadd.f32 %v1183, 1.0
    %v1185 = vrcp.pop %v1184
    %v1186 = vmul.f32 1.0, %v1185
    %v1187 = vsel %vm122, %v1180, %v1186
    %v1188 = vmul.f32 %v1187, %v1090
    %1190 = vrot.lane.b32.xlu0 %v1187, 64
    %v1191 = vpop.permute.xlu0 %1190
    %v1193 = vmul.f32 %v1187, %v1191
    %1195 = vrot.lane.b32.xlu0 %v1193, 32
    %v1196 = vpop.permute.xlu0 %1195
    %v1198 = vadd.f32 %v1188, %v1196
    %v1199 = vtanh.pop %v1198
    %1201 = vrot.lane.b32.xlu0 %v1199, 64
    %v1202 = vpop.permute.xlu0 %1201
    %v1204 = vmul.f32 %v1187, %v1202
    %1206 = vrot.lane.b32.xlu0 %v1176, 32
    %v1207 = vpop.permute.xlu0 %1206
    %1210 = vrot.lane.b32.xlu0 %v1204, 64
    %v1211 = vpop.permute.xlu0 %1210
    %v1213 = vsel %vm246, %v451, %v1211
    %v1214 = vsel %vm246, %v559, %v1103
    %v1215 = vsel %vm246, %v667, %v995
    %v1216 = vsel %vm246, %v775, %v887
    %v1217 = vsel %vm246, %v883, %v779
    %v1218 = vsel %vm246, %v991, %v671
    %v1219 = vsel %vm246, %v1099, %v563
    %v1220 = vsel %vm246, %v1207, %v455
    %v1221 = vld [vmem:[%s4] sm:$0xff]
    %v1222 = vld [vmem:[%s4 + $0x8] sm:$0xff]
    %v1223 = vld [vmem:[%s4 + $0x10] sm:$0xff]
    %v1224 = vld [vmem:[%s4 + $0x18] sm:$0xff]
    %v1225 = vld [vmem:[%s4 + $0x20] sm:$0xff]
    %v1226 = vld [vmem:[%s4 + $0x28] sm:$0xff]
    %v1227 = vld [vmem:[%s4 + $0x30] sm:$0xff]
    %v1228 = vld [vmem:[%s4 + $0x38] sm:$0xff]
    %v1229 = vld [vmem:[%s4 + $0x40] sm:$0xff]
    %v1230 = vld [vmem:[%s4 + $0x48] sm:$0xff]
    %v1231 = vld [vmem:[%s4 + $0x50] sm:$0xff]
    %v1232 = vld [vmem:[%s4 + $0x58] sm:$0xff]
    %v1233 = vld [vmem:[%s4 + $0x60] sm:$0xff]
    %v1234 = vld [vmem:[%s4 + $0x68] sm:$0xff]
    %v1235 = vld [vmem:[%s4 + $0x70] sm:$0xff]
    %v1236 = vld [vmem:[%s4 + $0x78] sm:$0xff]
    %v1237 = vld [vmem:[%s5] sm:$0xff]
    %v1238 = vld [vmem:[%s5 + $0x8] sm:$0xff]
    %v1239 = vld [vmem:[%s5 + $0x10] sm:$0xff]
    %v1240 = vld [vmem:[%s5 + $0x18] sm:$0xff]
    %v1241 = vld [vmem:[%s5 + $0x20] sm:$0xff]
    %v1242 = vld [vmem:[%s5 + $0x28] sm:$0xff]
    %v1243 = vld [vmem:[%s5 + $0x30] sm:$0xff]
    %v1244 = vld [vmem:[%s5 + $0x38] sm:$0xff]
    %v1245 = vld [vmem:[%s5 + $0x40] sm:$0xff]
    %v1246 = vld [vmem:[%s5 + $0x48] sm:$0xff]
    %v1247 = vld [vmem:[%s5 + $0x50] sm:$0xff]
    %v1248 = vld [vmem:[%s5 + $0x58] sm:$0xff]
    %v1249 = vld [vmem:[%s5 + $0x60] sm:$0xff]
    %v1250 = vld [vmem:[%s5 + $0x68] sm:$0xff]
    %v1251 = vld [vmem:[%s5 + $0x70] sm:$0xff]
    %v1252 = vld [vmem:[%s5 + $0x78] sm:$0xff]
    %v1253 = vld [vmem:[%s6] sm:$0x3]
    %v1254 = vpack.c.bf16 %v1213, %v1213
    %v1255 = vpack.c.bf16 %v1214, %v1214
    %v1256 = vpack.c.bf16 %v1215, %v1215
    %v1257 = vpack.c.bf16 %v1216, %v1216
    %v1258 = vpack.c.bf16 %v1217, %v1217
    %v1259 = vpack.c.bf16 %v1218, %v1218
    %v1260 = vpack.c.bf16 %v1219, %v1219
    %v1261 = vpack.c.bf16 %v1220, %v1220
    %v1262 = vpack.c.bf16 %v1223, %v1221
    %v1263 = vpack.c.bf16 %v1224, %v1222
    %v1264 = vpack.c.bf16 %v1227, %v1225
    %v1265 = vpack.c.bf16 %v1228, %v1226
    %v1266 = vpack.c.bf16 %v1231, %v1229
    %v1267 = vpack.c.bf16 %v1232, %v1230
    %v1268 = vpack.c.bf16 %v1235, %v1233
    %v1269 = vpack.c.bf16 %v1236, %v1234
    %v1271 = vlaneseq
    %v1272 = vshrl.u32 %v1271, 7
    %v1273 = vsub.s32 0, %v1272
    %v1274 = vrot.slane %v1253, %v1273
    %v1275 = vlaneseq
    %v1276 = vshrl.u32 %v1275, 7
    %v1277 = vsub.s32 1, %v1276
    %v1278 = vrot.slane %v1253, %v1277
    %v1279 = vcombine.low %v1274, %v1278
    %v1281 = vunpack.c.l.s4 1983009808
    %v1282 = vunpack.c.0.s8 %v1281
    %v1283 = vlaneseq
    %v1284 = vshrl.u32 %v1283, 7
    %v1285 = vsub.s32 %v1282, %v1284
    %v1286 = vrot.slane %v1279, %v1285
    %v1295 = vcombine.low %v1254, %v1255
    %v1296 = vcombine.low %v1256, %v1257
    %v1297 = vcombine.low %v1258, %v1259
    %v1298 = vcombine.low %v1260, %v1261
    %v1300 = vunpack.c.l.s4 1966171168
    %v1301 = vunpack.c.0.s8 %v1300
    %v1302 = vlaneseq
    %v1303 = vshrl.u32 %v1302, 7
    %v1304 = vsub.s32 %v1301, %v1303
    %v1305 = vrot.slane %v1295, %v1304
    %v1307 = vunpack.c.l.s4 1966171168
    %v1308 = vunpack.c.0.s8 %v1307
    %v1309 = vlaneseq
    %v1310 = vshrl.u32 %v1309, 7
    %v1311 = vsub.s32 %v1308, %v1310
    %v1312 = vrot.slane %v1296, %v1311
    %v1314 = vunpack.c.l.s4 1966171168
    %v1315 = vunpack.c.0.s8 %v1314
    %v1316 = vlaneseq
    %v1317 = vshrl.u32 %v1316, 7
    %v1318 = vsub.s32 %v1315, %v1317
    %v1319 = vrot.slane %v1297, %v1318
    %v1321 = vunpack.c.l.s4 1966171168
    %v1322 = vunpack.c.0.s8 %v1321
    %v1323 = vlaneseq
    %v1324 = vshrl.u32 %v1323, 7
    %v1325 = vsub.s32 %v1322, %v1324
    %v1326 = vrot.slane %v1298, %v1325
    %v1327 = vcombine.low %v1305, %v1312
    %v1328 = vcombine.low %v1319, %v1326
    %v1330 = vunpack.c.l.s4 1966171168
    %v1331 = vunpack.c.0.s8 %v1330
    %v1332 = vlaneseq
    %v1333 = vshrl.u32 %v1332, 7
    %v1334 = vsub.s32 %v1331, %v1333
    %v1335 = vrot.slane %v1327, %v1334
    %v1337 = vunpack.c.l.s4 1966171168
    %v1338 = vunpack.c.0.s8 %v1337
    %v1339 = vlaneseq
    %v1340 = vshrl.u32 %v1339, 7
    %v1341 = vsub.s32 %v1338, %v1340
    %v1342 = vrot.slane %v1328, %v1341
    %v1343 = vcombine.low %v1335, %v1342
    %v1344 = vcombine.low %v1286, %v1286
    %v1346 = vunpack.c.l.s4 1983009808
    %v1347 = vunpack.c.0.s8 %v1346
    %v1348 = vlaneseq
    %v1349 = vshrl.u32 %v1348, 7
    %v1350 = vsub.s32 %v1347, %v1349
    %v1351 = vrot.slane %v1344, %v1350
    %v1352 = vcombine.low %v1351, %v1351
    %v1353 = vcombine.high %v1351, %v1351
    %v1357 = vsel %vm350, %v1343, 0
    %1359 = vmatprep.subr.bf16.mxu0 0
    %1360 = vmatpush1.bf16.msra.mxu0 0
    %1361 = vmatprep.subr.bf16.mxu0 0
    %1362 = vmatpush1.bf16.msra.mxu0 0
    %1363 = vmatprep.subr.bf16.mxu0 0
    %1364 = vmatpush1.bf16.msra.mxu0 0
    %1365 = vmatprep.subr.bf16.mxu0 0
    %1366 = vmatpush1.bf16.msra.mxu0 0
    %1367 = vmatprep.subr.bf16.mxu0 %v1269
    %1368 = vmatpush1.bf16.msra.mxu0 %v1268
    %1369 = vmatprep.subr.bf16.mxu0 %v1267
    %1370 = vmatpush1.bf16.msra.mxu0 %v1266
    %1371 = vmatprep.subr.bf16.mxu0 %v1265
    %1372 = vmatpush1.bf16.msra.mxu0 %v1264
    %1373 = vmatprep.subr.bf16.mxu0 %v1263
    %1374 = vmatpush1.bf16.msra.mxu0 %v1262
    %1375 = vmatprep.subr.bf16.mxu0 0
    %1376 = vmatpush2.bf16.msra.mxu0 0
    %1377 = vmatprep.subr.bf16.mxu0 0
    %1378 = vmatpush2.bf16.msra.mxu0 0
    %1379 = vmatprep.subr.bf16.mxu0 0
    %1380 = vmatpush2.bf16.msra.mxu0 0
    %1381 = vmatprep.subr.bf16.mxu0 0
    %1382 = vmatpush2.bf16.msra.mxu0 0
    %1383 = vmatprep.subr.bf16.mxu0 0
    %1384 = vmatpush2.bf16.msra.mxu0 0
    %1385 = vmatprep.subr.bf16.mxu0 0
    %1386 = vmatpush2.bf16.msra.mxu0 0
    %1387 = vmatprep.subr.bf16.mxu0 0
    %1388 = vmatpush2.bf16.msra.mxu0 0
    %1389 = vmatprep.subr.bf16.mxu0 0
    %1390 = vmatpush2.bf16.msra.mxu0 0
    %1391 = vmatprep.mubr.bf16.mxu0 0
    %1392 = vmatmul.mubr.bf16.gmra.mxu0 %v1357
    %v1393 = vpop.f32.mrf.mxu0
    %v1394 = vadd.f32 %v1352, %v1393
    %v1395 = vpop.f32.mrf.mxu0
    %v1396 = vadd.f32 %v1353, %v1395
    %v1397 = vpop.f32.mrf.mxu0
    %v1398 = vadd.f32 %v1352, %v1397
    %v1399 = vpop.f32.mrf.mxu0
    %v1400 = vadd.f32 %v1353, %v1399
    %1401 = vdwg.mxu0
    %v1406 = vcombine.low %v1394, %v1396
    %v1407 = vcombine.high %v1394, %v1396
    %v1409 = vunpack.c.l.s4 1983009808
    %v1410 = vunpack.c.0.s8 %v1409
    %v1411 = vlaneseq
    %v1412 = vshrl.u32 %v1411, 7
    %v1413 = vsub.s32 %v1410, %v1412
    %v1414 = vrot.slane %v1406, %v1413
    %v1416 = vunpack.c.l.s4 1983009808
    %v1417 = vunpack.c.0.s8 %v1416
    %v1418 = vlaneseq
    %v1419 = vshrl.u32 %v1418, 7
    %v1420 = vsub.s32 %v1417, %v1419
    %v1421 = vrot.slane %v1407, %v1420
    %v1422 = vcombine.high %v1414, %v1414
    %v1423 = vcombine.high %v1421, %v1421
    %v1424 = vcombine.low %v1398, %v1400
    %v1425 = vcombine.high %v1398, %v1400
    %v1427 = vunpack.c.l.s4 1983009808
    %v1428 = vunpack.c.0.s8 %v1427
    %v1429 = vlaneseq
    %v1430 = vshrl.u32 %v1429, 7
    %v1431 = vsub.s32 %v1428, %v1430
    %v1432 = vrot.slane %v1424, %v1431
    %v1434 = vunpack.c.l.s4 1983009808
    %v1435 = vunpack.c.0.s8 %v1434
    %v1436 = vlaneseq
    %v1437 = vshrl.u32 %v1436, 7
    %v1438 = vsub.s32 %v1435, %v1437
    %v1439 = vrot.slane %v1425, %v1438
    %v1440 = vcombine.high %v1432, %v1432
    %v1441 = vcombine.high %v1439, %v1439
    %v1450 = vpack.c.bf16 %v1239, %v1237
    %v1451 = vpack.c.bf16 %v1240, %v1238
    %v1452 = vpack.c.bf16 %v1243, %v1241
    %v1453 = vpack.c.bf16 %v1244, %v1242
    %v1454 = vpack.c.bf16 %v1247, %v1245
    %v1455 = vpack.c.bf16 %v1248, %v1246
    %v1456 = vpack.c.bf16 %v1251, %v1249
    %v1457 = vpack.c.bf16 %v1252, %v1250
    %1458 = vmatprep.subr.bf16.mxu0 0
    %1459 = vmatpush1.bf16.msra.mxu0 0
    %1460 = vmatprep.subr.bf16.mxu0 0
    %1461 = vmatpush1.bf16.msra.mxu0 0
    %1462 = vmatprep.subr.bf16.mxu0 0
    %1463 = vmatpush1.bf16.msra.mxu0 0
    %1464 = vmatprep.subr.bf16.mxu0 0
    %1465 = vmatpush1.bf16.msra.mxu0 0
    %1466 = vmatprep.subr.bf16.mxu0 %v1457
    %1467 = vmatpush1.bf16.msra.mxu0 %v1456
    %1468 = vmatprep.subr.bf16.mxu0 %v1455
    %1469 = vmatpush1.bf16.msra.mxu0 %v1454
    %1470 = vmatprep.subr.bf16.mxu0 %v1453
    %1471 = vmatpush1.bf16.msra.mxu0 %v1452
    %1472 = vmatprep.subr.bf16.mxu0 %v1451
    %1473 = vmatpush1.bf16.msra.mxu0 %v1450
    %1474 = vmatprep.subr.bf16.mxu0 0
    %1475 = vmatpush2.bf16.msra.mxu0 0
    %1476 = vmatprep.subr.bf16.mxu0 0
    %1477 = vmatpush2.bf16.msra.mxu0 0
    %1478 = vmatprep.subr.bf16.mxu0 0
    %1479 = vmatpush2.bf16.msra.mxu0 0
    %1480 = vmatprep.subr.bf16.mxu0 0
    %1481 = vmatpush2.bf16.msra.mxu0 0
    %1482 = vmatprep.subr.bf16.mxu0 0
    %1483 = vmatpush2.bf16.msra.mxu0 0
    %1484 = vmatprep.subr.bf16.mxu0 0
    %1485 = vmatpush2.bf16.msra.mxu0 0
    %1486 = vmatprep.subr.bf16.mxu0 0
    %1487 = vmatpush2.bf16.msra.mxu0 0
    %1488 = vmatprep.subr.bf16.mxu0 0
    %1489 = vmatpush2.bf16.msra.mxu0 0
    %1490 = vmatprep.mubr.bf16.mxu0 0
    %1491 = vmatmul.mubr.bf16.gmra.mxu0 %v352
    %v1492 = vpop.f32.mrf.mxu0
    %v1493 = vadd.f32 0.0, %v1492
    %v1494 = vpop.f32.mrf.mxu0
    %v1495 = vadd.f32 0.0, %v1494
    %v1496 = vpop.f32.mrf.mxu0
    %v1497 = vpop.f32.mrf.mxu0
    %1498 = vdwg.mxu0
    %v1499 = vadd.f32 %v1414, %v1493
    %v1500 = vtanh.pop %v1499
    %v1501 = vxor.u32 %v1499, 2147483648
    %v1502 = vmul.f32 %v1501, 1.442695
    %v1503 = vpow.pop %v1502
    %v1504 = vadd.f32 %v1503, 1.0
    %v1505 = vrcp.pop %v1504
    %v1506 = vmul.f32 1.0, %v1505
    %v1507 = vsel %vm122, %v1500, %v1506
    %v1508 = vmul.f32 %v1507, 0.0
    %1510 = vrot.lane.b32.xlu0 %v1507, 64
    %v1511 = vpop.permute.xlu0 %1510
    %v1513 = vmul.f32 %v1507, %v1511
    %1515 = vrot.lane.b32.xlu0 %v1513, 32
    %v1516 = vpop.permute.xlu0 %1515
    %v1518 = vadd.f32 %v1508, %v1516
    %v1519 = vtanh.pop %v1518
    %1521 = vrot.lane.b32.xlu0 %v1519, 64
    %v1522 = vpop.permute.xlu0 %1521
    %v1524 = vmul.f32 %v1507, %v1522
    %v1525 = vrot.slane %v1441, 2
    %v1527 = vadd.f32 %v1525, %v1495
    %v1528 = vtanh.pop %v1527
    %v1529 = vxor.u32 %v1527, 2147483648
    %v1530 = vmul.f32 %v1529, 1.442695
    %v1531 = vpow.pop %v1530
    %v1532 = vadd.f32 %v1531, 1.0
    %v1533 = vrcp.pop %v1532
    %v1534 = vmul.f32 1.0, %v1533
    %v1535 = vsel %vm122, %v1528, %v1534
    %v1536 = vmul.f32 %v1535, 0.0
    %1538 = vrot.lane.b32.xlu0 %v1535, 64
    %v1539 = vpop.permute.xlu0 %1538
    %v1541 = vmul.f32 %v1535, %v1539
    %1543 = vrot.lane.b32.xlu0 %v1541, 32
    %v1544 = vpop.permute.xlu0 %1543
    %v1546 = vadd.f32 %v1536, %v1544
    %v1547 = vtanh.pop %v1546
    %1549 = vrot.lane.b32.xlu0 %v1547, 64
    %v1550 = vpop.permute.xlu0 %1549
    %v1552 = vmul.f32 %v1535, %v1550
    %1554 = vrot.lane.b32.xlu0 %v1524, 32
    %v1555 = vpop.permute.xlu0 %1554
    %1558 = vrot.lane.b32.xlu0 %v1552, 64
    %v1559 = vpop.permute.xlu0 %1558
    %v1561 = vsel %vm246, %v1555, %v1559
    %v1562 = vpack.c.bf16 %v1561, %v1561
    %v1564 = vsel %vm350, %v1562, 0
    %1566 = vmatprep.subr.bf16.mxu0 0
    %1567 = vmatpush1.bf16.msra.mxu0 0
    %1568 = vmatprep.subr.bf16.mxu0 0
    %1569 = vmatpush1.bf16.msra.mxu0 0
    %1570 = vmatprep.subr.bf16.mxu0 0
    %1571 = vmatpush1.bf16.msra.mxu0 0
    %1572 = vmatprep.subr.bf16.mxu0 0
    %1573 = vmatpush1.bf16.msra.mxu0 0
    %1574 = vmatprep.subr.bf16.mxu0 %v1457
    %1575 = vmatpush1.bf16.msra.mxu0 %v1456
    %1576 = vmatprep.subr.bf16.mxu0 %v1455
    %1577 = vmatpush1.bf16.msra.mxu0 %v1454
    %1578 = vmatprep.subr.bf16.mxu0 %v1453
    %1579 = vmatpush1.bf16.msra.mxu0 %v1452
    %1580 = vmatprep.subr.bf16.mxu0 %v1451
    %1581 = vmatpush1.bf16.msra.mxu0 %v1450
    %1582 = vmatprep.subr.bf16.mxu0 0
    %1583 = vmatpush2.bf16.msra.mxu0 0
    %1584 = vmatprep.subr.bf16.mxu0 0
    %1585 = vmatpush2.bf16.msra.mxu0 0
    %1586 = vmatprep.subr.bf16.mxu0 0
    %1587 = vmatpush2.bf16.msra.mxu0 0
    %1588 = vmatprep.subr.bf16.mxu0 0
    %1589 = vmatpush2.bf16.msra.mxu0 0
    %1590 = vmatprep.subr.bf16.mxu0 0
    %1591 = vmatpush2.bf16.msra.mxu0 0
    %1592 = vmatprep.subr.bf16.mxu0 0
    %1593 = vmatpush2.bf16.msra.mxu0 0
    %1594 = vmatprep.subr.bf16.mxu0 0
    %1595 = vmatpush2.bf16.msra.mxu0 0
    %1596 = vmatprep.subr.bf16.mxu0 0
    %1597 = vmatpush2.bf16.msra.mxu0 0
    %1598 = vmatprep.mubr.bf16.mxu0 0
    %1599 = vmatmul.mubr.bf16.gmra.mxu0 %v1564
    %v1600 = vpop.f32.mrf.mxu0
    %v1601 = vadd.f32 0.0, %v1600
    %v1602 = vpop.f32.mrf.mxu0
    %v1603 = vadd.f32 0.0, %v1602
    %v1604 = vpop.f32.mrf.mxu0
    %v1605 = vpop.f32.mrf.mxu0
    %1606 = vdwg.mxu0
    %v1607 = vadd.f32 %v1422, %v1601
    %v1608 = vtanh.pop %v1607
    %v1609 = vxor.u32 %v1607, 2147483648
    %v1610 = vmul.f32 %v1609, 1.442695
    %v1611 = vpow.pop %v1610
    %v1612 = vadd.f32 %v1611, 1.0
    %v1613 = vrcp.pop %v1612
    %v1614 = vmul.f32 1.0, %v1613
    %v1615 = vsel %vm122, %v1608, %v1614
    %v1616 = vmul.f32 %v1615, %v1518
    %1618 = vrot.lane.b32.xlu0 %v1615, 64
    %v1619 = vpop.permute.xlu0 %1618
    %v1621 = vmul.f32 %v1615, %v1619
    %1623 = vrot.lane.b32.xlu0 %v1621, 32
    %v1624 = vpop.permute.xlu0 %1623
    %v1626 = vadd.f32 %v1616, %v1624
    %v1627 = vtanh.pop %v1626
    %1629 = vrot.lane.b32.xlu0 %v1627, 64
    %v1630 = vpop.permute.xlu0 %1629
    %v1632 = vmul.f32 %v1615, %v1630
    %v1633 = vrot.slane %v1439, 2
    %v1635 = vadd.f32 %v1633, %v1603
    %v1636 = vtanh.pop %v1635
    %v1637 = vxor.u32 %v1635, 2147483648
    %v1638 = vmul.f32 %v1637, 1.442695
    %v1639 = vpow.pop %v1638
    %v1640 = vadd.f32 %v1639, 1.0
    %v1641 = vrcp.pop %v1640
    %v1642 = vmul.f32 1.0, %v1641
    %v1643 = vsel %vm122, %v1636, %v1642
    %v1644 = vmul.f32 %v1643, %v1546
    %1646 = vrot.lane.b32.xlu0 %v1643, 64
    %v1647 = vpop.permute.xlu0 %1646
    %v1649 = vmul.f32 %v1643, %v1647
    %1651 = vrot.lane.b32.xlu0 %v1649, 32
    %v1652 = vpop.permute.xlu0 %1651
    %v1654 = vadd.f32 %v1644, %v1652
    %v1655 = vtanh.pop %v1654
    %1657 = vrot.lane.b32.xlu0 %v1655, 64
    %v1658 = vpop.permute.xlu0 %1657
    %v1660 = vmul.f32 %v1643, %v1658
    %1662 = vrot.lane.b32.xlu0 %v1632, 32
    %v1663 = vpop.permute.xlu0 %1662
    %1666 = vrot.lane.b32.xlu0 %v1660, 64
    %v1667 = vpop.permute.xlu0 %1666
    %v1669 = vsel %vm246, %v1663, %v1667
    %v1670 = vpack.c.bf16 %v1669, %v1669
    %v1672 = vsel %vm350, %v1670, 0
    %1674 = vmatprep.subr.bf16.mxu0 0
    %1675 = vmatpush1.bf16.msra.mxu0 0
    %1676 = vmatprep.subr.bf16.mxu0 0
    %1677 = vmatpush1.bf16.msra.mxu0 0
    %1678 = vmatprep.subr.bf16.mxu0 0
    %1679 = vmatpush1.bf16.msra.mxu0 0
    %1680 = vmatprep.subr.bf16.mxu0 0
    %1681 = vmatpush1.bf16.msra.mxu0 0
    %1682 = vmatprep.subr.bf16.mxu0 %v1457
    %1683 = vmatpush1.bf16.msra.mxu0 %v1456
    %1684 = vmatprep.subr.bf16.mxu0 %v1455
    %1685 = vmatpush1.bf16.msra.mxu0 %v1454
    %1686 = vmatprep.subr.bf16.mxu0 %v1453
    %1687 = vmatpush1.bf16.msra.mxu0 %v1452
    %1688 = vmatprep.subr.bf16.mxu0 %v1451
    %1689 = vmatpush1.bf16.msra.mxu0 %v1450
    %1690 = vmatprep.subr.bf16.mxu0 0
    %1691 = vmatpush2.bf16.msra.mxu0 0
    %1692 = vmatprep.subr.bf16.mxu0 0
    %1693 = vmatpush2.bf16.msra.mxu0 0
    %1694 = vmatprep.subr.bf16.mxu0 0
    %1695 = vmatpush2.bf16.msra.mxu0 0
    %1696 = vmatprep.subr.bf16.mxu0 0
    %1697 = vmatpush2.bf16.msra.mxu0 0
    %1698 = vmatprep.subr.bf16.mxu0 0
    %1699 = vmatpush2.bf16.msra.mxu0 0
    %1700 = vmatprep.subr.bf16.mxu0 0
    %1701 = vmatpush2.bf16.msra.mxu0 0
    %1702 = vmatprep.subr.bf16.mxu0 0
    %1703 = vmatpush2.bf16.msra.mxu0 0
    %1704 = vmatprep.subr.bf16.mxu0 0
    %1705 = vmatpush2.bf16.msra.mxu0 0
    %1706 = vmatprep.mubr.bf16.mxu0 0
    %1707 = vmatmul.mubr.bf16.gmra.mxu0 %v1672
    %v1708 = vpop.f32.mrf.mxu0
    %v1709 = vadd.f32 0.0, %v1708
    %v1710 = vpop.f32.mrf.mxu0
    %v1711 = vadd.f32 0.0, %v1710
    %v1712 = vpop.f32.mrf.mxu0
    %v1713 = vpop.f32.mrf.mxu0
    %1714 = vdwg.mxu0
    %v1715 = vadd.f32 %v1421, %v1709
    %v1716 = vtanh.pop %v1715
    %v1717 = vxor.u32 %v1715, 2147483648
    %v1718 = vmul.f32 %v1717, 1.442695
    %v1719 = vpow.pop %v1718
    %v1720 = vadd.f32 %v1719, 1.0
    %v1721 = vrcp.pop %v1720
    %v1722 = vmul.f32 1.0, %v1721
    %v1723 = vsel %vm122, %v1716, %v1722
    %v1724 = vmul.f32 %v1723, %v1626
    %1726 = vrot.lane.b32.xlu0 %v1723, 64
    %v1727 = vpop.permute.xlu0 %1726
    %v1729 = vmul.f32 %v1723, %v1727
    %1731 = vrot.lane.b32.xlu0 %v1729, 32
    %v1732 = vpop.permute.xlu0 %1731
    %v1734 = vadd.f32 %v1724, %v1732
    %v1735 = vtanh.pop %v1734
    %1737 = vrot.lane.b32.xlu0 %v1735, 64
    %v1738 = vpop.permute.xlu0 %1737
    %v1740 = vmul.f32 %v1723, %v1738
    %v1741 = vrot.slane %v1440, 2
    %v1743 = vadd.f32 %v1741, %v1711
    %v1744 = vtanh.pop %v1743
    %v1745 = vxor.u32 %v1743, 2147483648
    %v1746 = vmul.f32 %v1745, 1.442695
    %v1747 = vpow.pop %v1746
    %v1748 = vadd.f32 %v1747, 1.0
    %v1749 = vrcp.pop %v1748
    %v1750 = vmul.f32 1.0, %v1749
    %v1751 = vsel %vm122, %v1744, %v1750
    %v1752 = vmul.f32 %v1751, %v1654
    %1754 = vrot.lane.b32.xlu0 %v1751, 64
    %v1755 = vpop.permute.xlu0 %1754
    %v1757 = vmul.f32 %v1751, %v1755
    %1759 = vrot.lane.b32.xlu0 %v1757, 32
    %v1760 = vpop.permute.xlu0 %1759
    %v1762 = vadd.f32 %v1752, %v1760
    %v1763 = vtanh.pop %v1762
    %1765 = vrot.lane.b32.xlu0 %v1763, 64
    %v1766 = vpop.permute.xlu0 %1765
    %v1768 = vmul.f32 %v1751, %v1766
    %1770 = vrot.lane.b32.xlu0 %v1740, 32
    %v1771 = vpop.permute.xlu0 %1770
    %1774 = vrot.lane.b32.xlu0 %v1768, 64
    %v1775 = vpop.permute.xlu0 %1774
    %v1777 = vsel %vm246, %v1771, %v1775
    %v1778 = vpack.c.bf16 %v1777, %v1777
    %v1780 = vsel %vm350, %v1778, 0
    %1782 = vmatprep.subr.bf16.mxu0 0
    %1783 = vmatpush1.bf16.msra.mxu0 0
    %1784 = vmatprep.subr.bf16.mxu0 0
    %1785 = vmatpush1.bf16.msra.mxu0 0
    %1786 = vmatprep.subr.bf16.mxu0 0
    %1787 = vmatpush1.bf16.msra.mxu0 0
    %1788 = vmatprep.subr.bf16.mxu0 0
    %1789 = vmatpush1.bf16.msra.mxu0 0
    %1790 = vmatprep.subr.bf16.mxu0 %v1457
    %1791 = vmatpush1.bf16.msra.mxu0 %v1456
    %1792 = vmatprep.subr.bf16.mxu0 %v1455
    %1793 = vmatpush1.bf16.msra.mxu0 %v1454
    %1794 = vmatprep.subr.bf16.mxu0 %v1453
    %1795 = vmatpush1.bf16.msra.mxu0 %v1452
    %1796 = vmatprep.subr.bf16.mxu0 %v1451
    %1797 = vmatpush1.bf16.msra.mxu0 %v1450
    %1798 = vmatprep.subr.bf16.mxu0 0
    %1799 = vmatpush2.bf16.msra.mxu0 0
    %1800 = vmatprep.subr.bf16.mxu0 0
    %1801 = vmatpush2.bf16.msra.mxu0 0
    %1802 = vmatprep.subr.bf16.mxu0 0
    %1803 = vmatpush2.bf16.msra.mxu0 0
    %1804 = vmatprep.subr.bf16.mxu0 0
    %1805 = vmatpush2.bf16.msra.mxu0 0
    %1806 = vmatprep.subr.bf16.mxu0 0
    %1807 = vmatpush2.bf16.msra.mxu0 0
    %1808 = vmatprep.subr.bf16.mxu0 0
    %1809 = vmatpush2.bf16.msra.mxu0 0
    %1810 = vmatprep.subr.bf16.mxu0 0
    %1811 = vmatpush2.bf16.msra.mxu0 0
    %1812 = vmatprep.subr.bf16.mxu0 0
    %1813 = vmatpush2.bf16.msra.mxu0 0
    %1814 = vmatprep.mubr.bf16.mxu0 0
    %1815 = vmatmul.mubr.bf16.gmra.mxu0 %v1780
    %v1816 = vpop.f32.mrf.mxu0
    %v1817 = vadd.f32 0.0, %v1816
    %v1818 = vpop.f32.mrf.mxu0
    %v1819 = vadd.f32 0.0, %v1818
    %v1820 = vpop.f32.mrf.mxu0
    %v1821 = vpop.f32.mrf.mxu0
    %1822 = vdwg.mxu0
    %v1823 = vadd.f32 %v1423, %v1817
    %v1824 = vtanh.pop %v1823
    %v1825 = vxor.u32 %v1823, 2147483648
    %v1826 = vmul.f32 %v1825, 1.442695
    %v1827 = vpow.pop %v1826
    %v1828 = vadd.f32 %v1827, 1.0
    %v1829 = vrcp.pop %v1828
    %v1830 = vmul.f32 1.0, %v1829
    %v1831 = vsel %vm122, %v1824, %v1830
    %v1832 = vmul.f32 %v1831, %v1734
    %1834 = vrot.lane.b32.xlu0 %v1831, 64
    %v1835 = vpop.permute.xlu0 %1834
    %v1837 = vmul.f32 %v1831, %v1835
    %1839 = vrot.lane.b32.xlu0 %v1837, 32
    %v1840 = vpop.permute.xlu0 %1839
    %v1842 = vadd.f32 %v1832, %v1840
    %v1843 = vtanh.pop %v1842
    %1845 = vrot.lane.b32.xlu0 %v1843, 64
    %v1846 = vpop.permute.xlu0 %1845
    %v1848 = vmul.f32 %v1831, %v1846
    %v1849 = vrot.slane %v1432, 2
    %v1851 = vadd.f32 %v1849, %v1819
    %v1852 = vtanh.pop %v1851
    %v1853 = vxor.u32 %v1851, 2147483648
    %v1854 = vmul.f32 %v1853, 1.442695
    %v1855 = vpow.pop %v1854
    %v1856 = vadd.f32 %v1855, 1.0
    %v1857 = vrcp.pop %v1856
    %v1858 = vmul.f32 1.0, %v1857
    %v1859 = vsel %vm122, %v1852, %v1858
    %v1860 = vmul.f32 %v1859, %v1762
    %1862 = vrot.lane.b32.xlu0 %v1859, 64
    %v1863 = vpop.permute.xlu0 %1862
    %v1865 = vmul.f32 %v1859, %v1863
    %1867 = vrot.lane.b32.xlu0 %v1865, 32
    %v1868 = vpop.permute.xlu0 %1867
    %v1870 = vadd.f32 %v1860, %v1868
    %v1871 = vtanh.pop %v1870
    %1873 = vrot.lane.b32.xlu0 %v1871, 64
    %v1874 = vpop.permute.xlu0 %1873
    %v1876 = vmul.f32 %v1859, %v1874
    %1878 = vrot.lane.b32.xlu0 %v1848, 32
    %v1879 = vpop.permute.xlu0 %1878
    %1882 = vrot.lane.b32.xlu0 %v1876, 64
    %v1883 = vpop.permute.xlu0 %1882
    %v1885 = vsel %vm246, %v1879, %v1883
    %v1886 = vpack.c.bf16 %v1885, %v1885
    %v1888 = vsel %vm350, %v1886, 0
    %1890 = vmatprep.subr.bf16.mxu0 0
    %1891 = vmatpush1.bf16.msra.mxu0 0
    %1892 = vmatprep.subr.bf16.mxu0 0
    %1893 = vmatpush1.bf16.msra.mxu0 0
    %1894 = vmatprep.subr.bf16.mxu0 0
    %1895 = vmatpush1.bf16.msra.mxu0 0
    %1896 = vmatprep.subr.bf16.mxu0 0
    %1897 = vmatpush1.bf16.msra.mxu0 0
    %1898 = vmatprep.subr.bf16.mxu0 %v1457
    %1899 = vmatpush1.bf16.msra.mxu0 %v1456
    %1900 = vmatprep.subr.bf16.mxu0 %v1455
    %1901 = vmatpush1.bf16.msra.mxu0 %v1454
    %1902 = vmatprep.subr.bf16.mxu0 %v1453
    %1903 = vmatpush1.bf16.msra.mxu0 %v1452
    %1904 = vmatprep.subr.bf16.mxu0 %v1451
    %1905 = vmatpush1.bf16.msra.mxu0 %v1450
    %1906 = vmatprep.subr.bf16.mxu0 0
    %1907 = vmatpush2.bf16.msra.mxu0 0
    %1908 = vmatprep.subr.bf16.mxu0 0
    %1909 = vmatpush2.bf16.msra.mxu0 0
    %1910 = vmatprep.subr.bf16.mxu0 0
    %1911 = vmatpush2.bf16.msra.mxu0 0
    %1912 = vmatprep.subr.bf16.mxu0 0
    %1913 = vmatpush2.bf16.msra.mxu0 0
    %1914 = vmatprep.subr.bf16.mxu0 0
    %1915 = vmatpush2.bf16.msra.mxu0 0
    %1916 = vmatprep.subr.bf16.mxu0 0
    %1917 = vmatpush2.bf16.msra.mxu0 0
    %1918 = vmatprep.subr.bf16.mxu0 0
    %1919 = vmatpush2.bf16.msra.mxu0 0
    %1920 = vmatprep.subr.bf16.mxu0 0
    %1921 = vmatpush2.bf16.msra.mxu0 0
    %1922 = vmatprep.mubr.bf16.mxu0 0
    %1923 = vmatmul.mubr.bf16.gmra.mxu0 %v1888
    %v1924 = vpop.f32.mrf.mxu0
    %v1925 = vadd.f32 0.0, %v1924
    %v1926 = vpop.f32.mrf.mxu0
    %v1927 = vadd.f32 0.0, %v1926
    %v1928 = vpop.f32.mrf.mxu0
    %v1929 = vpop.f32.mrf.mxu0
    %1930 = vdwg.mxu0
    %v1931 = vadd.f32 %v1432, %v1925
    %v1932 = vtanh.pop %v1931
    %v1933 = vxor.u32 %v1931, 2147483648
    %v1934 = vmul.f32 %v1933, 1.442695
    %v1935 = vpow.pop %v1934
    %v1936 = vadd.f32 %v1935, 1.0
    %v1937 = vrcp.pop %v1936
    %v1938 = vmul.f32 1.0, %v1937
    %v1939 = vsel %vm122, %v1932, %v1938
    %v1940 = vmul.f32 %v1939, %v1842
    %1942 = vrot.lane.b32.xlu0 %v1939, 64
    %v1943 = vpop.permute.xlu0 %1942
    %v1945 = vmul.f32 %v1939, %v1943
    %1947 = vrot.lane.b32.xlu0 %v1945, 32
    %v1948 = vpop.permute.xlu0 %1947
    %v1950 = vadd.f32 %v1940, %v1948
    %v1951 = vtanh.pop %v1950
    %1953 = vrot.lane.b32.xlu0 %v1951, 64
    %v1954 = vpop.permute.xlu0 %1953
    %v1956 = vmul.f32 %v1939, %v1954
    %v1957 = vrot.slane %v1423, 2
    %v1959 = vadd.f32 %v1957, %v1927
    %v1960 = vtanh.pop %v1959
    %v1961 = vxor.u32 %v1959, 2147483648
    %v1962 = vmul.f32 %v1961, 1.442695
    %v1963 = vpow.pop %v1962
    %v1964 = vadd.f32 %v1963, 1.0
    %v1965 = vrcp.pop %v1964
    %v1966 = vmul.f32 1.0, %v1965
    %v1967 = vsel %vm122, %v1960, %v1966
    %v1968 = vmul.f32 %v1967, %v1870
    %1970 = vrot.lane.b32.xlu0 %v1967, 64
    %v1971 = vpop.permute.xlu0 %1970
    %v1973 = vmul.f32 %v1967, %v1971
    %1975 = vrot.lane.b32.xlu0 %v1973, 32
    %v1976 = vpop.permute.xlu0 %1975
    %v1978 = vadd.f32 %v1968, %v1976
    %v1979 = vtanh.pop %v1978
    %1981 = vrot.lane.b32.xlu0 %v1979, 64
    %v1982 = vpop.permute.xlu0 %1981
    %v1984 = vmul.f32 %v1967, %v1982
    %1986 = vrot.lane.b32.xlu0 %v1956, 32
    %v1987 = vpop.permute.xlu0 %1986
    %1990 = vrot.lane.b32.xlu0 %v1984, 64
    %v1991 = vpop.permute.xlu0 %1990
    %v1993 = vsel %vm246, %v1987, %v1991
    %v1994 = vpack.c.bf16 %v1993, %v1993
    %v1996 = vsel %vm350, %v1994, 0
    %1998 = vmatprep.subr.bf16.mxu0 0
    %1999 = vmatpush1.bf16.msra.mxu0 0
    %2000 = vmatprep.subr.bf16.mxu0 0
    %2001 = vmatpush1.bf16.msra.mxu0 0
    %2002 = vmatprep.subr.bf16.mxu0 0
    %2003 = vmatpush1.bf16.msra.mxu0 0
    %2004 = vmatprep.subr.bf16.mxu0 0
    %2005 = vmatpush1.bf16.msra.mxu0 0
    %2006 = vmatprep.subr.bf16.mxu0 %v1457
    %2007 = vmatpush1.bf16.msra.mxu0 %v1456
    %2008 = vmatprep.subr.bf16.mxu0 %v1455
    %2009 = vmatpush1.bf16.msra.mxu0 %v1454
    %2010 = vmatprep.subr.bf16.mxu0 %v1453
    %2011 = vmatpush1.bf16.msra.mxu0 %v1452
    %2012 = vmatprep.subr.bf16.mxu0 %v1451
    %2013 = vmatpush1.bf16.msra.mxu0 %v1450
    %2014 = vmatprep.subr.bf16.mxu0 0
    %2015 = vmatpush2.bf16.msra.mxu0 0
    %2016 = vmatprep.subr.bf16.mxu0 0
    %2017 = vmatpush2.bf16.msra.mxu0 0
    %2018 = vmatprep.subr.bf16.mxu0 0
    %2019 = vmatpush2.bf16.msra.mxu0 0
    %2020 = vmatprep.subr.bf16.mxu0 0
    %2021 = vmatpush2.bf16.msra.mxu0 0
    %2022 = vmatprep.subr.bf16.mxu0 0
    %2023 = vmatpush2.bf16.msra.mxu0 0
    %2024 = vmatprep.subr.bf16.mxu0 0
    %2025 = vmatpush2.bf16.msra.mxu0 0
    %2026 = vmatprep.subr.bf16.mxu0 0
    %2027 = vmatpush2.bf16.msra.mxu0 0
    %2028 = vmatprep.subr.bf16.mxu0 0
    %2029 = vmatpush2.bf16.msra.mxu0 0
    %2030 = vmatprep.mubr.bf16.mxu0 0
    %2031 = vmatmul.mubr.bf16.gmra.mxu0 %v1996
    %v2032 = vpop.f32.mrf.mxu0
    %v2033 = vadd.f32 0.0, %v2032
    %v2034 = vpop.f32.mrf.mxu0
    %v2035 = vadd.f32 0.0, %v2034
    %v2036 = vpop.f32.mrf.mxu0
    %v2037 = vpop.f32.mrf.mxu0
    %2038 = vdwg.mxu0
    %v2039 = vadd.f32 %v1440, %v2033
    %v2040 = vtanh.pop %v2039
    %v2041 = vxor.u32 %v2039, 2147483648
    %v2042 = vmul.f32 %v2041, 1.442695
    %v2043 = vpow.pop %v2042
    %v2044 = vadd.f32 %v2043, 1.0
    %v2045 = vrcp.pop %v2044
    %v2046 = vmul.f32 1.0, %v2045
    %v2047 = vsel %vm122, %v2040, %v2046
    %v2048 = vmul.f32 %v2047, %v1950
    %2050 = vrot.lane.b32.xlu0 %v2047, 64
    %v2051 = vpop.permute.xlu0 %2050
    %v2053 = vmul.f32 %v2047, %v2051
    %2055 = vrot.lane.b32.xlu0 %v2053, 32
    %v2056 = vpop.permute.xlu0 %2055
    %v2058 = vadd.f32 %v2048, %v2056
    %v2059 = vtanh.pop %v2058
    %2061 = vrot.lane.b32.xlu0 %v2059, 64
    %v2062 = vpop.permute.xlu0 %2061
    %v2064 = vmul.f32 %v2047, %v2062
    %v2065 = vrot.slane %v1421, 2
    %v2067 = vadd.f32 %v2065, %v2035
    %v2068 = vtanh.pop %v2067
    %v2069 = vxor.u32 %v2067, 2147483648
    %v2070 = vmul.f32 %v2069, 1.442695
    %v2071 = vpow.pop %v2070
    %v2072 = vadd.f32 %v2071, 1.0
    %v2073 = vrcp.pop %v2072
    %v2074 = vmul.f32 1.0, %v2073
    %v2075 = vsel %vm122, %v2068, %v2074
    %v2076 = vmul.f32 %v2075, %v1978
    %2078 = vrot.lane.b32.xlu0 %v2075, 64
    %v2079 = vpop.permute.xlu0 %2078
    %v2081 = vmul.f32 %v2075, %v2079
    %2083 = vrot.lane.b32.xlu0 %v2081, 32
    %v2084 = vpop.permute.xlu0 %2083
    %v2086 = vadd.f32 %v2076, %v2084
    %v2087 = vtanh.pop %v2086
    %2089 = vrot.lane.b32.xlu0 %v2087, 64
    %v2090 = vpop.permute.xlu0 %2089
    %v2092 = vmul.f32 %v2075, %v2090
    %2094 = vrot.lane.b32.xlu0 %v2064, 32
    %v2095 = vpop.permute.xlu0 %2094
    %2098 = vrot.lane.b32.xlu0 %v2092, 64
    %v2099 = vpop.permute.xlu0 %2098
    %v2101 = vsel %vm246, %v2095, %v2099
    %v2102 = vpack.c.bf16 %v2101, %v2101
    %v2104 = vsel %vm350, %v2102, 0
    %2106 = vmatprep.subr.bf16.mxu0 0
    %2107 = vmatpush1.bf16.msra.mxu0 0
    %2108 = vmatprep.subr.bf16.mxu0 0
    %2109 = vmatpush1.bf16.msra.mxu0 0
    %2110 = vmatprep.subr.bf16.mxu0 0
    %2111 = vmatpush1.bf16.msra.mxu0 0
    %2112 = vmatprep.subr.bf16.mxu0 0
    %2113 = vmatpush1.bf16.msra.mxu0 0
    %2114 = vmatprep.subr.bf16.mxu0 %v1457
    %2115 = vmatpush1.bf16.msra.mxu0 %v1456
    %2116 = vmatprep.subr.bf16.mxu0 %v1455
    %2117 = vmatpush1.bf16.msra.mxu0 %v1454
    %2118 = vmatprep.subr.bf16.mxu0 %v1453
    %2119 = vmatpush1.bf16.msra.mxu0 %v1452
    %2120 = vmatprep.subr.bf16.mxu0 %v1451
    %2121 = vmatpush1.bf16.msra.mxu0 %v1450
    %2122 = vmatprep.subr.bf16.mxu0 0
    %2123 = vmatpush2.bf16.msra.mxu0 0
    %2124 = vmatprep.subr.bf16.mxu0 0
    %2125 = vmatpush2.bf16.msra.mxu0 0
    %2126 = vmatprep.subr.bf16.mxu0 0
    %2127 = vmatpush2.bf16.msra.mxu0 0
    %2128 = vmatprep.subr.bf16.mxu0 0
    %2129 = vmatpush2.bf16.msra.mxu0 0
    %2130 = vmatprep.subr.bf16.mxu0 0
    %2131 = vmatpush2.bf16.msra.mxu0 0
    %2132 = vmatprep.subr.bf16.mxu0 0
    %2133 = vmatpush2.bf16.msra.mxu0 0
    %2134 = vmatprep.subr.bf16.mxu0 0
    %2135 = vmatpush2.bf16.msra.mxu0 0
    %2136 = vmatprep.subr.bf16.mxu0 0
    %2137 = vmatpush2.bf16.msra.mxu0 0
    %2138 = vmatprep.mubr.bf16.mxu0 0
    %2139 = vmatmul.mubr.bf16.gmra.mxu0 %v2104
    %v2140 = vpop.f32.mrf.mxu0
    %v2141 = vadd.f32 0.0, %v2140
    %v2142 = vpop.f32.mrf.mxu0
    %v2143 = vadd.f32 0.0, %v2142
    %v2144 = vpop.f32.mrf.mxu0
    %v2145 = vpop.f32.mrf.mxu0
    %2146 = vdwg.mxu0
    %v2147 = vadd.f32 %v1439, %v2141
    %v2148 = vtanh.pop %v2147
    %v2149 = vxor.u32 %v2147, 2147483648
    %v2150 = vmul.f32 %v2149, 1.442695
    %v2151 = vpow.pop %v2150
    %v2152 = vadd.f32 %v2151, 1.0
    %v2153 = vrcp.pop %v2152
    %v2154 = vmul.f32 1.0, %v2153
    %v2155 = vsel %vm122, %v2148, %v2154
    %v2156 = vmul.f32 %v2155, %v2058
    %2158 = vrot.lane.b32.xlu0 %v2155, 64
    %v2159 = vpop.permute.xlu0 %2158
    %v2161 = vmul.f32 %v2155, %v2159
    %2163 = vrot.lane.b32.xlu0 %v2161, 32
    %v2164 = vpop.permute.xlu0 %2163
    %v2166 = vadd.f32 %v2156, %v2164
    %v2167 = vtanh.pop %v2166
    %2169 = vrot.lane.b32.xlu0 %v2167, 64
    %v2170 = vpop.permute.xlu0 %2169
    %v2172 = vmul.f32 %v2155, %v2170
    %v2173 = vrot.slane %v1422, 2
    %v2175 = vadd.f32 %v2173, %v2143
    %v2176 = vtanh.pop %v2175
    %v2177 = vxor.u32 %v2175, 2147483648
    %v2178 = vmul.f32 %v2177, 1.442695
    %v2179 = vpow.pop %v2178
    %v2180 = vadd.f32 %v2179, 1.0
    %v2181 = vrcp.pop %v2180
    %v2182 = vmul.f32 1.0, %v2181
    %v2183 = vsel %vm122, %v2176, %v2182
    %v2184 = vmul.f32 %v2183, %v2086
    %2186 = vrot.lane.b32.xlu0 %v2183, 64
    %v2187 = vpop.permute.xlu0 %2186
    %v2189 = vmul.f32 %v2183, %v2187
    %2191 = vrot.lane.b32.xlu0 %v2189, 32
    %v2192 = vpop.permute.xlu0 %2191
    %v2194 = vadd.f32 %v2184, %v2192
    %v2195 = vtanh.pop %v2194
    %2197 = vrot.lane.b32.xlu0 %v2195, 64
    %v2198 = vpop.permute.xlu0 %2197
    %v2200 = vmul.f32 %v2183, %v2198
    %2202 = vrot.lane.b32.xlu0 %v2172, 32
    %v2203 = vpop.permute.xlu0 %2202
    %2206 = vrot.lane.b32.xlu0 %v2200, 64
    %v2207 = vpop.permute.xlu0 %2206
    %v2209 = vsel %vm246, %v2203, %v2207
    %v2210 = vpack.c.bf16 %v2209, %v2209
    %v2212 = vsel %vm350, %v2210, 0
    %2214 = vmatprep.subr.bf16.mxu0 0
    %2215 = vmatpush1.bf16.msra.mxu0 0
    %2216 = vmatprep.subr.bf16.mxu0 0
    %2217 = vmatpush1.bf16.msra.mxu0 0
    %2218 = vmatprep.subr.bf16.mxu0 0
    %2219 = vmatpush1.bf16.msra.mxu0 0
    %2220 = vmatprep.subr.bf16.mxu0 0
    %2221 = vmatpush1.bf16.msra.mxu0 0
    %2222 = vmatprep.subr.bf16.mxu0 %v1457
    %2223 = vmatpush1.bf16.msra.mxu0 %v1456
    %2224 = vmatprep.subr.bf16.mxu0 %v1455
    %2225 = vmatpush1.bf16.msra.mxu0 %v1454
    %2226 = vmatprep.subr.bf16.mxu0 %v1453
    %2227 = vmatpush1.bf16.msra.mxu0 %v1452
    %2228 = vmatprep.subr.bf16.mxu0 %v1451
    %2229 = vmatpush1.bf16.msra.mxu0 %v1450
    %2230 = vmatprep.subr.bf16.mxu0 0
    %2231 = vmatpush2.bf16.msra.mxu0 0
    %2232 = vmatprep.subr.bf16.mxu0 0
    %2233 = vmatpush2.bf16.msra.mxu0 0
    %2234 = vmatprep.subr.bf16.mxu0 0
    %2235 = vmatpush2.bf16.msra.mxu0 0
    %2236 = vmatprep.subr.bf16.mxu0 0
    %2237 = vmatpush2.bf16.msra.mxu0 0
    %2238 = vmatprep.subr.bf16.mxu0 0
    %2239 = vmatpush2.bf16.msra.mxu0 0
    %2240 = vmatprep.subr.bf16.mxu0 0
    %2241 = vmatpush2.bf16.msra.mxu0 0
    %2242 = vmatprep.subr.bf16.mxu0 0
    %2243 = vmatpush2.bf16.msra.mxu0 0
    %2244 = vmatprep.subr.bf16.mxu0 0
    %2245 = vmatpush2.bf16.msra.mxu0 0
    %2246 = vmatprep.mubr.bf16.mxu0 0
    %2247 = vmatmul.mubr.bf16.gmra.mxu0 %v2212
    %v2248 = vpop.f32.mrf.mxu0
    %v2249 = vadd.f32 0.0, %v2248
    %v2250 = vpop.f32.mrf.mxu0
    %v2251 = vadd.f32 0.0, %v2250
    %v2252 = vpop.f32.mrf.mxu0
    %v2253 = vpop.f32.mrf.mxu0
    %2254 = vdwg.mxu0
    %v2255 = vadd.f32 %v1441, %v2249
    %v2256 = vtanh.pop %v2255
    %v2257 = vxor.u32 %v2255, 2147483648
    %v2258 = vmul.f32 %v2257, 1.442695
    %v2259 = vpow.pop %v2258
    %v2260 = vadd.f32 %v2259, 1.0
    %v2261 = vrcp.pop %v2260
    %v2262 = vmul.f32 1.0, %v2261
    %v2263 = vsel %vm122, %v2256, %v2262
    %v2264 = vmul.f32 %v2263, %v2166
    %2266 = vrot.lane.b32.xlu0 %v2263, 64
    %v2267 = vpop.permute.xlu0 %2266
    %v2269 = vmul.f32 %v2263, %v2267
    %2271 = vrot.lane.b32.xlu0 %v2269, 32
    %v2272 = vpop.permute.xlu0 %2271
    %v2274 = vadd.f32 %v2264, %v2272
    %v2275 = vtanh.pop %v2274
    %2277 = vrot.lane.b32.xlu0 %v2275, 64
    %v2278 = vpop.permute.xlu0 %2277
    %v2280 = vmul.f32 %v2263, %v2278
    %v2281 = vrot.slane %v1414, 2
    %v2283 = vadd.f32 %v2281, %v2251
    %v2284 = vtanh.pop %v2283
    %v2285 = vxor.u32 %v2283, 2147483648
    %v2286 = vmul.f32 %v2285, 1.442695
    %v2287 = vpow.pop %v2286
    %v2288 = vadd.f32 %v2287, 1.0
    %v2289 = vrcp.pop %v2288
    %v2290 = vmul.f32 1.0, %v2289
    %v2291 = vsel %vm122, %v2284, %v2290
    %v2292 = vmul.f32 %v2291, %v2194
    %2294 = vrot.lane.b32.xlu0 %v2291, 64
    %v2295 = vpop.permute.xlu0 %2294
    %v2297 = vmul.f32 %v2291, %v2295
    %2299 = vrot.lane.b32.xlu0 %v2297, 32
    %v2300 = vpop.permute.xlu0 %2299
    %v2302 = vadd.f32 %v2292, %v2300
    %v2303 = vtanh.pop %v2302
    %2305 = vrot.lane.b32.xlu0 %v2303, 64
    %v2306 = vpop.permute.xlu0 %2305
    %v2308 = vmul.f32 %v2291, %v2306
    %2310 = vrot.lane.b32.xlu0 %v2280, 32
    %v2311 = vpop.permute.xlu0 %2310
    %2314 = vrot.lane.b32.xlu0 %v2308, 64
    %v2315 = vpop.permute.xlu0 %2314
    %v2317 = vsel %vm246, %v1555, %v2315
    %v2318 = vsel %vm246, %v1663, %v2207
    %v2319 = vsel %vm246, %v1771, %v2099
    %v2320 = vsel %vm246, %v1879, %v1991
    %v2321 = vsel %vm246, %v1987, %v1883
    %v2322 = vsel %vm246, %v2095, %v1775
    %v2323 = vsel %vm246, %v2203, %v1667
    %v2324 = vsel %vm246, %v2311, %v1559
    %v2325 = vpack.c.bf16 %v2317, %v2317
    %v2326 = vpack.c.bf16 %v2318, %v2318
    %v2327 = vpack.c.bf16 %v2319, %v2319
    %v2328 = vpack.c.bf16 %v2320, %v2320
    %v2329 = vpack.c.bf16 %v2321, %v2321
    %v2330 = vpack.c.bf16 %v2322, %v2322
    %v2331 = vpack.c.bf16 %v2323, %v2323
    %v2332 = vpack.c.bf16 %v2324, %v2324
    %v2333 = vld [vmem:[#allocation6] sm:$0xff]
    %v2334 = vld [vmem:[#allocation6 + $0x8] sm:$0xff]
    %v2335 = vld [vmem:[#allocation6 + $0x10] sm:$0xff]
    %v2336 = vld [vmem:[#allocation6 + $0x18] sm:$0xff]
    %v2337 = vld [vmem:[#allocation6 + $0x20] sm:$0xff]
    %v2338 = vld [vmem:[#allocation6 + $0x28] sm:$0xff]
    %v2339 = vld [vmem:[#allocation6 + $0x30] sm:$0xff]
    %v2340 = vld [vmem:[#allocation6 + $0x38] sm:$0xff]
    %v2341 = vpack.c.bf16 %v2334, %v2333
    %v2342 = vpack.c.bf16 %v2336, %v2335
    %v2343 = vpack.c.bf16 %v2338, %v2337
    %v2344 = vpack.c.bf16 %v2340, %v2339
    %v2345 = vld [vmem:[#allocation8] sm:$0x1]
    %v2347 = vlaneseq
    %v2348 = vshrl.u32 %v2347, 7
    %v2349 = vsub.s32 0, %v2348
    %v2350 = vrot.slane %v2345, %v2349
    %v2359 = vcombine.low %v2325, %v2326
    %v2360 = vcombine.low %v2327, %v2328
    %v2361 = vcombine.low %v2329, %v2330
    %v2362 = vcombine.low %v2331, %v2332
    %v2364 = vunpack.c.l.s4 1966171168
    %v2365 = vunpack.c.0.s8 %v2364
    %v2366 = vlaneseq
    %v2367 = vshrl.u32 %v2366, 7
    %v2368 = vsub.s32 %v2365, %v2367
    %v2369 = vrot.slane %v2359, %v2368
    %v2371 = vunpack.c.l.s4 1966171168
    %v2372 = vunpack.c.0.s8 %v2371
    %v2373 = vlaneseq
    %v2374 = vshrl.u32 %v2373, 7
    %v2375 = vsub.s32 %v2372, %v2374
    %v2376 = vrot.slane %v2360, %v2375
    %v2378 = vunpack.c.l.s4 1966171168
    %v2379 = vunpack.c.0.s8 %v2378
    %v2380 = vlaneseq
    %v2381 = vshrl.u32 %v2380, 7
    %v2382 = vsub.s32 %v2379, %v2381
    %v2383 = vrot.slane %v2361, %v2382
    %v2385 = vunpack.c.l.s4 1966171168
    %v2386 = vunpack.c.0.s8 %v2385
    %v2387 = vlaneseq
    %v2388 = vshrl.u32 %v2387, 7
    %v2389 = vsub.s32 %v2386, %v2388
    %v2390 = vrot.slane %v2362, %v2389
    %v2391 = vcombine.low %v2369, %v2376
    %v2392 = vcombine.low %v2383, %v2390
    %v2394 = vunpack.c.l.s4 1966171168
    %v2395 = vunpack.c.0.s8 %v2394
    %v2396 = vlaneseq
    %v2397 = vshrl.u32 %v2396, 7
    %v2398 = vsub.s32 %v2395, %v2397
    %v2399 = vrot.slane %v2391, %v2398
    %v2401 = vunpack.c.l.s4 1966171168
    %v2402 = vunpack.c.0.s8 %v2401
    %v2403 = vlaneseq
    %v2404 = vshrl.u32 %v2403, 7
    %v2405 = vsub.s32 %v2402, %v2404
    %v2406 = vrot.slane %v2392, %v2405
    %v2407 = vcombine.low %v2399, %v2406
    %v2408 = vcombine.low %v2350, %v2350
    %v2410 = vunpack.c.l.s4 1983009808
    %v2411 = vunpack.c.0.s8 %v2410
    %v2412 = vlaneseq
    %v2413 = vshrl.u32 %v2412, 7
    %v2414 = vsub.s32 %v2411, %v2413
    %v2415 = vrot.slane %v2408, %v2414
    %v2416 = vcombine.low %v2415, %v2415
    %v2419 = vsel %vm350, %v2407, 0
    %2421 = vmatprep.subr.bf16.mxu0 0
    %2422 = vmatpush1.bf16.msra.mxu0 0
    %2423 = vmatprep.subr.bf16.mxu0 0
    %2424 = vmatpush1.bf16.msra.mxu0 0
    %2425 = vmatprep.subr.bf16.mxu0 0
    %2426 = vmatpush1.bf16.msra.mxu0 0
    %2427 = vmatprep.subr.bf16.mxu0 0
    %2428 = vmatpush1.bf16.msra.mxu0 0
    %2429 = vmatprep.subr.bf16.mxu0 0
    %2430 = vmatpush1.bf16.msra.mxu0 %v2344
    %2431 = vmatprep.subr.bf16.mxu0 0
    %2432 = vmatpush1.bf16.msra.mxu0 %v2343
    %2433 = vmatprep.subr.bf16.mxu0 0
    %2434 = vmatpush1.bf16.msra.mxu0 %v2342
    %2435 = vmatprep.subr.bf16.mxu0 0
    %2436 = vmatpush1.bf16.msra.mxu0 %v2341
    %2437 = vmatprep.subr.bf16.mxu0 0
    %2438 = vmatpush2.bf16.msra.mxu0 0
    %2439 = vmatprep.subr.bf16.mxu0 0
    %2440 = vmatpush2.bf16.msra.mxu0 0
    %2441 = vmatprep.subr.bf16.mxu0 0
    %2442 = vmatpush2.bf16.msra.mxu0 0
    %2443 = vmatprep.subr.bf16.mxu0 0
    %2444 = vmatpush2.bf16.msra.mxu0 0
    %2445 = vmatprep.subr.bf16.mxu0 0
    %2446 = vmatpush2.bf16.msra.mxu0 0
    %2447 = vmatprep.subr.bf16.mxu0 0
    %2448 = vmatpush2.bf16.msra.mxu0 0
    %2449 = vmatprep.subr.bf16.mxu0 0
    %2450 = vmatpush2.bf16.msra.mxu0 0
    %2451 = vmatprep.subr.bf16.mxu0 0
    %2452 = vmatpush2.bf16.msra.mxu0 0
    %2453 = vmatprep.mubr.bf16.mxu0 0
    %2454 = vmatmul.mubr.bf16.gmra.mxu0 %v2419
    %v2455 = vpop.f32.mrf.mxu0
    %v2456 = vadd.f32 %v2416, %v2455
    %v2457 = vpop.f32.mrf.mxu0
    %v2458 = vpop.f32.mrf.mxu0
    %v2459 = vadd.f32 %v2416, %v2458
    %v2460 = vpop.f32.mrf.mxu0
    %2461 = vdwg.mxu0
    %v2464 = vcombine.high %v2456, %v2456
    %v2466 = vunpack.c.l.s4 1983009808
    %v2467 = vunpack.c.0.s8 %v2466
    %v2468 = vlaneseq
    %v2469 = vshrl.u32 %v2468, 7
    %v2470 = vsub.s32 %v2467, %v2469
    %v2471 = vrot.slane %v2456, %v2470
    %v2473 = vunpack.c.l.s4 1983009808
    %v2474 = vunpack.c.0.s8 %v2473
    %v2475 = vlaneseq
    %v2476 = vshrl.u32 %v2475, 7
    %v2477 = vsub.s32 %v2474, %v2476
    %v2478 = vrot.slane %v2464, %v2477
    %v2479 = vcombine.high %v2471, %v2471
    %v2480 = vcombine.high %v2478, %v2478
    %v2481 = vcombine.high %v2459, %v2459
    %v2483 = vunpack.c.l.s4 1983009808
    %v2484 = vunpack.c.0.s8 %v2483
    %v2485 = vlaneseq
    %v2486 = vshrl.u32 %v2485, 7
    %v2487 = vsub.s32 %v2484, %v2486
    %v2488 = vrot.slane %v2459, %v2487
    %v2490 = vunpack.c.l.s4 1983009808
    %v2491 = vunpack.c.0.s8 %v2490
    %v2492 = vlaneseq
    %v2493 = vshrl.u32 %v2492, 7
    %v2494 = vsub.s32 %v2491, %v2493
    %v2495 = vrot.slane %v2481, %v2494
    %v2496 = vcombine.high %v2488, %v2488
    %v2497 = vcombine.high %v2495, %v2495
    %v2506 = vmax.f32 %v2471, 0.0
    %v2507 = vmax.f32 %v2479, 0.0
    %v2508 = vmax.f32 %v2478, 0.0
    %v2509 = vmax.f32 %v2480, 0.0
    %v2510 = vmax.f32 %v2488, 0.0
    %v2511 = vmax.f32 %v2496, 0.0
    %v2512 = vmax.f32 %v2495, 0.0
    %v2513 = vmax.f32 %v2497, 0.0
    %v2514 = vld [vmem:[#allocation9] sm:$0x1]
    %v2516 = vlaneseq
    %v2517 = vshrl.u32 %v2516, 7
    %v2518 = vsub.s32 0, %v2517
    %v2519 = vrot.slane %v2514, %v2518
    %v2521 = vmul.f32 %v2506, %v2519
    %v2522 = vmul.f32 %v2507, %v2519
    %v2523 = vmul.f32 %v2508, %v2519
    %v2524 = vmul.f32 %v2509, %v2519
    %v2525 = vmul.f32 %v2510, %v2519
    %v2526 = vmul.f32 %v2511, %v2519
    %v2527 = vmul.f32 %v2512, %v2519
    %v2528 = vmul.f32 %v2513, %v2519
    %vm2529 = vcmask 517120
    %v2530 = vsel %vm2529, %v2521, 0.0
    %2531 = vadd.xlane.f32.xlu0 %v2530
    %v2532 = vpop.xlane.xlu0 %2531
    %v2533 = vsel %vm2529, %v2522, 0.0
    %2534 = vadd.xlane.f32.xlu0 %v2533
    %v2535 = vpop.xlane.xlu0 %2534
    %v2536 = vsel %vm2529, %v2523, 0.0
    %2537 = vadd.xlane.f32.xlu0 %v2536
    %v2538 = vpop.xlane.xlu0 %2537
    %v2539 = vsel %vm2529, %v2524, 0.0
    %2540 = vadd.xlane.f32.xlu0 %v2539
    %v2541 = vpop.xlane.xlu0 %2540
    %v2542 = vsel %vm2529, %v2525, 0.0
    %2543 = vadd.xlane.f32.xlu0 %v2542
    %v2544 = vpop.xlane.xlu0 %2543
    %v2545 = vsel %vm2529, %v2526, 0.0
    %2546 = vadd.xlane.f32.xlu0 %v2545
    %v2547 = vpop.xlane.xlu0 %2546
    %v2548 = vsel %vm2529, %v2527, 0.0
    %2549 = vadd.xlane.f32.xlu0 %v2548
    %v2550 = vpop.xlane.xlu0 %2549
    %v2551 = vsel %vm2529, %v2528, 0.0
    %2552 = vadd.xlane.f32.xlu0 %v2551
    %v2553 = vpop.xlane.xlu0 %2552
    %v2554 = vld [vmem:[#allocation2] sm:$0x1]
    %v2556 = vlaneseq
    %v2557 = vshrl.u32 %v2556, 7
    %v2558 = vsub.s32 0, %v2557
    %v2559 = vrot.slane %v2554, %v2558
    %v2561 = vadd.f32 %v2532, %v2559
    %v2562 = vadd.f32 %v2535, %v2559
    %v2563 = vadd.f32 %v2538, %v2559
    %v2564 = vadd.f32 %v2541, %v2559
    %v2565 = vadd.f32 %v2544, %v2559
    %v2566 = vadd.f32 %v2547, %v2559
    %v2567 = vadd.f32 %v2550, %v2559
    %v2568 = vadd.f32 %v2553, %v2559
    %vm2569 = vcmask 1024
    %v2570 = vsel %vm2569, %v2561, -inf
    %v2571 = vsel %vm2569, %v2562, -inf
    %v2572 = vsel %vm2569, %v2563, -inf
    %v2573 = vsel %vm2569, %v2564, -inf
    %v2574 = vsel %vm2569, %v2565, -inf
    %v2575 = vmax.f32 %v2570, %v2574
    %v2576 = vsel %vm2569, %v2566, -inf
    %v2577 = vmax.f32 %v2571, %v2576
    %v2578 = vsel %vm2569, %v2567, -inf
    %v2579 = vmax.f32 %v2572, %v2578
    %v2580 = vsel %vm2569, %v2568, -inf
    %v2581 = vmax.f32 %v2573, %v2580
    %v2582 = vmax.f32 %v2575, %v2577
    %v2583 = vmax.f32 %v2579, %v2581
    %v2584 = vmax.f32 %v2582, %v2583
    %v2585 = vsub.f32 %v2561, %v2584
    %v2586 = vsub.f32 %v2562, %v2584
    %v2587 = vsub.f32 %v2563, %v2584
    %v2588 = vsub.f32 %v2564, %v2584
    %v2589 = vsub.f32 %v2565, %v2584
    %v2590 = vsub.f32 %v2566, %v2584
    %v2591 = vsub.f32 %v2567, %v2584
    %v2592 = vsub.f32 %v2568, %v2584
    %v2593 = vmul.f32 %v2585, 1.442695
    %v2594 = vpow.pop %v2593
    %v2595 = vmul.f32 %v2586, 1.442695
    %v2596 = vpow.pop %v2595
    %v2597 = vmul.f32 %v2587, 1.442695
    %v2598 = vpow.pop %v2597
    %v2599 = vmul.f32 %v2588, 1.442695
    %v2600 = vpow.pop %v2599
    %v2601 = vmul.f32 %v2589, 1.442695
    %v2602 = vpow.pop %v2601
    %v2603 = vmul.f32 %v2590, 1.442695
    %v2604 = vpow.pop %v2603
    %v2605 = vmul.f32 %v2591, 1.442695
    %v2606 = vpow.pop %v2605
    %v2607 = vmul.f32 %v2592, 1.442695
    %v2608 = vpow.pop %v2607
    %v2609 = vsel %vm2569, %v2594, 0.0
    %v2610 = vsel %vm2569, %v2596, 0.0
    %v2611 = vadd.f32 %v2609, %v2610
    %v2612 = vsel %vm2569, %v2598, 0.0
    %v2613 = vadd.f32 %v2611, %v2612
    %v2614 = vsel %vm2569, %v2600, 0.0
    %v2615 = vadd.f32 %v2613, %v2614
    %v2616 = vsel %vm2569, %v2602, 0.0
    %v2617 = vadd.f32 %v2615, %v2616
    %v2618 = vsel %vm2569, %v2604, 0.0
    %v2619 = vadd.f32 %v2617, %v2618
    %v2620 = vsel %vm2569, %v2606, 0.0
    %v2621 = vadd.f32 %v2619, %v2620
    %v2622 = vsel %vm2569, %v2608, 0.0
    %v2623 = vadd.f32 %v2621, %v2622
    %v2624 = vrcp.pop %v2623
    %v2625 = vmul.f32 %v2594, %v2624
    %v2626 = vmul.f32 %v2596, %v2624
    %v2627 = vmul.f32 %v2598, %v2624
    %v2628 = vmul.f32 %v2600, %v2624
    %v2629 = vmul.f32 %v2602, %v2624
    %v2630 = vmul.f32 %v2604, %v2624
    %v2631 = vmul.f32 %v2606, %v2624
    %v2632 = vmul.f32 %v2608, %v2624
    %2634 = vset.pattern.permute.xlu0 0
    %2635 = vperm.xlu0 %2634, %v2625
    %v2636 = vpop.permute.xlu0 %2635
    %2639 = vset.pattern.permute.xlu0 0
    %2640 = vperm.xlu0 %2639, %v2626
    %v2641 = vpop.permute.xlu0 %2640
    %2644 = vset.pattern.permute.xlu0 0
    %2645 = vperm.xlu0 %2644, %v2627
    %v2646 = vpop.permute.xlu0 %2645
    %2649 = vset.pattern.permute.xlu0 0
    %2650 = vperm.xlu0 %2649, %v2628
    %v2651 = vpop.permute.xlu0 %2650
    %2654 = vset.pattern.permute.xlu0 0
    %2655 = vperm.xlu0 %2654, %v2629
    %v2656 = vpop.permute.xlu0 %2655
    %2659 = vset.pattern.permute.xlu0 0
    %2660 = vperm.xlu0 %2659, %v2630
    %v2661 = vpop.permute.xlu0 %2660
    %2664 = vset.pattern.permute.xlu0 0
    %2665 = vperm.xlu0 %2664, %v2631
    %v2666 = vpop.permute.xlu0 %2665
    %2669 = vset.pattern.permute.xlu0 0
    %2670 = vperm.xlu0 %2669, %v2632
    %v2671 = vpop.permute.xlu0 %2670
    %v2673 = vmul.f32 %v2636, %v2317
    %v2674 = vmul.f32 %v2641, %v2318
    %v2675 = vmul.f32 %v2646, %v2319
    %v2676 = vmul.f32 %v2651, %v2320
    %v2677 = vmul.f32 %v2656, %v2321
    %v2678 = vmul.f32 %v2661, %v2322
    %v2679 = vmul.f32 %v2666, %v2323
    %v2680 = vmul.f32 %v2671, %v2324
    %v2681 = vsel %vm2529, %v2673, 0.0
    %v2682 = vsel %vm2529, %v2674, 0.0
    %v2683 = vadd.f32 %v2681, %v2682
    %v2684 = vsel %vm2529, %v2675, 0.0
    %v2685 = vadd.f32 %v2683, %v2684
    %v2686 = vsel %vm2529, %v2676, 0.0
    %v2687 = vadd.f32 %v2685, %v2686
    %v2688 = vsel %vm2529, %v2677, 0.0
    %v2689 = vadd.f32 %v2687, %v2688
    %v2690 = vsel %vm2529, %v2678, 0.0
    %v2691 = vadd.f32 %v2689, %v2690
    %v2692 = vsel %vm2529, %v2679, 0.0
    %v2693 = vadd.f32 %v2691, %v2692
    %v2694 = vsel %vm2529, %v2680, 0.0
    %v2695 = vadd.f32 %v2693, %v2694
    %v2696 = vld [vmem:[%s11] sm:$0xff]
    %v2697 = vld [vmem:[%s11 + $0x8] sm:$0xff]
    %v2698 = vld [vmem:[%s11 + $0x10] sm:$0xff]
    %v2699 = vld [vmem:[%s11 + $0x18] sm:$0xff]
    %v2700 = vld [vmem:[%s11 + $0x20] sm:$0xff]
    %v2701 = vld [vmem:[%s11 + $0x28] sm:$0xff]
    %v2702 = vld [vmem:[%s11 + $0x30] sm:$0xff]
    %v2703 = vld [vmem:[%s11 + $0x38] sm:$0xff]
    %v2704 = vld [vmem:[#allocation11] sm:$0x1]
    %v2706 = vlaneseq
    %v2707 = vshrl.u32 %v2706, 7
    %v2708 = vsub.s32 0, %v2707
    %v2709 = vrot.slane %v2704, %v2708
    %v2712 = vsel %vm350, %v2695, 0
    %2714 = vmatprep.subr.mxu0 0.0
    %2715 = vmatpush1.msra.mxu0 0.0
    %2716 = vmatprep.subr.mxu0 0.0
    %2717 = vmatpush1.msra.mxu0 0.0
    %2718 = vmatprep.subr.mxu0 0.0
    %2719 = vmatpush1.msra.mxu0 0.0
    %2720 = vmatprep.subr.mxu0 0.0
    %2721 = vmatpush1.msra.mxu0 0.0
    %2722 = vmatprep.subr.mxu0 0.0
    %2723 = vmatpush1.msra.mxu0 0.0
    %2724 = vmatprep.subr.mxu0 0.0
    %2725 = vmatpush1.msra.mxu0 0.0
    %2726 = vmatprep.subr.mxu0 0.0
    %2727 = vmatpush1.msra.mxu0 0.0
    %2728 = vmatprep.subr.mxu0 0.0
    %2729 = vmatpush1.msra.mxu0 0.0
    %2730 = vmatprep.subr.mxu0 0.0
    %2731 = vmatpush1.msra.mxu0 %v2703
    %2732 = vmatprep.subr.mxu0 0.0
    %2733 = vmatpush1.msra.mxu0 %v2702
    %2734 = vmatprep.subr.mxu0 0.0
    %2735 = vmatpush1.msra.mxu0 %v2701
    %2736 = vmatprep.subr.mxu0 0.0
    %2737 = vmatpush1.msra.mxu0 %v2700
    %2738 = vmatprep.subr.mxu0 0.0
    %2739 = vmatpush1.msra.mxu0 %v2699
    %2740 = vmatprep.subr.mxu0 0.0
    %2741 = vmatpush1.msra.mxu0 %v2698
    %2742 = vmatprep.subr.mxu0 0.0
    %2743 = vmatpush1.msra.mxu0 %v2697
    %2744 = vmatprep.subr.mxu0 0.0
    %2745 = vmatpush1.msra.mxu0 %v2696
    %2746 = vmatprep.subr.mxu0 0.0
    %2747 = vmatpush2.msra.mxu0 0.0
    %2748 = vmatprep.subr.mxu0 0.0
    %2749 = vmatpush2.msra.mxu0 0.0
    %2750 = vmatprep.subr.mxu0 0.0
    %2751 = vmatpush2.msra.mxu0 0.0
    %2752 = vmatprep.subr.mxu0 0.0
    %2753 = vmatpush2.msra.mxu0 0.0
    %2754 = vmatprep.subr.mxu0 0.0
    %2755 = vmatpush2.msra.mxu0 0.0
    %2756 = vmatprep.subr.mxu0 0.0
    %2757 = vmatpush2.msra.mxu0 0.0
    %2758 = vmatprep.subr.mxu0 0.0
    %2759 = vmatpush2.msra.mxu0 0.0
    %2760 = vmatprep.subr.mxu0 0.0
    %2761 = vmatpush2.msra.mxu0 0.0
    %2762 = vmatprep.subr.mxu0 0.0
    %2763 = vmatpush2.msra.mxu0 0.0
    %2764 = vmatprep.subr.mxu0 0.0
    %2765 = vmatpush2.msra.mxu0 0.0
    %2766 = vmatprep.subr.mxu0 0.0
    %2767 = vmatpush2.msra.mxu0 0.0
    %2768 = vmatprep.subr.mxu0 0.0
    %2769 = vmatpush2.msra.mxu0 0.0
    %2770 = vmatprep.subr.mxu0 0.0
    %2771 = vmatpush2.msra.mxu0 0.0
    %2772 = vmatprep.subr.mxu0 0.0
    %2773 = vmatpush2.msra.mxu0 0.0
    %2774 = vmatprep.subr.mxu0 0.0
    %2775 = vmatpush2.msra.mxu0 0.0
    %2776 = vmatprep.subr.mxu0 0.0
    %2777 = vmatpush2.msra.mxu0 0.0
    %2778 = vmatprep.mubr.f32.mxu0 0.0
    %2779 = vmatmul.mubr.f32.gmra.mxu0 %v2712
    %v2780 = vpop.f32.mrf.mxu0
    %v2781 = vadd.f32 %v2709, %v2780
    %v2782 = vpop.f32.mrf.mxu0
    %2783 = vdwg.mxu0
    %vm2784 = vcmask 25600
    %2785 = vst.msk [vmem:[#allocation12] sm:$0x3] %vm2784, %v2781
    // Predicated region
    $region74: #{lstm_att_forward.1} parent=1 // pred_check
      _
    $region75: #{lstm_att_forward.1} parent=1 // pred_check_branch
      %2787 = sbr.rel (0) target = $region77
    $region76: #{lstm_att_forward.1} parent=1 // pred_region
      %s2789 = ssub.s32 32, 32
      %2790 = vsyncadd [#allocation5], %s2789
      %s2792 = sshll.u32 [#allocation12], 4
      %s2793 = int_to_ptr.vmem [resolvable:$true] %s2792
      %2795 = dma.vmem_to_hbm [thread:$0]  %s2793, 32, %s13, [#allocation5]
    $region77: #{lstm_att_forward.1} parent=1 // pred_fallthru
      _
    // Predicated region
    $region78: #{lstm_att_forward.1} parent=1 // pred_check
      _
    $region79: #{lstm_att_forward.1} parent=1 // pred_check_branch
      %2797 = sbr.rel (0) target = $region81
    $region80: #{lstm_att_forward.1} parent=1 // pred_region
      %2798 = dma.done [#allocation5], 32
    $region81: #{lstm_att_forward.1} parent=1 // pred_fallthru
      _
    %2799 = vsyncpa [#allocation4], 1
    %2800 = vsyncpa [#allocation7], 1
    %2801 = vsyncpa [#allocation10], 1
    %2802 = vsyncpa [#allocation5], 1

</llo_original>
